<compile_context>
chip_gen: v6e
topology: v6e:2x2x1
jax: 0.10.0
libtpu: 0.0.40
codegen_flags: <defaults>
</compile_context>

<pallas_src>
import jax
import jax.numpy as jnp
import numpy as np
from jax import lax
from jax.experimental import pallas as pl
from jax.experimental.pallas import tpu as pltpu


def _make_inception_kernel(C1, C3r, C5r):
    def kernel(x_ref, wf_ref, bf_ref, w3_ref, b3_ref, w5_ref, b5_ref,
               wp_ref, bp_ref, o_ref):
        xb = x_ref[...]                                 # (BN, H, W, Cin) bf16
        BN, H, W, Cin = xb.shape
        M = BN * H * W

        def mm_relu(a, w_ref, b_ref):
            # bf16 MXU inputs, f32 accumulation, exact f32 bias add + ReLU.
            y = jnp.dot(a.astype(jnp.bfloat16), w_ref[...],
                        preferred_element_type=jnp.float32)
            return jnp.maximum(y + b_ref[...], 0.0)

        xf = xb.reshape(M, Cin)

        # ---- fused 1x1 convs: [w1 | w3_reduce | w5_reduce], one matmul -----
        y = mm_relu(xf, wf_ref, bf_ref)                 # (M, C1+C3r+C5r) f32
        x1 = y[:, :C1]
        r2 = y[:, C1:C1 + C3r].reshape(BN, H, W, C3r)
        r3 = y[:, C1 + C3r:C1 + C3r + C5r].reshape(BN, H, W, C5r)

        # ---- im2col: zero-pad in-register (per image), gather k*k shifted
        #      taps along the contraction axis -> ONE MXU matmul per branch. --
        def im2col(r, k):
            p = k // 2
            _, Hr, Wr, C = r.shape
            zw = jnp.zeros((BN, Hr, p, C), r.dtype)
            rw = jnp.concatenate([zw, r, zw], axis=2)            # (BN,H,W+2p,C)
            zh = jnp.zeros((BN, p, Wr + 2 * p, C), r.dtype)
            rp = jnp.concatenate([zh, rw, zh], axis=1)           # (BN,H+2p,W+2p,C)
            taps = [rp[:, dh:dh + Hr, dw:dw + Wr, :].reshape(M, C)
                    for dh in range(k) for dw in range(k)]
            return jnp.concatenate(taps, axis=-1)                # (M, k*k*C)

        x2 = mm_relu(im2col(r2, 3), w3_ref, b3_ref)     # 3x3 conv, pad=1
        x3 = mm_relu(im2col(r3, 5), w5_ref, b5_ref)     # 5x5 conv, pad=2

        # ---- branch 4: 3x3/s1/p1 max-pool (separable, -inf pad) -> 1x1 -----
        neg = jnp.asarray(-jnp.inf, xb.dtype)
        ew = jnp.full((BN, H, 1, Cin), neg, xb.dtype)
        xw = jnp.concatenate([ew, xb, ew], axis=2)               # (BN,H,W+2,C)
        mw = jnp.maximum(jnp.maximum(xw[:, :, 0:W], xw[:, :, 1:W + 1]),
                         xw[:, :, 2:W + 2])
        eh = jnp.full((BN, 1, W, Cin), neg, xb.dtype)
        xh = jnp.concatenate([eh, mw, eh], axis=1)               # (BN,H+2,W,C)
        pooled = jnp.maximum(jnp.maximum(xh[:, 0:H], xh[:, 1:H + 1]),
                             xh[:, 2:H + 2])
        x4 = mm_relu(pooled.reshape(M, Cin), wp_ref, bp_ref)

        # ---- single concat store (one vst stream instead of 4 masked) ------
        out = jnp.concatenate([x1, x2, x3, x4], axis=-1)         # (M, Ctot)
        o_ref[...] = out.reshape(o_ref.shape).astype(o_ref.dtype)

    return kernel


def inception_block(x_nchw, params, *, batch_tile=1):
    """x_nchw: (N, Cin, H, W) float32. Returns NCHW float32."""
    N, Cin, H, W = x_nchw.shape
    (w1, b1), (w3r, b3r), (w3, b3), (w5r, b5r), (w5, b5), (wp, bp) = params
    C1, C3r, C3 = w1.shape[1], w3r.shape[1], w3.shape[3]
    C5r, C5, Cp = w5r.shape[1], w5.shape[3], wp.shape[1]
    Ctot = C1 + C3 + C5 + Cp

    BN = batch_tile
    assert N % BN == 0, "batch_tile must divide N"

    # Wrapper-side weight prep: fuse 1x1s along cout, im2col-flatten 3x3/5x5,
    # cast MXU operands to bf16 (biases stay f32: added after f32 accumulation).
    bf16 = jnp.bfloat16
    wf = jnp.concatenate([w1, w3r, w5r], axis=1).astype(bf16)    # (Cin, C1+C3r+C5r)
    bfu = jnp.concatenate([b1, b3r, b5r], axis=1)                # (1,   C1+C3r+C5r)
    w3i = w3.reshape(9 * C3r, C3).astype(bf16)                   # (9*C3r,  C3)
    w5i = w5.reshape(25 * C5r, C5).astype(bf16)                  # (25*C5r, C5)
    wpc = wp.astype(bf16)                                        # (Cin, Cp)

    x = jnp.transpose(x_nchw, (0, 2, 3, 1)).astype(bf16)         # NHWC, bf16

    def whole(a):
        shp = a.shape
        return pl.BlockSpec(shp, lambda n, _r=len(shp): (0,) * _r)

    grid_spec = pltpu.PrefetchScalarGridSpec(
        num_scalar_prefetch=0,
        grid=(N // BN,),
        in_specs=[
            pl.BlockSpec((BN, H, W, Cin), lambda n: (n, 0, 0, 0)),
            whole(wf), whole(bfu),
            whole(w3i), whole(b3),
            whole(w5i), whole(b5),
            whole(wpc), whole(bp),
        ],
        out_specs=pl.BlockSpec((BN, H, W, Ctot), lambda n: (n, 0, 0, 0)),
    )
    out = pl.pallas_call(
        _make_inception_kernel(C1, C3r, C5r),
        out_shape=jax.ShapeDtypeStruct((N, H, W, Ctot), jnp.float32),
        grid_spec=grid_spec,
        compiler_params=pltpu.CompilerParams(
            dimension_semantics=("parallel",)),
    )(x, wf, bfu, w3i, b3, w5i, b5, wpc, bp)
    return jnp.transpose(out, (0, 3, 1, 2))                      # back to NCHW


def make_params(key, in_channels, n1, n3r, n3, n5r, n5, npp):
    """Deterministic ConvBlock params; BN (eval mode) exactly folded into conv."""
    def convblock(k, cin, cout, ks):
        kw, kb, kg, kbe, km, kv = jax.random.split(k, 6)
        w = jax.random.normal(kw, (cout, cin, ks, ks), jnp.float32)
        w = w * (1.0 / np.sqrt(cin * ks * ks))
        b = 0.1 * jax.random.normal(kb, (cout,), jnp.float32)
        gamma = 1.0 + 0.1 * jax.random.normal(kg, (cout,), jnp.float32)
        beta = 0.1 * jax.random.normal(kbe, (cout,), jnp.float32)
        mean = 0.1 * jax.random.normal(km, (cout,), jnp.float32)
        var = 1.0 + 0.5 * jax.random.uniform(kv, (cout,), jnp.float32)
        s = gamma / jnp.sqrt(var + 1e-5)
        return w * s[:, None, None, None], (b - mean) * s + beta

    ks = jax.random.split(key, 6)
    w1, b1 = convblock(ks[0], in_channels, n1, 1)
    w3r, b3r = convblock(ks[1], in_channels, n3r, 1)
    w3, b3 = convblock(ks[2], n3r, n3, 3)
    w5r, b5r = convblock(ks[3], in_channels, n5r, 1)
    w5, b5 = convblock(ks[4], n5r, n5, 5)
    wp, bp = convblock(ks[5], in_channels, npp, 1)

    to1x1 = lambda w: jnp.transpose(w[:, :, 0, 0], (1, 0))       # (cin, cout)
    tokxk = lambda w: jnp.transpose(w, (2, 3, 1, 0))             # (kh, kw, cin, cout)
    tob = lambda b: b.reshape(1, -1)
    return ((to1x1(w1), tob(b1)), (to1x1(w3r), tob(b3r)),
            (tokxk(w3), tob(b3)), (to1x1(w5r), tob(b5r)),
            (tokxk(w5), tob(b5)), (to1x1(wp), tob(bp)))


def reference(x_nchw, params):
    """Pure-JAX f32 reference for validation."""
    x = jnp.transpose(x_nchw, (0, 2, 3, 1))
    (w1, b1), (w3r, b3r), (w3, b3), (w5r, b5r), (w5, b5), (wp, bp) = params

    def conv(inp, w, b, pad):
        if w.ndim == 2:
            y = jnp.einsum('nhwc,cd->nhwd', inp, w)
        else:
            y = lax.conv_general_dilated(
                inp, w, (1, 1), [(pad, pad), (pad, pad)],
                dimension_numbers=('NHWC', 'HWIO', 'NHWC'))
        return jnp.maximum(y + b.reshape(1, 1, 1, -1), 0.0)

    x1 = conv(x, w1, b1, 0)
    x2 = conv(conv(x, w3r, b3r, 0), w3, b3, 1)
    x3 = conv(conv(x, w5r, b5r, 0), w5, b5, 2)
    pooled = lax.reduce_window(x, -jnp.inf, lax.max, (1, 3, 3, 1),
                               (1, 1, 1, 1), [(0, 0), (1, 1), (1, 1), (0, 0)])
    x4 = conv(pooled, wp, bp, 0)
    out = jnp.concatenate([x1, x2, x3, x4], axis=-1)
    return jnp.transpose(out, (0, 3, 1, 2))


if __name__ == "__main__":
    key = jax.random.PRNGKey(0)
    kx, kp = jax.random.split(key)

    N, Cin, H, W = 2, 16, 16, 16
    n1, n3r, n3, n5r, n5, npp = 16, 16, 32, 8, 16, 16

    x = jax.random.normal(kx, (N, Cin, H, W), jnp.float32)       # NCHW like PyTorch
    params = make_params(kp, Cin, n1, n3r, n3, n5r, n5, npp)

    out = inception_block(x, params)
    out = jax.block_until_ready(out)
    assert out.shape == (N, n1 + n3 + n5 + npp, H, W), out.shape

    ref = jax.block_until_ready(reference(x, params))
    # Looser tolerance than pure-f32: MXU operands are bf16 (f32 accumulation).
    np.testing.assert_allclose(np.asarray(out), np.asarray(ref),
                               rtol=2e-2, atol=2e-2)
    print("KERNEL_OK")
</pallas_src>

<mosaic_0001>
module attributes {stable_mosaic.version = 11 : i64} {
  func.func @kernel(%arg0: i32, %arg1: memref<1x16x16x16xbf16, #tpu.memory_space<vmem>>, %arg2: memref<16x40xbf16, #tpu.memory_space<vmem>>, %arg3: memref<1x40xf32, #tpu.memory_space<vmem>>, %arg4: memref<144x32xbf16, #tpu.memory_space<vmem>>, %arg5: memref<1x32xf32, #tpu.memory_space<vmem>>, %arg6: memref<200x16xbf16, #tpu.memory_space<vmem>>, %arg7: memref<1x16xf32, #tpu.memory_space<vmem>>, %arg8: memref<16x16xbf16, #tpu.memory_space<vmem>>, %arg9: memref<1x16xf32, #tpu.memory_space<vmem>>, %arg10: memref<1x16x16x80xf32, #tpu.memory_space<vmem>>) attributes {dimension_semantics = [#tpu.dimension_semantics<parallel>], iteration_bounds = array<i64: 2>, scalar_prefetch = 0 : i64, scratch_operands = 0 : i64, tpu.core_type = #tpu.core_type<tc>, window_params = [{transform_indices = @transform_0, window_bounds = array<i64: 1, 16, 16, 16>}, {pipeline_mode = #tpu.pipeline_mode<synchronous>, transform_indices = @transform_1, window_bounds = array<i64: 16, 40>}, {pipeline_mode = #tpu.pipeline_mode<synchronous>, transform_indices = @transform_2, window_bounds = array<i64: 1, 40>}, {pipeline_mode = #tpu.pipeline_mode<synchronous>, transform_indices = @transform_3, window_bounds = array<i64: 144, 32>}, {pipeline_mode = #tpu.pipeline_mode<synchronous>, transform_indices = @transform_4, window_bounds = array<i64: 1, 32>}, {pipeline_mode = #tpu.pipeline_mode<synchronous>, transform_indices = @transform_5, window_bounds = array<i64: 200, 16>}, {pipeline_mode = #tpu.pipeline_mode<synchronous>, transform_indices = @transform_6, window_bounds = array<i64: 1, 16>}, {pipeline_mode = #tpu.pipeline_mode<synchronous>, transform_indices = @transform_7, window_bounds = array<i64: 16, 16>}, {pipeline_mode = #tpu.pipeline_mode<synchronous>, transform_indices = @transform_8, window_bounds = array<i64: 1, 16>}, {transform_indices = @transform_9, window_bounds = array<i64: 1, 16, 16, 80>}]} {
    %c0 = arith.constant 0 : index
    %c0_0 = arith.constant 0 : index
    %c0_1 = arith.constant 0 : index
    %c0_2 = arith.constant 0 : index
    %0 = vector.load %arg1[%c0, %c0_0, %c0_1, %c0_2] : memref<1x16x16x16xbf16, #tpu.memory_space<vmem>>, vector<1x16x16x16xbf16>
    %1 = vector.shape_cast %0 : vector<1x16x16x16xbf16> to vector<256x16xbf16>
    %c0_3 = arith.constant 0 : index
    %c0_4 = arith.constant 0 : index
    %2 = vector.load %arg2[%c0_3, %c0_4] : memref<16x40xbf16, #tpu.memory_space<vmem>>, vector<16x40xbf16>
    %cst = arith.constant dense<0.000000e+00> : vector<256x40xf32>
    %3 = tpu.matmul %1, %2, %cst {dimension_numbers = #tpu.dot_dimension_numbers<[1], [0], [0], [1], [0, 0, 1, 1], [], []>} : vector<256x16xbf16>, vector<16x40xbf16>, vector<256x40xf32> -> vector<256x40xf32>
    %c0_5 = arith.constant 0 : index
    %c0_6 = arith.constant 0 : index
    %4 = vector.load %arg3[%c0_5, %c0_6] : memref<1x40xf32, #tpu.memory_space<vmem>>, vector<1x40xf32>
    %5 = vector.broadcast %4 : vector<1x40xf32> to vector<256x40xf32>
    %6 = arith.addf %3, %5 : vector<256x40xf32>
    %cst_7 = arith.constant 0.000000e+00 : f32
    %7 = vector.broadcast %cst_7 : f32 to vector<256x40xf32>
    %8 = arith.maximumf %6, %7 : vector<256x40xf32>
    %9 = vector.extract_strided_slice %8 {offsets = [0, 0], sizes = [256, 16], strides = [1, 1]} : vector<256x40xf32> to vector<256x16xf32>
    %10 = vector.extract_strided_slice %8 {offsets = [0, 16], sizes = [256, 16], strides = [1, 1]} : vector<256x40xf32> to vector<256x16xf32>
    %11 = vector.shape_cast %10 : vector<256x16xf32> to vector<1x16x16x16xf32>
    %12 = vector.extract_strided_slice %8 {offsets = [0, 32], sizes = [256, 8], strides = [1, 1]} : vector<256x40xf32> to vector<256x8xf32>
    %13 = vector.shape_cast %12 : vector<256x8xf32> to vector<1x16x16x8xf32>
    %cst_8 = arith.constant 0.000000e+00 : f32
    %14 = vector.broadcast %cst_8 : f32 to vector<1x16x1x16xf32>
    %15 = tpu.concatenate %14, %11, %14 in 2 : vector<1x16x1x16xf32>, vector<1x16x16x16xf32>, vector<1x16x1x16xf32> -> vector<1x16x18x16xf32>
    %cst_9 = arith.constant 0.000000e+00 : f32
    %16 = vector.broadcast %cst_9 : f32 to vector<1x1x18x16xf32>
    %17 = tpu.concatenate %16, %15, %16 in 1 : vector<1x1x18x16xf32>, vector<1x16x18x16xf32>, vector<1x1x18x16xf32> -> vector<1x18x18x16xf32>
    %18 = vector.extract_strided_slice %17 {offsets = [0, 0, 0, 0], sizes = [1, 16, 16, 16], strides = [1, 1, 1, 1]} : vector<1x18x18x16xf32> to vector<1x16x16x16xf32>
    %19 = vector.shape_cast %18 : vector<1x16x16x16xf32> to vector<256x16xf32>
    %20 = vector.extract_strided_slice %17 {offsets = [0, 0, 1, 0], sizes = [1, 16, 16, 16], strides = [1, 1, 1, 1]} : vector<1x18x18x16xf32> to vector<1x16x16x16xf32>
    %21 = vector.shape_cast %20 : vector<1x16x16x16xf32> to vector<256x16xf32>
    %22 = vector.extract_strided_slice %17 {offsets = [0, 0, 2, 0], sizes = [1, 16, 16, 16], strides = [1, 1, 1, 1]} : vector<1x18x18x16xf32> to vector<1x16x16x16xf32>
    %23 = vector.shape_cast %22 : vector<1x16x16x16xf32> to vector<256x16xf32>
    %24 = vector.extract_strided_slice %17 {offsets = [0, 1, 0, 0], sizes = [1, 16, 16, 16], strides = [1, 1, 1, 1]} : vector<1x18x18x16xf32> to vector<1x16x16x16xf32>
    %25 = vector.shape_cast %24 : vector<1x16x16x16xf32> to vector<256x16xf32>
    %26 = vector.extract_strided_slice %17 {offsets = [0, 1, 1, 0], sizes = [1, 16, 16, 16], strides = [1, 1, 1, 1]} : vector<1x18x18x16xf32> to vector<1x16x16x16xf32>
    %27 = vector.shape_cast %26 : vector<1x16x16x16xf32> to vector<256x16xf32>
    %28 = vector.extract_strided_slice %17 {offsets = [0, 1, 2, 0], sizes = [1, 16, 16, 16], strides = [1, 1, 1, 1]} : vector<1x18x18x16xf32> to vector<1x16x16x16xf32>
    %29 = vector.shape_cast %28 : vector<1x16x16x16xf32> to vector<256x16xf32>
    %30 = vector.extract_strided_slice %17 {offsets = [0, 2, 0, 0], sizes = [1, 16, 16, 16], strides = [1, 1, 1, 1]} : vector<1x18x18x16xf32> to vector<1x16x16x16xf32>
    %31 = vector.shape_cast %30 : vector<1x16x16x16xf32> to vector<256x16xf32>
    %32 = vector.extract_strided_slice %17 {offsets = [0, 2, 1, 0], sizes = [1, 16, 16, 16], strides = [1, 1, 1, 1]} : vector<1x18x18x16xf32> to vector<1x16x16x16xf32>
    %33 = vector.shape_cast %32 : vector<1x16x16x16xf32> to vector<256x16xf32>
    %34 = vector.extract_strided_slice %17 {offsets = [0, 2, 2, 0], sizes = [1, 16, 16, 16], strides = [1, 1, 1, 1]} : vector<1x18x18x16xf32> to vector<1x16x16x16xf32>
    %35 = vector.shape_cast %34 : vector<1x16x16x16xf32> to vector<256x16xf32>
    %36 = tpu.concatenate %19, %21, %23, %25, %27, %29, %31, %33, %35 in 1 : vector<256x16xf32>, vector<256x16xf32>, vector<256x16xf32>, vector<256x16xf32>, vector<256x16xf32>, vector<256x16xf32>, vector<256x16xf32>, vector<256x16xf32>, vector<256x16xf32> -> vector<256x144xf32>
    %37 = arith.truncf %36 : vector<256x144xf32> to vector<256x144xbf16>
    %c0_10 = arith.constant 0 : index
    %c0_11 = arith.constant 0 : index
    %38 = vector.load %arg4[%c0_10, %c0_11] : memref<144x32xbf16, #tpu.memory_space<vmem>>, vector<144x32xbf16>
    %cst_12 = arith.constant dense<0.000000e+00> : vector<256x32xf32>
    %39 = tpu.matmul %37, %38, %cst_12 {dimension_numbers = #tpu.dot_dimension_numbers<[1], [0], [0], [1], [0, 0, 1, 1], [], []>} : vector<256x144xbf16>, vector<144x32xbf16>, vector<256x32xf32> -> vector<256x32xf32>
    %c0_13 = arith.constant 0 : index
    %c0_14 = arith.constant 0 : index
    %40 = vector.load %arg5[%c0_13, %c0_14] : memref<1x32xf32, #tpu.memory_space<vmem>>, vector<1x32xf32>
    %41 = vector.broadcast %40 : vector<1x32xf32> to vector<256x32xf32>
    %42 = arith.addf %39, %41 : vector<256x32xf32>
    %cst_15 = arith.constant 0.000000e+00 : f32
    %43 = vector.broadcast %cst_15 : f32 to vector<256x32xf32>
    %44 = arith.maximumf %42, %43 : vector<256x32xf32>
    %cst_16 = arith.constant 0.000000e+00 : f32
    %45 = vector.broadcast %cst_16 : f32 to vector<1x16x2x8xf32>
    %46 = tpu.concatenate %45, %13, %45 in 2 : vector<1x16x2x8xf32>, vector<1x16x16x8xf32>, vector<1x16x2x8xf32> -> vector<1x16x20x8xf32>
    %cst_17 = arith.constant 0.000000e+00 : f32
    %47 = vector.broadcast %cst_17 : f32 to vector<1x2x20x8xf32>
    %48 = tpu.concatenate %47, %46, %47 in 1 : vector<1x2x20x8xf32>, vector<1x16x20x8xf32>, vector<1x2x20x8xf32> -> vector<1x20x20x8xf32>
    %49 = vector.extract_strided_slice %48 {offsets = [0, 0, 0, 0], sizes = [1, 16, 16, 8], strides = [1, 1, 1, 1]} : vector<1x20x20x8xf32> to vector<1x16x16x8xf32>
    %50 = vector.shape_cast %49 : vector<1x16x16x8xf32> to vector<256x8xf32>
    %51 = vector.extract_strided_slice %48 {offsets = [0, 0, 1, 0], sizes = [1, 16, 16, 8], strides = [1, 1, 1, 1]} : vector<1x20x20x8xf32> to vector<1x16x16x8xf32>
    %52 = vector.shape_cast %51 : vector<1x16x16x8xf32> to vector<256x8xf32>
    %53 = vector.extract_strided_slice %48 {offsets = [0, 0, 2, 0], sizes = [1, 16, 16, 8], strides = [1, 1, 1, 1]} : vector<1x20x20x8xf32> to vector<1x16x16x8xf32>
    %54 = vector.shape_cast %53 : vector<1x16x16x8xf32> to vector<256x8xf32>
    %55 = vector.extract_strided_slice %48 {offsets = [0, 0, 3, 0], sizes = [1, 16, 16, 8], strides = [1, 1, 1, 1]} : vector<1x20x20x8xf32> to vector<1x16x16x8xf32>
    %56 = vector.shape_cast %55 : vector<1x16x16x8xf32> to vector<256x8xf32>
    %57 = vector.extract_strided_slice %48 {offsets = [0, 0, 4, 0], sizes = [1, 16, 16, 8], strides = [1, 1, 1, 1]} : vector<1x20x20x8xf32> to vector<1x16x16x8xf32>
    %58 = vector.shape_cast %57 : vector<1x16x16x8xf32> to vector<256x8xf32>
    %59 = vector.extract_strided_slice %48 {offsets = [0, 1, 0, 0], sizes = [1, 16, 16, 8], strides = [1, 1, 1, 1]} : vector<1x20x20x8xf32> to vector<1x16x16x8xf32>
    %60 = vector.shape_cast %59 : vector<1x16x16x8xf32> to vector<256x8xf32>
    %61 = vector.extract_strided_slice %48 {offsets = [0, 1, 1, 0], sizes = [1, 16, 16, 8], strides = [1, 1, 1, 1]} : vector<1x20x20x8xf32> to vector<1x16x16x8xf32>
    %62 = vector.shape_cast %61 : vector<1x16x16x8xf32> to vector<256x8xf32>
    %63 = vector.extract_strided_slice %48 {offsets = [0, 1, 2, 0], sizes = [1, 16, 16, 8], strides = [1, 1, 1, 1]} : vector<1x20x20x8xf32> to vector<1x16x16x8xf32>
    %64 = vector.shape_cast %63 : vector<1x16x16x8xf32> to vector<256x8xf32>
    %65 = vector.extract_strided_slice %48 {offsets = [0, 1, 3, 0], sizes = [1, 16, 16, 8], strides = [1, 1, 1, 1]} : vector<1x20x20x8xf32> to vector<1x16x16x8xf32>
    %66 = vector.shape_cast %65 : vector<1x16x16x8xf32> to vector<256x8xf32>
    %67 = vector.extract_strided_slice %48 {offsets = [0, 1, 4, 0], sizes = [1, 16, 16, 8], strides = [1, 1, 1, 1]} : vector<1x20x20x8xf32> to vector<1x16x16x8xf32>
    %68 = vector.shape_cast %67 : vector<1x16x16x8xf32> to vector<256x8xf32>
    %69 = vector.extract_strided_slice %48 {offsets = [0, 2, 0, 0], sizes = [1, 16, 16, 8], strides = [1, 1, 1, 1]} : vector<1x20x20x8xf32> to vector<1x16x16x8xf32>
    %70 = vector.shape_cast %69 : vector<1x16x16x8xf32> to vector<256x8xf32>
    %71 = vector.extract_strided_slice %48 {offsets = [0, 2, 1, 0], sizes = [1, 16, 16, 8], strides = [1, 1, 1, 1]} : vector<1x20x20x8xf32> to vector<1x16x16x8xf32>
    %72 = vector.shape_cast %71 : vector<1x16x16x8xf32> to vector<256x8xf32>
    %73 = vector.extract_strided_slice %48 {offsets = [0, 2, 2, 0], sizes = [1, 16, 16, 8], strides = [1, 1, 1, 1]} : vector<1x20x20x8xf32> to vector<1x16x16x8xf32>
    %74 = vector.shape_cast %73 : vector<1x16x16x8xf32> to vector<256x8xf32>
    %75 = vector.extract_strided_slice %48 {offsets = [0, 2, 3, 0], sizes = [1, 16, 16, 8], strides = [1, 1, 1, 1]} : vector<1x20x20x8xf32> to vector<1x16x16x8xf32>
    %76 = vector.shape_cast %75 : vector<1x16x16x8xf32> to vector<256x8xf32>
    %77 = vector.extract_strided_slice %48 {offsets = [0, 2, 4, 0], sizes = [1, 16, 16, 8], strides = [1, 1, 1, 1]} : vector<1x20x20x8xf32> to vector<1x16x16x8xf32>
    %78 = vector.shape_cast %77 : vector<1x16x16x8xf32> to vector<256x8xf32>
    %79 = vector.extract_strided_slice %48 {offsets = [0, 3, 0, 0], sizes = [1, 16, 16, 8], strides = [1, 1, 1, 1]} : vector<1x20x20x8xf32> to vector<1x16x16x8xf32>
    %80 = vector.shape_cast %79 : vector<1x16x16x8xf32> to vector<256x8xf32>
    %81 = vector.extract_strided_slice %48 {offsets = [0, 3, 1, 0], sizes = [1, 16, 16, 8], strides = [1, 1, 1, 1]} : vector<1x20x20x8xf32> to vector<1x16x16x8xf32>
    %82 = vector.shape_cast %81 : vector<1x16x16x8xf32> to vector<256x8xf32>
    %83 = vector.extract_strided_slice %48 {offsets = [0, 3, 2, 0], sizes = [1, 16, 16, 8], strides = [1, 1, 1, 1]} : vector<1x20x20x8xf32> to vector<1x16x16x8xf32>
    %84 = vector.shape_cast %83 : vector<1x16x16x8xf32> to vector<256x8xf32>
    %85 = vector.extract_strided_slice %48 {offsets = [0, 3, 3, 0], sizes = [1, 16, 16, 8], strides = [1, 1, 1, 1]} : vector<1x20x20x8xf32> to vector<1x16x16x8xf32>
    %86 = vector.shape_cast %85 : vector<1x16x16x8xf32> to vector<256x8xf32>
    %87 = vector.extract_strided_slice %48 {offsets = [0, 3, 4, 0], sizes = [1, 16, 16, 8], strides = [1, 1, 1, 1]} : vector<1x20x20x8xf32> to vector<1x16x16x8xf32>
    %88 = vector.shape_cast %87 : vector<1x16x16x8xf32> to vector<256x8xf32>
    %89 = vector.extract_strided_slice %48 {offsets = [0, 4, 0, 0], sizes = [1, 16, 16, 8], strides = [1, 1, 1, 1]} : vector<1x20x20x8xf32> to vector<1x16x16x8xf32>
    %90 = vector.shape_cast %89 : vector<1x16x16x8xf32> to vector<256x8xf32>
    %91 = vector.extract_strided_slice %48 {offsets = [0, 4, 1, 0], sizes = [1, 16, 16, 8], strides = [1, 1, 1, 1]} : vector<1x20x20x8xf32> to vector<1x16x16x8xf32>
    %92 = vector.shape_cast %91 : vector<1x16x16x8xf32> to vector<256x8xf32>
    %93 = vector.extract_strided_slice %48 {offsets = [0, 4, 2, 0], sizes = [1, 16, 16, 8], strides = [1, 1, 1, 1]} : vector<1x20x20x8xf32> to vector<1x16x16x8xf32>
    %94 = vector.shape_cast %93 : vector<1x16x16x8xf32> to vector<256x8xf32>
    %95 = vector.extract_strided_slice %48 {offsets = [0, 4, 3, 0], sizes = [1, 16, 16, 8], strides = [1, 1, 1, 1]} : vector<1x20x20x8xf32> to vector<1x16x16x8xf32>
    %96 = vector.shape_cast %95 : vector<1x16x16x8xf32> to vector<256x8xf32>
    %97 = vector.extract_strided_slice %48 {offsets = [0, 4, 4, 0], sizes = [1, 16, 16, 8], strides = [1, 1, 1, 1]} : vector<1x20x20x8xf32> to vector<1x16x16x8xf32>
    %98 = vector.shape_cast %97 : vector<1x16x16x8xf32> to vector<256x8xf32>
    %99 = tpu.concatenate %50, %52, %54, %56, %58, %60, %62, %64, %66, %68, %70, %72, %74, %76, %78, %80 in 1 : vector<256x8xf32>, vector<256x8xf32>, vector<256x8xf32>, vector<256x8xf32>, vector<256x8xf32>, vector<256x8xf32>, vector<256x8xf32>, vector<256x8xf32>, vector<256x8xf32>, vector<256x8xf32>, vector<256x8xf32>, vector<256x8xf32>, vector<256x8xf32>, vector<256x8xf32>, vector<256x8xf32>, vector<256x8xf32> -> vector<256x128xf32>
    %100 = tpu.concatenate %82, %84, %86, %88, %90, %92, %94, %96, %98 in 1 : vector<256x8xf32>, vector<256x8xf32>, vector<256x8xf32>, vector<256x8xf32>, vector<256x8xf32>, vector<256x8xf32>, vector<256x8xf32>, vector<256x8xf32>, vector<256x8xf32> -> vector<256x72xf32>
    %101 = tpu.concatenate %99, %100 in 1 : vector<256x128xf32>, vector<256x72xf32> -> vector<256x200xf32>
    %102 = arith.truncf %101 : vector<256x200xf32> to vector<256x200xbf16>
    %c0_18 = arith.constant 0 : index
    %c0_19 = arith.constant 0 : index
    %103 = vector.load %arg6[%c0_18, %c0_19] : memref<200x16xbf16, #tpu.memory_space<vmem>>, vector<200x16xbf16>
    %cst_20 = arith.constant dense<0.000000e+00> : vector<256x16xf32>
    %104 = tpu.matmul %102, %103, %cst_20 {dimension_numbers = #tpu.dot_dimension_numbers<[1], [0], [0], [1], [0, 0, 1, 1], [], []>} : vector<256x200xbf16>, vector<200x16xbf16>, vector<256x16xf32> -> vector<256x16xf32>
    %c0_21 = arith.constant 0 : index
    %c0_22 = arith.constant 0 : index
    %105 = vector.load %arg7[%c0_21, %c0_22] : memref<1x16xf32, #tpu.memory_space<vmem>>, vector<1x16xf32>
    %106 = vector.broadcast %105 : vector<1x16xf32> to vector<256x16xf32>
    %107 = arith.addf %104, %106 : vector<256x16xf32>
    %cst_23 = arith.constant 0.000000e+00 : f32
    %108 = vector.broadcast %cst_23 : f32 to vector<256x16xf32>
    %109 = arith.maximumf %107, %108 : vector<256x16xf32>
    %cst_24 = arith.constant 0xFF80 : bf16
    %110 = vector.broadcast %cst_24 : bf16 to vector<1x16x1x16xbf16>
    %111 = tpu.concatenate %110, %0, %110 in 2 : vector<1x16x1x16xbf16>, vector<1x16x16x16xbf16>, vector<1x16x1x16xbf16> -> vector<1x16x18x16xbf16>
    %112 = vector.extract_strided_slice %111 {offsets = [0, 0, 0, 0], sizes = [1, 16, 16, 16], strides = [1, 1, 1, 1]} : vector<1x16x18x16xbf16> to vector<1x16x16x16xbf16>
    %113 = vector.extract_strided_slice %111 {offsets = [0, 0, 1, 0], sizes = [1, 16, 16, 16], strides = [1, 1, 1, 1]} : vector<1x16x18x16xbf16> to vector<1x16x16x16xbf16>
    %114 = arith.maximumf %112, %113 : vector<1x16x16x16xbf16>
    %115 = vector.extract_strided_slice %111 {offsets = [0, 0, 2, 0], sizes = [1, 16, 16, 16], strides = [1, 1, 1, 1]} : vector<1x16x18x16xbf16> to vector<1x16x16x16xbf16>
    %116 = arith.maximumf %114, %115 : vector<1x16x16x16xbf16>
    %cst_25 = arith.constant 0xFF80 : bf16
    %117 = vector.broadcast %cst_25 : bf16 to vector<1x1x16x16xbf16>
    %118 = tpu.concatenate %117, %116, %117 in 1 : vector<1x1x16x16xbf16>, vector<1x16x16x16xbf16>, vector<1x1x16x16xbf16> -> vector<1x18x16x16xbf16>
    %119 = vector.extract_strided_slice %118 {offsets = [0, 0, 0, 0], sizes = [1, 16, 16, 16], strides = [1, 1, 1, 1]} : vector<1x18x16x16xbf16> to vector<1x16x16x16xbf16>
    %120 = vector.extract_strided_slice %118 {offsets = [0, 1, 0, 0], sizes = [1, 16, 16, 16], strides = [1, 1, 1, 1]} : vector<1x18x16x16xbf16> to vector<1x16x16x16xbf16>
    %121 = arith.maximumf %119, %120 : vector<1x16x16x16xbf16>
    %122 = vector.extract_strided_slice %118 {offsets = [0, 2, 0, 0], sizes = [1, 16, 16, 16], strides = [1, 1, 1, 1]} : vector<1x18x16x16xbf16> to vector<1x16x16x16xbf16>
    %123 = arith.maximumf %121, %122 : vector<1x16x16x16xbf16>
    %124 = vector.shape_cast %123 : vector<1x16x16x16xbf16> to vector<256x16xbf16>
    %c0_26 = arith.constant 0 : index
    %c0_27 = arith.constant 0 : index
    %125 = vector.load %arg8[%c0_26, %c0_27] : memref<16x16xbf16, #tpu.memory_space<vmem>>, vector<16x16xbf16>
    %cst_28 = arith.constant dense<0.000000e+00> : vector<256x16xf32>
    %126 = tpu.matmul %124, %125, %cst_28 {dimension_numbers = #tpu.dot_dimension_numbers<[1], [0], [0], [1], [0, 0, 1, 1], [], []>} : vector<256x16xbf16>, vector<16x16xbf16>, vector<256x16xf32> -> vector<256x16xf32>
    %c0_29 = arith.constant 0 : index
    %c0_30 = arith.constant 0 : index
    %127 = vector.load %arg9[%c0_29, %c0_30] : memref<1x16xf32, #tpu.memory_space<vmem>>, vector<1x16xf32>
    %128 = vector.broadcast %127 : vector<1x16xf32> to vector<256x16xf32>
    %129 = arith.addf %126, %128 : vector<256x16xf32>
    %cst_31 = arith.constant 0.000000e+00 : f32
    %130 = vector.broadcast %cst_31 : f32 to vector<256x16xf32>
    %131 = arith.maximumf %129, %130 : vector<256x16xf32>
    %132 = tpu.concatenate %9, %44, %109, %131 in 1 : vector<256x16xf32>, vector<256x32xf32>, vector<256x16xf32>, vector<256x16xf32> -> vector<256x80xf32>
    %133 = vector.shape_cast %132 : vector<256x80xf32> to vector<1x16x16x80xf32>
    %c0_32 = arith.constant 0 : index
    %c0_33 = arith.constant 0 : index
    %c0_34 = arith.constant 0 : index
    %c0_35 = arith.constant 0 : index
    %134 = vector.load %arg10[%c0_32, %c0_33, %c0_34, %c0_35] : memref<1x16x16x80xf32, #tpu.memory_space<vmem>>, vector<1x16x16x80xf32>
    tpu.vector_store %arg10[%c0_32, %c0_33, %c0_34, %c0_35], %133 {strides = array<i32>} : memref<1x16x16x80xf32, #tpu.memory_space<vmem>>, vector<1x16x16x80xf32>,
    return
  }
  func.func @transform_0(%arg0: i32) -> (i32, i32, i32, i32) {
    %c0_i32 = arith.constant 0 : i32
    %c0_i32_0 = arith.constant 0 : i32
    %c0_i32_1 = arith.constant 0 : i32
    %c0_i32_2 = arith.constant 0 : i32
    return %arg0, %c0_i32, %c0_i32_0, %c0_i32_1 : i32, i32, i32, i32
  }
  func.func @transform_1(%arg0: i32) -> (i32, i32) {
    %c0_i32 = arith.constant 0 : i32
    %c0_i32_0 = arith.constant 0 : i32
    %c0_i32_1 = arith.constant 0 : i32
    return %c0_i32, %c0_i32_0 : i32, i32
  }
  func.func @transform_2(%arg0: i32) -> (i32, i32) {
    %c0_i32 = arith.constant 0 : i32
    %c0_i32_0 = arith.constant 0 : i32
    %c0_i32_1 = arith.constant 0 : i32
    return %c0_i32, %c0_i32_0 : i32, i32
  }
  func.func @transform_3(%arg0: i32) -> (i32, i32) {
    %c0_i32 = arith.constant 0 : i32
    %c0_i32_0 = arith.constant 0 : i32
    %c0_i32_1 = arith.constant 0 : i32
    return %c0_i32, %c0_i32_0 : i32, i32
  }
  func.func @transform_4(%arg0: i32) -> (i32, i32) {
    %c0_i32 = arith.constant 0 : i32
    %c0_i32_0 = arith.constant 0 : i32
    %c0_i32_1 = arith.constant 0 : i32
    return %c0_i32, %c0_i32_0 : i32, i32
  }
  func.func @transform_5(%arg0: i32) -> (i32, i32) {
    %c0_i32 = arith.constant 0 : i32
    %c0_i32_0 = arith.constant 0 : i32
    %c0_i32_1 = arith.constant 0 : i32
    return %c0_i32, %c0_i32_0 : i32, i32
  }
  func.func @transform_6(%arg0: i32) -> (i32, i32) {
    %c0_i32 = arith.constant 0 : i32
    %c0_i32_0 = arith.constant 0 : i32
    %c0_i32_1 = arith.constant 0 : i32
    return %c0_i32, %c0_i32_0 : i32, i32
  }
  func.func @transform_7(%arg0: i32) -> (i32, i32) {
    %c0_i32 = arith.constant 0 : i32
    %c0_i32_0 = arith.constant 0 : i32
    %c0_i32_1 = arith.constant 0 : i32
    return %c0_i32, %c0_i32_0 : i32, i32
  }
  func.func @transform_8(%arg0: i32) -> (i32, i32) {
    %c0_i32 = arith.constant 0 : i32
    %c0_i32_0 = arith.constant 0 : i32
    %c0_i32_1 = arith.constant 0 : i32
    return %c0_i32, %c0_i32_0 : i32, i32
  }
  func.func @transform_9(%arg0: i32) -> (i32, i32, i32, i32) {
    %c0_i32 = arith.constant 0 : i32
    %c0_i32_0 = arith.constant 0 : i32
    %c0_i32_1 = arith.constant 0 : i32
    %c0_i32_2 = arith.constant 0 : i32
    return %arg0, %c0_i32, %c0_i32_0, %c0_i32_1 : i32, i32, i32, i32
  }
}

</mosaic_0001>

<llo_original>
// kernel: tpu_custom_call.1
$region0: #{tpu_custom_call.1}
  #allocation0 [shape = 'u32[]', space=smem, size = 0x4, offset = 0x4, fixed_abs, tag = 'smem constant byte address 0x4 - core index']
  #allocation1 [shape = 'u32[144,128]{1,0:T(1,128)}', space=vmem, size = 0x12000, scoped, tag = 'internal scratch']
  %s0 = inlined_call_operand.hbm [shape: bf16[2,16,16,16], index: 0, kind: input, shape index: {}]
  %s1 = inlined_call_operand.vmem [shape: bf16[16,40], index: 1, kind: input, shape index: {}]
  %s2 = inlined_call_operand.vmem [shape: f32[1,40], index: 2, kind: input, shape index: {}]
  %s3 = inlined_call_operand.vmem [shape: bf16[144,32], index: 3, kind: input, shape index: {}]
  %s4 = inlined_call_operand.vmem [shape: f32[1,32], index: 4, kind: input, shape index: {}]
  %s5 = inlined_call_operand.vmem [shape: bf16[200,16], index: 5, kind: input, shape index: {}]
  %s6 = inlined_call_operand.vmem [shape: f32[1,16], index: 6, kind: input, shape index: {}]
  %s7 = inlined_call_operand.vmem [shape: bf16[16,16], index: 7, kind: input, shape index: {}]
  %s8 = inlined_call_operand.vmem [shape: f32[1,16], index: 8, kind: input, shape index: {}]
  %s9 = inlined_call_operand.hbm [shape: f32[2,16,16,80], index: 9, kind: output, shape index: {}]
  %s10 = sld [smem:[#allocation0]]
  $region73: #{tpu_custom_call.1} parent=0
    _
  %s12 = ssub.s32 1, %s10
  %s13 = scalar_select 0, %s12, %s10
  $region1: #{tpu_custom_call.1} parent=0
    #allocation2 [shape = 'u8[131072]{0}', space=vmem, size = 0x20000, scoped, tag = 'input window, operand 0']
    #allocation3 [shape = 's32[2]{0}', space=sflag, size = 0x8, scoped, tag = 'scoped memory for tpu_custom_call.1']
    #allocation4 [shape = 's32[2]{0}', space=sflag, size = 0x8, scoped, tag = 'scoped memory for tpu_custom_call.1']
    #allocation5 [shape = 'u8[262144]{0}', space=vmem, size = 0x40000, scoped, tag = 'output window, operand 0']
    %14 = vsyncpa [#allocation3], 0
    %s15 = scalar_lea.sflag [#allocation3], 1
    %16 = vsyncpa %s15, 0
    %17 = vsyncpa [#allocation4], 0
    %s18 = scalar_lea.sflag [#allocation4], 1
    %19 = vsyncpa %s18, 0
    loop: start=0, step=1, limit=4
    $region2: #{tpu_custom_call.1} parent=1 // loop_pre_header
      _
    $region3: #{tpu_custom_call.1} parent=1 // loop_header
      %s21 = sphi 0, %s25
      %p22 = scmp.ge.s32.totalorder %s21, 4
      %s31 = sphi 0, %s33
      %s34 = sphi 0, %s31
      %s35 = sphi 0, %s34
      %s51 = sphi 0, %s35
      %s55 = sphi 0, %s55
      %s57 = sphi 0, %s55
      %s58 = sphi 0, %s57
      %s72 = sphi 0, %s58
      %s76 = sphi 0, %s76
      %s78 = sphi 0, %s76
      %s79 = sphi 0, %s78
      %s93 = sphi 0, %s79
      %s97 = sphi 0, %s97
      %s99 = sphi 0, %s97
      %s100 = sphi 0, %s99
      %s114 = sphi 0, %s100
      %s118 = sphi 0, %s118
      %s120 = sphi 0, %s118
      %s121 = sphi 0, %s120
      %s135 = sphi 0, %s121
      %s139 = sphi 0, %s139
      %s141 = sphi 0, %s139
      %s142 = sphi 0, %s141
      %s156 = sphi 0, %s142
      %s160 = sphi 0, %s160
      %s162 = sphi 0, %s160
      %s163 = sphi 0, %s162
      %s177 = sphi 0, %s163
      %s181 = sphi 0, %s181
      %s183 = sphi 0, %s181
      %s184 = sphi 0, %s183
      %s198 = sphi 0, %s184
      %s202 = sphi 0, %s202
      %s204 = sphi 0, %s202
      %s205 = sphi 0, %s204
      %s219 = sphi 0, %s205
      %s225 = sphi 0, %s227
      %s228 = sphi 0, %s225
      %s229 = sphi 0, %s228
      %s245 = sphi 0, %s229
    $region4: #{tpu_custom_call.1} parent=1 // loop_header_branch
      %24 = sbr.rel (%p22) target = $region8
    $region5: #{tpu_custom_call.1} parent=1 // loop_body
      %s26 = ssub.s32 %s21, 1
      %s27 = ssub.s32 %s21, 2
      %s28 = sadd.s32 %s21, 1
      %s29 = ssub.s32 %s21, %s28
      %p30 = scmp.eq.s32.totalorder %s29, 0
      %s32 = sadd.s32 %s31, 1
      %s33 = scalar_select %p30, %s31, %s32
      %p36 = pneg %p30
      %p37 = scmp.eq.s32.totalorder %s21, 1
      %p38 = por %p36, %p37
      %p39 = scmp.ne.s32.totalorder %s31, %s34
      %p40 = scmp.eq.s32.totalorder %s21, 0
      %p41 = por %p39, %p40
      %p42 = scmp.ne.s32.totalorder %s31, %s34
      %p43 = scmp.eq.s32.totalorder %s26, 1
      %p44 = por %p42, %p43
      %p45 = scmp.ne.s32.totalorder %s34, %s35
      %p46 = scmp.eq.s32.totalorder %s26, 0
      %p47 = por %p45, %p46
      %p48 = scmp.ne.s32.totalorder %s34, %s35
      %p49 = scmp.eq.s32.totalorder %s27, 1
      %p50 = por %p48, %p49
      %p52 = scmp.ne.s32.totalorder %s35, %s51
      %p53 = scmp.eq.s32.totalorder %s27, 0
      %p54 = por %p52, %p53
      %s56 = sadd.s32 %s55, 1
      %p59 = scmp.eq.s32.totalorder %s21, 1
      %p60 = scmp.ne.s32.totalorder %s55, %s57
      %p61 = scmp.eq.s32.totalorder %s21, 0
      %p62 = por %p60, %p61
      %p63 = scmp.ne.s32.totalorder %s55, %s57
      %p64 = scmp.eq.s32.totalorder %s26, 1
      %p65 = por %p63, %p64
      %p66 = scmp.ne.s32.totalorder %s57, %s58
      %p67 = scmp.eq.s32.totalorder %s26, 0
      %p68 = por %p66, %p67
      %p69 = scmp.ne.s32.totalorder %s57, %s58
      %p70 = scmp.eq.s32.totalorder %s27, 1
      %p71 = por %p69, %p70
      %p73 = scmp.ne.s32.totalorder %s58, %s72
      %p74 = scmp.eq.s32.totalorder %s27, 0
      %p75 = por %p73, %p74
      %s77 = sadd.s32 %s76, 1
      %p80 = scmp.eq.s32.totalorder %s21, 1
      %p81 = scmp.ne.s32.totalorder %s76, %s78
      %p82 = scmp.eq.s32.totalorder %s21, 0
      %p83 = por %p81, %p82
      %p84 = scmp.ne.s32.totalorder %s76, %s78
      %p85 = scmp.eq.s32.totalorder %s26, 1
      %p86 = por %p84, %p85
      %p87 = scmp.ne.s32.totalorder %s78, %s79
      %p88 = scmp.eq.s32.totalorder %s26, 0
      %p89 = por %p87, %p88
      %p90 = scmp.ne.s32.totalorder %s78, %s79
      %p91 = scmp.eq.s32.totalorder %s27, 1
      %p92 = por %p90, %p91
      %p94 = scmp.ne.s32.totalorder %s79, %s93
      %p95 = scmp.eq.s32.totalorder %s27, 0
      %p96 = por %p94, %p95
      %s98 = sadd.s32 %s97, 1
      %p101 = scmp.eq.s32.totalorder %s21, 1
      %p102 = scmp.ne.s32.totalorder %s97, %s99
      %p103 = scmp.eq.s32.totalorder %s21, 0
      %p104 = por %p102, %p103
      %p105 = scmp.ne.s32.totalorder %s97, %s99
      %p106 = scmp.eq.s32.totalorder %s26, 1
      %p107 = por %p105, %p106
      %p108 = scmp.ne.s32.totalorder %s99, %s100
      %p109 = scmp.eq.s32.totalorder %s26, 0
      %p110 = por %p108, %p109
      %p111 = scmp.ne.s32.totalorder %s99, %s100
      %p112 = scmp.eq.s32.totalorder %s27, 1
      %p113 = por %p111, %p112
      %p115 = scmp.ne.s32.totalorder %s100, %s114
      %p116 = scmp.eq.s32.totalorder %s27, 0
      %p117 = por %p115, %p116
      %s119 = sadd.s32 %s118, 1
      %p122 = scmp.eq.s32.totalorder %s21, 1
      %p123 = scmp.ne.s32.totalorder %s118, %s120
      %p124 = scmp.eq.s32.totalorder %s21, 0
      %p125 = por %p123, %p124
      %p126 = scmp.ne.s32.totalorder %s118, %s120
      %p127 = scmp.eq.s32.totalorder %s26, 1
      %p128 = por %p126, %p127
      %p129 = scmp.ne.s32.totalorder %s120, %s121
      %p130 = scmp.eq.s32.totalorder %s26, 0
      %p131 = por %p129, %p130
      %p132 = scmp.ne.s32.totalorder %s120, %s121
      %p133 = scmp.eq.s32.totalorder %s27, 1
      %p134 = por %p132, %p133
      %p136 = scmp.ne.s32.totalorder %s121, %s135
      %p137 = scmp.eq.s32.totalorder %s27, 0
      %p138 = por %p136, %p137
      %s140 = sadd.s32 %s139, 1
      %p143 = scmp.eq.s32.totalorder %s21, 1
      %p144 = scmp.ne.s32.totalorder %s139, %s141
      %p145 = scmp.eq.s32.totalorder %s21, 0
      %p146 = por %p144, %p145
      %p147 = scmp.ne.s32.totalorder %s139, %s141
      %p148 = scmp.eq.s32.totalorder %s26, 1
      %p149 = por %p147, %p148
      %p150 = scmp.ne.s32.totalorder %s141, %s142
      %p151 = scmp.eq.s32.totalorder %s26, 0
      %p152 = por %p150, %p151
      %p153 = scmp.ne.s32.totalorder %s141, %s142
      %p154 = scmp.eq.s32.totalorder %s27, 1
      %p155 = por %p153, %p154
      %p157 = scmp.ne.s32.totalorder %s142, %s156
      %p158 = scmp.eq.s32.totalorder %s27, 0
      %p159 = por %p157, %p158
      %s161 = sadd.s32 %s160, 1
      %p164 = scmp.eq.s32.totalorder %s21, 1
      %p165 = scmp.ne.s32.totalorder %s160, %s162
      %p166 = scmp.eq.s32.totalorder %s21, 0
      %p167 = por %p165, %p166
      %p168 = scmp.ne.s32.totalorder %s160, %s162
      %p169 = scmp.eq.s32.totalorder %s26, 1
      %p170 = por %p168, %p169
      %p171 = scmp.ne.s32.totalorder %s162, %s163
      %p172 = scmp.eq.s32.totalorder %s26, 0
      %p173 = por %p171, %p172
      %p174 = scmp.ne.s32.totalorder %s162, %s163
      %p175 = scmp.eq.s32.totalorder %s27, 1
      %p176 = por %p174, %p175
      %p178 = scmp.ne.s32.totalorder %s163, %s177
      %p179 = scmp.eq.s32.totalorder %s27, 0
      %p180 = por %p178, %p179
      %s182 = sadd.s32 %s181, 1
      %p185 = scmp.eq.s32.totalorder %s21, 1
      %p186 = scmp.ne.s32.totalorder %s181, %s183
      %p187 = scmp.eq.s32.totalorder %s21, 0
      %p188 = por %p186, %p187
      %p189 = scmp.ne.s32.totalorder %s181, %s183
      %p190 = scmp.eq.s32.totalorder %s26, 1
      %p191 = por %p189, %p190
      %p192 = scmp.ne.s32.totalorder %s183, %s184
      %p193 = scmp.eq.s32.totalorder %s26, 0
      %p194 = por %p192, %p193
      %p195 = scmp.ne.s32.totalorder %s183, %s184
      %p196 = scmp.eq.s32.totalorder %s27, 1
      %p197 = por %p195, %p196
      %p199 = scmp.ne.s32.totalorder %s184, %s198
      %p200 = scmp.eq.s32.totalorder %s27, 0
      %p201 = por %p199, %p200
      %s203 = sadd.s32 %s202, 1
      %p206 = scmp.eq.s32.totalorder %s21, 1
      %p207 = scmp.ne.s32.totalorder %s202, %s204
      %p208 = scmp.eq.s32.totalorder %s21, 0
      %p209 = por %p207, %p208
      %p210 = scmp.ne.s32.totalorder %s202, %s204
      %p211 = scmp.eq.s32.totalorder %s26, 1
      %p212 = por %p210, %p211
      %p213 = scmp.ne.s32.totalorder %s204, %s205
      %p214 = scmp.eq.s32.totalorder %s26, 0
      %p215 = por %p213, %p214
      %p216 = scmp.ne.s32.totalorder %s204, %s205
      %p217 = scmp.eq.s32.totalorder %s27, 1
      %p218 = por %p216, %p217
      %p220 = scmp.ne.s32.totalorder %s205, %s219
      %p221 = scmp.eq.s32.totalorder %s27, 0
      %p222 = por %p220, %p221
      %s223 = ssub.s32 %s21, %s28
      %p224 = scmp.eq.s32.totalorder %s223, 0
      %s226 = sadd.s32 %s225, 1
      %s227 = scalar_select %p224, %s225, %s226
      %p230 = pneg %p224
      %p231 = scmp.eq.s32.totalorder %s21, 1
      %p232 = por %p230, %p231
      %p233 = scmp.ne.s32.totalorder %s225, %s228
      %p234 = scmp.eq.s32.totalorder %s21, 0
      %p235 = por %p233, %p234
      %p236 = scmp.ne.s32.totalorder %s225, %s228
      %p237 = scmp.eq.s32.totalorder %s26, 1
      %p238 = por %p236, %p237
      %p239 = scmp.ne.s32.totalorder %s228, %s229
      %p240 = scmp.eq.s32.totalorder %s26, 0
      %p241 = por %p239, %p240
      %p242 = scmp.ne.s32.totalorder %s228, %s229
      %p243 = scmp.eq.s32.totalorder %s27, 1
      %p244 = por %p242, %p243
      %p246 = scmp.ne.s32.totalorder %s229, %s245
      %p247 = scmp.eq.s32.totalorder %s27, 0
      %p248 = por %p246, %p247
      %p249 = scmp.le.s32.totalorder 1, %s21
      %p250 = scmp.lt.s32.totalorder %s21, 3
      %p251 = pnand %p249, %p250
      %p252 = pneg %p251
      // Predicated region
      $region9: #{tpu_custom_call.1} parent=5 // pred_check
        _
      $region10: #{tpu_custom_call.1} parent=5 // pred_check_branch
        %254 = sbr.rel (%p251) target = $region12
      $region11: #{tpu_custom_call.1} parent=5 // pred_region
        %s255 = ssub.s32 %s21, 1
        // Predicated region
        $region13: #{tpu_custom_call.1} parent=11 // pred_check
          %p256 = pneg %p68
        $region14: #{tpu_custom_call.1} parent=11 // pred_check_branch
          %258 = sbr.rel (%p256) target = $region16
        $region15: #{tpu_custom_call.1} parent=11 // pred_region
          _
        $region16: #{tpu_custom_call.1} parent=11 // pred_fallthru
          _
        // Predicated region
        $region17: #{tpu_custom_call.1} parent=11 // pred_check
          %p259 = pneg %p89
        $region18: #{tpu_custom_call.1} parent=11 // pred_check_branch
          %261 = sbr.rel (%p259) target = $region20
        $region19: #{tpu_custom_call.1} parent=11 // pred_region
          _
        $region20: #{tpu_custom_call.1} parent=11 // pred_fallthru
          _
        // Predicated region
        $region21: #{tpu_custom_call.1} parent=11 // pred_check
          %p262 = pneg %p110
        $region22: #{tpu_custom_call.1} parent=11 // pred_check_branch
          %264 = sbr.rel (%p262) target = $region24
        $region23: #{tpu_custom_call.1} parent=11 // pred_region
          _
        $region24: #{tpu_custom_call.1} parent=11 // pred_fallthru
          _
        // Predicated region
        $region25: #{tpu_custom_call.1} parent=11 // pred_check
          %p265 = pneg %p131
        $region26: #{tpu_custom_call.1} parent=11 // pred_check_branch
          %267 = sbr.rel (%p265) target = $region28
        $region27: #{tpu_custom_call.1} parent=11 // pred_region
          _
        $region28: #{tpu_custom_call.1} parent=11 // pred_fallthru
          _
        // Predicated region
        $region29: #{tpu_custom_call.1} parent=11 // pred_check
          %p268 = pneg %p152
        $region30: #{tpu_custom_call.1} parent=11 // pred_check_branch
          %270 = sbr.rel (%p268) target = $region32
        $region31: #{tpu_custom_call.1} parent=11 // pred_region
          _
        $region32: #{tpu_custom_call.1} parent=11 // pred_fallthru
          _
        // Predicated region
        $region33: #{tpu_custom_call.1} parent=11 // pred_check
          %p271 = pneg %p173
        $region34: #{tpu_custom_call.1} parent=11 // pred_check_branch
          %273 = sbr.rel (%p271) target = $region36
        $region35: #{tpu_custom_call.1} parent=11 // pred_region
          _
        $region36: #{tpu_custom_call.1} parent=11 // pred_fallthru
          _
        // Predicated region
        $region37: #{tpu_custom_call.1} parent=11 // pred_check
          %p274 = pneg %p194
        $region38: #{tpu_custom_call.1} parent=11 // pred_check_branch
          %276 = sbr.rel (%p274) target = $region40
        $region39: #{tpu_custom_call.1} parent=11 // pred_region
          _
        $region40: #{tpu_custom_call.1} parent=11 // pred_fallthru
          _
        // Predicated region
        $region41: #{tpu_custom_call.1} parent=11 // pred_check
          %p277 = pneg %p215
        $region42: #{tpu_custom_call.1} parent=11 // pred_check_branch
          %279 = sbr.rel (%p277) target = $region44
        $region43: #{tpu_custom_call.1} parent=11 // pred_region
          _
        $region44: #{tpu_custom_call.1} parent=11 // pred_fallthru
          _
      $region12: #{tpu_custom_call.1} parent=5 // pred_fallthru
        _
      %p280 = scmp.lt.s32.totalorder %s21, 2
      // Predicated region
      $region45: #{tpu_custom_call.1} parent=5 // pred_check
        %p281 = pneg %p280
      $region46: #{tpu_custom_call.1} parent=5 // pred_check_branch
        %283 = sbr.rel (%p281) target = $region48
      $region47: #{tpu_custom_call.1} parent=5 // pred_region
        // Predicated region
        $region49: #{tpu_custom_call.1} parent=47 // pred_check
          %p284 = pneg %p41
        $region50: #{tpu_custom_call.1} parent=47 // pred_check_branch
          %286 = sbr.rel (%p284) target = $region52
        $region51: #{tpu_custom_call.1} parent=47 // pred_region
          %s287 = sand.u32 %s31, 1
          %s288 = scalar_lea.sflag [#allocation3], %s287
          %s289 = sand.u32 %s31, 1
          %s290 = smul.addr %s289, 128
          %s291 = scalar_lea.vmem [#allocation2], %s290
          %s293 = ssub.s32 2048, 2048
          %294 = vsyncadd %s288, %s293
          %s295 = smul.addr %s21, 32
          %s296 = smul.addr %s295, 64
          %s297 = scalar_lea.hbm %s0, %s296
          %s298 = sshll.u32 %s291, 4
          %s299 = int_to_ptr.vmem [resolvable:$true] %s298
          %304 = dma.hbm_to_vmem [thread:$0]  %s297, 2048, %s299, %s288, 64, 64, 4
        $region52: #{tpu_custom_call.1} parent=47 // pred_fallthru
          _
      $region48: #{tpu_custom_call.1} parent=5 // pred_fallthru
        _
      %p305 = scmp.le.s32.totalorder 1, %s21
      %p306 = scmp.lt.s32.totalorder %s21, 3
      %p307 = pnand %p305, %p306
      %p308 = pneg %p307
      // Predicated region
      $region53: #{tpu_custom_call.1} parent=5 // pred_check
        _
      $region54: #{tpu_custom_call.1} parent=5 // pred_check_branch
        %310 = sbr.rel (%p307) target = $region56
      $region55: #{tpu_custom_call.1} parent=5 // pred_region
        %s311 = ssub.s32 %s21, 1
        %s312 = sand.u32 %s34, 1
        %s313 = scalar_lea.sflag [#allocation3], %s312
        %s314 = sand.u32 %s34, 1
        %s315 = smul.addr %s314, 128
        %s316 = scalar_lea.vmem [#allocation2], %s315
        // Predicated region
        $region57: #{tpu_custom_call.1} parent=55 // pred_check
          %p317 = pneg %p47
        $region58: #{tpu_custom_call.1} parent=55 // pred_check_branch
          %319 = sbr.rel (%p317) target = $region60
        $region59: #{tpu_custom_call.1} parent=55 // pred_region
          %320 = dma.done %s313, 2048
        $region60: #{tpu_custom_call.1} parent=55 // pred_fallthru
          _
        %s321 = sand.u32 %s34, 1
        %s322 = scalar_lea.sflag [#allocation3], %s321
        %s323 = sand.u32 %s34, 1
        %s324 = smul.addr %s323, 128
        %s325 = scalar_lea.vmem [#allocation2], %s324
        %p326 = pneg %p47
        %p327 = pneg %p44
        %p328 = pneg %p68
        %p329 = pneg %p65
        %p330 = pneg %p89
        %p331 = pneg %p86
        %p332 = pneg %p110
        %p333 = pneg %p107
        %p334 = pneg %p131
        %p335 = pneg %p128
        %p336 = pneg %p152
        %p337 = pneg %p149
        %p338 = pneg %p173
        %p339 = pneg %p170
        %p340 = pneg %p194
        %p341 = pneg %p191
        %p342 = pneg %p215
        %p343 = pneg %p212
        %p344 = pneg %p241
        %p345 = pneg %p238
        %s346 = sand.u32 %s228, 1
        %s347 = scalar_lea.sflag [#allocation4], %s346
        %s348 = sand.u32 %s228, 1
        %s349 = smul.addr %s348, 256
        %s350 = scalar_lea.vmem [#allocation5], %s349
        %v353 = vld [vmem:[%s316] sm:$0xf]
        %v354 = vld [vmem:[%s316 + $0x4] sm:$0xf]
        %v355 = vld [vmem:[%s316 + $0x8] sm:$0xf]
        %v356 = vld [vmem:[%s316 + $0xc] sm:$0xf]
        %v357 = vld [vmem:[%s316 + $0x10] sm:$0xf]
        %v358 = vld [vmem:[%s316 + $0x14] sm:$0xf]
        %v359 = vld [vmem:[%s316 + $0x18] sm:$0xf]
        %v360 = vld [vmem:[%s316 + $0x1c] sm:$0xf]
        %v361 = vld [vmem:[%s316 + $0x20] sm:$0xf]
        %v362 = vld [vmem:[%s316 + $0x24] sm:$0xf]
        %v363 = vld [vmem:[%s316 + $0x28] sm:$0xf]
        %v364 = vld [vmem:[%s316 + $0x2c] sm:$0xf]
        %v365 = vld [vmem:[%s316 + $0x30] sm:$0xf]
        %v366 = vld [vmem:[%s316 + $0x34] sm:$0xf]
        %v367 = vld [vmem:[%s316 + $0x38] sm:$0xf]
        %v368 = vld [vmem:[%s316 + $0x3c] sm:$0xf]
        %v369 = vld [vmem:[%s316 + $0x40] sm:$0xf]
        %v370 = vld [vmem:[%s316 + $0x44] sm:$0xf]
        %v371 = vld [vmem:[%s316 + $0x48] sm:$0xf]
        %v372 = vld [vmem:[%s316 + $0x4c] sm:$0xf]
        %v373 = vld [vmem:[%s316 + $0x50] sm:$0xf]
        %v374 = vld [vmem:[%s316 + $0x54] sm:$0xf]
        %v375 = vld [vmem:[%s316 + $0x58] sm:$0xf]
        %v376 = vld [vmem:[%s316 + $0x5c] sm:$0xf]
        %v377 = vld [vmem:[%s316 + $0x60] sm:$0xf]
        %v378 = vld [vmem:[%s316 + $0x64] sm:$0xf]
        %v379 = vld [vmem:[%s316 + $0x68] sm:$0xf]
        %v380 = vld [vmem:[%s316 + $0x6c] sm:$0xf]
        %v381 = vld [vmem:[%s316 + $0x70] sm:$0xf]
        %v382 = vld [vmem:[%s316 + $0x74] sm:$0xf]
        %v383 = vld [vmem:[%s316 + $0x78] sm:$0xf]
        %v384 = vld [vmem:[%s316 + $0x7c] sm:$0xf]
        %v385 = vld [vmem:[%s1] sm:$0xf]
        %v386 = vld [vmem:[%s1 + $0x4] sm:$0xf]
        %v387 = vld [vmem:[%s2] sm:$0x1]
        %v389 = vlaneseq
        %v390 = vshrl.u32 %v389, 7
        %v391 = vsub.s32 0, %v390
        %v392 = vrot.slane %v387, %v391
        %v426 = vunpack.c.l.b16 %v353
        %v427 = vunpack.c.l.b16 %v354
        %v428 = vunpack.c.l.b16 %v355
        %v429 = vunpack.c.l.b16 %v356
        %v430 = vunpack.c.l.b16 %v357
        %v431 = vunpack.c.l.b16 %v358
        %v432 = vunpack.c.l.b16 %v359
        %v433 = vunpack.c.l.b16 %v360
        %v434 = vunpack.c.l.b16 %v361
        %v435 = vunpack.c.l.b16 %v362
        %v436 = vunpack.c.l.b16 %v363
        %v437 = vunpack.c.l.b16 %v364
        %v438 = vunpack.c.l.b16 %v365
        %v439 = vunpack.c.l.b16 %v366
        %v440 = vunpack.c.l.b16 %v367
        %v441 = vunpack.c.l.b16 %v368
        %v442 = vunpack.c.l.b16 %v369
        %v443 = vunpack.c.l.b16 %v370
        %v444 = vunpack.c.l.b16 %v371
        %v445 = vunpack.c.l.b16 %v372
        %v446 = vunpack.c.l.b16 %v373
        %v447 = vunpack.c.l.b16 %v374
        %v448 = vunpack.c.l.b16 %v375
        %v449 = vunpack.c.l.b16 %v376
        %v450 = vunpack.c.l.b16 %v377
        %v451 = vunpack.c.l.b16 %v378
        %v452 = vunpack.c.l.b16 %v379
        %v453 = vunpack.c.l.b16 %v380
        %v454 = vunpack.c.l.b16 %v381
        %v455 = vunpack.c.l.b16 %v382
        %v456 = vunpack.c.l.b16 %v383
        %v457 = vunpack.c.l.b16 %v384
        %v458 = vpack.c.b16 %v427, %v426
        %v459 = vpack.c.b16 %v429, %v428
        %v460 = vpack.c.b16 %v431, %v430
        %v461 = vpack.c.b16 %v433, %v432
        %v462 = vpack.c.b16 %v435, %v434
        %v463 = vpack.c.b16 %v437, %v436
        %v464 = vpack.c.b16 %v439, %v438
        %v465 = vpack.c.b16 %v441, %v440
        %v466 = vpack.c.b16 %v443, %v442
        %v467 = vpack.c.b16 %v445, %v444
        %v468 = vpack.c.b16 %v447, %v446
        %v469 = vpack.c.b16 %v449, %v448
        %v470 = vpack.c.b16 %v451, %v450
        %v471 = vpack.c.b16 %v453, %v452
        %v472 = vpack.c.b16 %v455, %v454
        %v473 = vpack.c.b16 %v457, %v456
        %v476 = vunpack.c.l.b16 %v385
        %v477 = vunpack.c.l.b16 %v386
        %v478 = vpack.c.b16 %v477, %v476
        %vm480 = vcmask 130048
        %v482 = vsel %vm480, %v458, 0
        %v485 = vsel %vm480, %v459, 0
        %v488 = vsel %vm480, %v460, 0
        %v491 = vsel %vm480, %v461, 0
        %v494 = vsel %vm480, %v462, 0
        %v497 = vsel %vm480, %v463, 0
        %v500 = vsel %vm480, %v464, 0
        %v503 = vsel %vm480, %v465, 0
        %v506 = vsel %vm480, %v466, 0
        %v509 = vsel %vm480, %v467, 0
        %v512 = vsel %vm480, %v468, 0
        %v515 = vsel %vm480, %v469, 0
        %v518 = vsel %vm480, %v470, 0
        %v521 = vsel %vm480, %v471, 0
        %v524 = vsel %vm480, %v472, 0
        %v527 = vsel %vm480, %v473, 0
        %529 = vmatprep.subr.bf16.mxu0 0
        %530 = vmatpush1.bf16.msra.mxu0 0
        %531 = vmatprep.subr.bf16.mxu0 0
        %532 = vmatpush1.bf16.msra.mxu0 0
        %533 = vmatprep.subr.bf16.mxu0 0
        %534 = vmatpush1.bf16.msra.mxu0 0
        %535 = vmatprep.subr.bf16.mxu0 0
        %536 = vmatpush1.bf16.msra.mxu0 0
        %537 = vmatprep.subr.bf16.mxu0 0
        %538 = vmatpush1.bf16.msra.mxu0 0
        %539 = vmatprep.subr.bf16.mxu0 0
        %540 = vmatpush1.bf16.msra.mxu0 0
        %541 = vmatprep.subr.bf16.mxu0 0
        %542 = vmatpush1.bf16.msra.mxu0 0
        %543 = vmatprep.subr.bf16.mxu0 0
        %544 = vmatpush1.bf16.msra.mxu0 %v478
        %545 = vmatprep.subr.bf16.mxu0 0
        %546 = vmatpush2.bf16.msra.mxu0 0
        %547 = vmatprep.subr.bf16.mxu0 0
        %548 = vmatpush2.bf16.msra.mxu0 0
        %549 = vmatprep.subr.bf16.mxu0 0
        %550 = vmatpush2.bf16.msra.mxu0 0
        %551 = vmatprep.subr.bf16.mxu0 0
        %552 = vmatpush2.bf16.msra.mxu0 0
        %553 = vmatprep.subr.bf16.mxu0 0
        %554 = vmatpush2.bf16.msra.mxu0 0
        %555 = vmatprep.subr.bf16.mxu0 0
        %556 = vmatpush2.bf16.msra.mxu0 0
        %557 = vmatprep.subr.bf16.mxu0 0
        %558 = vmatpush2.bf16.msra.mxu0 0
        %559 = vmatprep.subr.bf16.mxu0 0
        %560 = vmatpush2.bf16.msra.mxu0 0
        %561 = vmatprep.mubr.bf16.mxu0 0
        %562 = vmatmul.mubr.bf16.gmra.mxu0 %v482
        %v563 = vpop.f32.mrf.mxu0
        %v564 = vadd.f32 %v392, %v563
        %v565 = vpop.f32.mrf.mxu0
        %v566 = vpop.f32.mrf.mxu0
        %v567 = vadd.f32 %v392, %v566
        %v568 = vpop.f32.mrf.mxu0
        %569 = vmatprep.mubr.bf16.mxu0 0
        %570 = vmatmul.mubr.bf16.gmra.mxu0 %v485
        %v571 = vpop.f32.mrf.mxu0
        %v572 = vadd.f32 %v392, %v571
        %v573 = vpop.f32.mrf.mxu0
        %v574 = vpop.f32.mrf.mxu0
        %v575 = vadd.f32 %v392, %v574
        %v576 = vpop.f32.mrf.mxu0
        %577 = vmatprep.mubr.bf16.mxu0 0
        %578 = vmatmul.mubr.bf16.gmra.mxu0 %v488
        %v579 = vpop.f32.mrf.mxu0
        %v580 = vadd.f32 %v392, %v579
        %v581 = vpop.f32.mrf.mxu0
        %v582 = vpop.f32.mrf.mxu0
        %v583 = vadd.f32 %v392, %v582
        %v584 = vpop.f32.mrf.mxu0
        %585 = vmatprep.mubr.bf16.mxu0 0
        %586 = vmatmul.mubr.bf16.gmra.mxu0 %v491
        %v587 = vpop.f32.mrf.mxu0
        %v588 = vadd.f32 %v392, %v587
        %v589 = vpop.f32.mrf.mxu0
        %v590 = vpop.f32.mrf.mxu0
        %v591 = vadd.f32 %v392, %v590
        %v592 = vpop.f32.mrf.mxu0
        %593 = vmatprep.mubr.bf16.mxu0 0
        %594 = vmatmul.mubr.bf16.gmra.mxu0 %v494
        %v595 = vpop.f32.mrf.mxu0
        %v596 = vadd.f32 %v392, %v595
        %v597 = vpop.f32.mrf.mxu0
        %v598 = vpop.f32.mrf.mxu0
        %v599 = vadd.f32 %v392, %v598
        %v600 = vpop.f32.mrf.mxu0
        %601 = vmatprep.mubr.bf16.mxu0 0
        %602 = vmatmul.mubr.bf16.gmra.mxu0 %v497
        %v603 = vpop.f32.mrf.mxu0
        %v604 = vadd.f32 %v392, %v603
        %v605 = vpop.f32.mrf.mxu0
        %v606 = vpop.f32.mrf.mxu0
        %v607 = vadd.f32 %v392, %v606
        %v608 = vpop.f32.mrf.mxu0
        %609 = vmatprep.mubr.bf16.mxu0 0
        %610 = vmatmul.mubr.bf16.gmra.mxu0 %v500
        %v611 = vpop.f32.mrf.mxu0
        %v612 = vadd.f32 %v392, %v611
        %v613 = vpop.f32.mrf.mxu0
        %v614 = vpop.f32.mrf.mxu0
        %v615 = vadd.f32 %v392, %v614
        %v616 = vpop.f32.mrf.mxu0
        %617 = vmatprep.mubr.bf16.mxu0 0
        %618 = vmatmul.mubr.bf16.gmra.mxu0 %v503
        %v619 = vpop.f32.mrf.mxu0
        %v620 = vadd.f32 %v392, %v619
        %v621 = vpop.f32.mrf.mxu0
        %v622 = vpop.f32.mrf.mxu0
        %v623 = vadd.f32 %v392, %v622
        %v624 = vpop.f32.mrf.mxu0
        %625 = vmatprep.mubr.bf16.mxu0 0
        %626 = vmatmul.mubr.bf16.gmra.mxu0 %v506
        %v627 = vpop.f32.mrf.mxu0
        %v628 = vadd.f32 %v392, %v627
        %v629 = vpop.f32.mrf.mxu0
        %v630 = vpop.f32.mrf.mxu0
        %v631 = vadd.f32 %v392, %v630
        %v632 = vpop.f32.mrf.mxu0
        %633 = vmatprep.mubr.bf16.mxu0 0
        %634 = vmatmul.mubr.bf16.gmra.mxu0 %v509
        %v635 = vpop.f32.mrf.mxu0
        %v636 = vadd.f32 %v392, %v635
        %v637 = vpop.f32.mrf.mxu0
        %v638 = vpop.f32.mrf.mxu0
        %v639 = vadd.f32 %v392, %v638
        %v640 = vpop.f32.mrf.mxu0
        %641 = vmatprep.mubr.bf16.mxu0 0
        %642 = vmatmul.mubr.bf16.gmra.mxu0 %v512
        %v643 = vpop.f32.mrf.mxu0
        %v644 = vadd.f32 %v392, %v643
        %v645 = vpop.f32.mrf.mxu0
        %v646 = vpop.f32.mrf.mxu0
        %v647 = vadd.f32 %v392, %v646
        %v648 = vpop.f32.mrf.mxu0
        %649 = vmatprep.mubr.bf16.mxu0 0
        %650 = vmatmul.mubr.bf16.gmra.mxu0 %v515
        %v651 = vpop.f32.mrf.mxu0
        %v652 = vadd.f32 %v392, %v651
        %v653 = vpop.f32.mrf.mxu0
        %v654 = vpop.f32.mrf.mxu0
        %v655 = vadd.f32 %v392, %v654
        %v656 = vpop.f32.mrf.mxu0
        %657 = vmatprep.mubr.bf16.mxu0 0
        %658 = vmatmul.mubr.bf16.gmra.mxu0 %v518
        %v659 = vpop.f32.mrf.mxu0
        %v660 = vadd.f32 %v392, %v659
        %v661 = vpop.f32.mrf.mxu0
        %v662 = vpop.f32.mrf.mxu0
        %v663 = vadd.f32 %v392, %v662
        %v664 = vpop.f32.mrf.mxu0
        %665 = vmatprep.mubr.bf16.mxu0 0
        %666 = vmatmul.mubr.bf16.gmra.mxu0 %v521
        %v667 = vpop.f32.mrf.mxu0
        %v668 = vadd.f32 %v392, %v667
        %v669 = vpop.f32.mrf.mxu0
        %v670 = vpop.f32.mrf.mxu0
        %v671 = vadd.f32 %v392, %v670
        %v672 = vpop.f32.mrf.mxu0
        %673 = vmatprep.mubr.bf16.mxu0 0
        %674 = vmatmul.mubr.bf16.gmra.mxu0 %v524
        %v675 = vpop.f32.mrf.mxu0
        %v676 = vadd.f32 %v392, %v675
        %v677 = vpop.f32.mrf.mxu0
        %v678 = vpop.f32.mrf.mxu0
        %v679 = vadd.f32 %v392, %v678
        %v680 = vpop.f32.mrf.mxu0
        %681 = vmatprep.mubr.bf16.mxu0 0
        %682 = vmatmul.mubr.bf16.gmra.mxu0 %v527
        %v683 = vpop.f32.mrf.mxu0
        %v684 = vadd.f32 %v392, %v683
        %v685 = vpop.f32.mrf.mxu0
        %v686 = vpop.f32.mrf.mxu0
        %v687 = vadd.f32 %v392, %v686
        %v688 = vpop.f32.mrf.mxu0
        %689 = vdwg.mxu0
        %v690 = vmax.f32 %v564, 0.0
        %v691 = vmax.f32 %v567, 0.0
        %v692 = vmax.f32 %v572, 0.0
        %v693 = vmax.f32 %v575, 0.0
        %v694 = vmax.f32 %v580, 0.0
        %v695 = vmax.f32 %v583, 0.0
        %v696 = vmax.f32 %v588, 0.0
        %v697 = vmax.f32 %v591, 0.0
        %v698 = vmax.f32 %v596, 0.0
        %v699 = vmax.f32 %v599, 0.0
        %v700 = vmax.f32 %v604, 0.0
        %v701 = vmax.f32 %v607, 0.0
        %v702 = vmax.f32 %v612, 0.0
        %v703 = vmax.f32 %v615, 0.0
        %v704 = vmax.f32 %v620, 0.0
        %v705 = vmax.f32 %v623, 0.0
        %v706 = vmax.f32 %v628, 0.0
        %v707 = vmax.f32 %v631, 0.0
        %v708 = vmax.f32 %v636, 0.0
        %v709 = vmax.f32 %v639, 0.0
        %v710 = vmax.f32 %v644, 0.0
        %v711 = vmax.f32 %v647, 0.0
        %v712 = vmax.f32 %v652, 0.0
        %v713 = vmax.f32 %v655, 0.0
        %v714 = vmax.f32 %v660, 0.0
        %v715 = vmax.f32 %v663, 0.0
        %v716 = vmax.f32 %v668, 0.0
        %v717 = vmax.f32 %v671, 0.0
        %v718 = vmax.f32 %v676, 0.0
        %v719 = vmax.f32 %v679, 0.0
        %v720 = vmax.f32 %v684, 0.0
        %v721 = vmax.f32 %v687, 0.0
        %vm754 = vcmask 1040384
        %v755 = vrot.slane %v690, 7
        %v756 = vrot.slane %v691, 7
        %v757 = vsel %vm754, %v755, %v756
        %v758 = vrot.slane %v692, 7
        %v759 = vrot.slane %v693, 7
        %v760 = vsel %vm754, %v758, %v759
        %v761 = vrot.slane %v694, 7
        %v762 = vrot.slane %v695, 7
        %v763 = vsel %vm754, %v761, %v762
        %v764 = vrot.slane %v696, 7
        %v765 = vrot.slane %v697, 7
        %v766 = vsel %vm754, %v764, %v765
        %v767 = vrot.slane %v698, 7
        %v768 = vrot.slane %v699, 7
        %v769 = vsel %vm754, %v767, %v768
        %v770 = vrot.slane %v700, 7
        %v771 = vrot.slane %v701, 7
        %v772 = vsel %vm754, %v770, %v771
        %v773 = vrot.slane %v702, 7
        %v774 = vrot.slane %v703, 7
        %v775 = vsel %vm754, %v773, %v774
        %v776 = vrot.slane %v704, 7
        %v777 = vrot.slane %v705, 7
        %v778 = vsel %vm754, %v776, %v777
        %v779 = vrot.slane %v706, 7
        %v780 = vrot.slane %v707, 7
        %v781 = vsel %vm754, %v779, %v780
        %v782 = vrot.slane %v708, 7
        %v783 = vrot.slane %v709, 7
        %v784 = vsel %vm754, %v782, %v783
        %v785 = vrot.slane %v710, 7
        %v786 = vrot.slane %v711, 7
        %v787 = vsel %vm754, %v785, %v786
        %v788 = vrot.slane %v712, 7
        %v789 = vrot.slane %v713, 7
        %v790 = vsel %vm754, %v788, %v789
        %v791 = vrot.slane %v714, 7
        %v792 = vrot.slane %v715, 7
        %v793 = vsel %vm754, %v791, %v792
        %v794 = vrot.slane %v716, 7
        %v795 = vrot.slane %v717, 7
        %v796 = vsel %vm754, %v794, %v795
        %v797 = vrot.slane %v718, 7
        %v798 = vrot.slane %v719, 7
        %v799 = vsel %vm754, %v797, %v798
        %v800 = vrot.slane %v720, 7
        %v801 = vrot.slane %v721, 7
        %v802 = vsel %vm754, %v800, %v801
        %803 = vrot.lane.b32.xlu0 %v755, 112
        %v804 = vpop.permute.xlu0 %803
        %805 = vrot.lane.b32.xlu0 %v757, 112
        %v806 = vpop.permute.xlu0 %805
        %807 = vrot.lane.b32.xlu0 %v756, 112
        %v808 = vpop.permute.xlu0 %807
        %809 = vrot.lane.b32.xlu0 %v758, 112
        %v810 = vpop.permute.xlu0 %809
        %811 = vrot.lane.b32.xlu0 %v760, 112
        %v812 = vpop.permute.xlu0 %811
        %813 = vrot.lane.b32.xlu0 %v759, 112
        %v814 = vpop.permute.xlu0 %813
        %815 = vrot.lane.b32.xlu0 %v761, 112
        %v816 = vpop.permute.xlu0 %815
        %817 = vrot.lane.b32.xlu0 %v763, 112
        %v818 = vpop.permute.xlu0 %817
        %819 = vrot.lane.b32.xlu0 %v762, 112
        %v820 = vpop.permute.xlu0 %819
        %821 = vrot.lane.b32.xlu0 %v764, 112
        %v822 = vpop.permute.xlu0 %821
        %823 = vrot.lane.b32.xlu0 %v766, 112
        %v824 = vpop.permute.xlu0 %823
        %825 = vrot.lane.b32.xlu0 %v765, 112
        %v826 = vpop.permute.xlu0 %825
        %827 = vrot.lane.b32.xlu0 %v767, 112
        %v828 = vpop.permute.xlu0 %827
        %829 = vrot.lane.b32.xlu0 %v769, 112
        %v830 = vpop.permute.xlu0 %829
        %831 = vrot.lane.b32.xlu0 %v768, 112
        %v832 = vpop.permute.xlu0 %831
        %833 = vrot.lane.b32.xlu0 %v770, 112
        %v834 = vpop.permute.xlu0 %833
        %835 = vrot.lane.b32.xlu0 %v772, 112
        %v836 = vpop.permute.xlu0 %835
        %837 = vrot.lane.b32.xlu0 %v771, 112
        %v838 = vpop.permute.xlu0 %837
        %839 = vrot.lane.b32.xlu0 %v773, 112
        %v840 = vpop.permute.xlu0 %839
        %841 = vrot.lane.b32.xlu0 %v775, 112
        %v842 = vpop.permute.xlu0 %841
        %843 = vrot.lane.b32.xlu0 %v774, 112
        %v844 = vpop.permute.xlu0 %843
        %845 = vrot.lane.b32.xlu0 %v776, 112
        %v846 = vpop.permute.xlu0 %845
        %847 = vrot.lane.b32.xlu0 %v778, 112
        %v848 = vpop.permute.xlu0 %847
        %849 = vrot.lane.b32.xlu0 %v777, 112
        %v850 = vpop.permute.xlu0 %849
        %851 = vrot.lane.b32.xlu0 %v779, 112
        %v852 = vpop.permute.xlu0 %851
        %853 = vrot.lane.b32.xlu0 %v781, 112
        %v854 = vpop.permute.xlu0 %853
        %855 = vrot.lane.b32.xlu0 %v780, 112
        %v856 = vpop.permute.xlu0 %855
        %857 = vrot.lane.b32.xlu0 %v782, 112
        %v858 = vpop.permute.xlu0 %857
        %859 = vrot.lane.b32.xlu0 %v784, 112
        %v860 = vpop.permute.xlu0 %859
        %861 = vrot.lane.b32.xlu0 %v783, 112
        %v862 = vpop.permute.xlu0 %861
        %863 = vrot.lane.b32.xlu0 %v785, 112
        %v864 = vpop.permute.xlu0 %863
        %865 = vrot.lane.b32.xlu0 %v787, 112
        %v866 = vpop.permute.xlu0 %865
        %867 = vrot.lane.b32.xlu0 %v786, 112
        %v868 = vpop.permute.xlu0 %867
        %869 = vrot.lane.b32.xlu0 %v788, 112
        %v870 = vpop.permute.xlu0 %869
        %871 = vrot.lane.b32.xlu0 %v790, 112
        %v872 = vpop.permute.xlu0 %871
        %873 = vrot.lane.b32.xlu0 %v789, 112
        %v874 = vpop.permute.xlu0 %873
        %875 = vrot.lane.b32.xlu0 %v791, 112
        %v876 = vpop.permute.xlu0 %875
        %877 = vrot.lane.b32.xlu0 %v793, 112
        %v878 = vpop.permute.xlu0 %877
        %879 = vrot.lane.b32.xlu0 %v792, 112
        %v880 = vpop.permute.xlu0 %879
        %881 = vrot.lane.b32.xlu0 %v794, 112
        %v882 = vpop.permute.xlu0 %881
        %883 = vrot.lane.b32.xlu0 %v796, 112
        %v884 = vpop.permute.xlu0 %883
        %885 = vrot.lane.b32.xlu0 %v795, 112
        %v886 = vpop.permute.xlu0 %885
        %887 = vrot.lane.b32.xlu0 %v797, 112
        %v888 = vpop.permute.xlu0 %887
        %889 = vrot.lane.b32.xlu0 %v799, 112
        %v890 = vpop.permute.xlu0 %889
        %891 = vrot.lane.b32.xlu0 %v798, 112
        %v892 = vpop.permute.xlu0 %891
        %893 = vrot.lane.b32.xlu0 %v800, 112
        %v894 = vpop.permute.xlu0 %893
        %895 = vrot.lane.b32.xlu0 %v802, 112
        %v896 = vpop.permute.xlu0 %895
        %897 = vrot.lane.b32.xlu0 %v801, 112
        %v898 = vpop.permute.xlu0 %897
        %v946 = vsel %vm754, 0.0, %v804
        %v947 = vsel %vm754, 0.0, %v810
        %v948 = vsel %vm754, 0.0, %v816
        %v949 = vsel %vm754, 0.0, %v822
        %v950 = vsel %vm754, 0.0, %v828
        %v951 = vsel %vm754, 0.0, %v834
        %v952 = vsel %vm754, 0.0, %v840
        %v953 = vsel %vm754, 0.0, %v846
        %v954 = vsel %vm754, 0.0, %v852
        %v955 = vsel %vm754, 0.0, %v858
        %v956 = vsel %vm754, 0.0, %v864
        %v957 = vsel %vm754, 0.0, %v870
        %v958 = vsel %vm754, 0.0, %v876
        %v959 = vsel %vm754, 0.0, %v882
        %v960 = vsel %vm754, 0.0, %v888
        %v961 = vsel %vm754, 0.0, %v894
        %v962 = vsel %vm754, %v808, 0.0
        %v963 = vsel %vm754, %v814, 0.0
        %v964 = vsel %vm754, %v820, 0.0
        %v965 = vsel %vm754, %v826, 0.0
        %v966 = vsel %vm754, %v832, 0.0
        %v967 = vsel %vm754, %v838, 0.0
        %v968 = vsel %vm754, %v844, 0.0
        %v969 = vsel %vm754, %v850, 0.0
        %v970 = vsel %vm754, %v856, 0.0
        %v971 = vsel %vm754, %v862, 0.0
        %v972 = vsel %vm754, %v868, 0.0
        %v973 = vsel %vm754, %v874, 0.0
        %v974 = vsel %vm754, %v880, 0.0
        %v975 = vsel %vm754, %v886, 0.0
        %v976 = vsel %vm754, %v892, 0.0
        %v977 = vsel %vm754, %v898, 0.0
        %vm1009 = vcmask 1046528
        %v1010 = vrot.slane 0.0, 1
        %v1011 = vsel %vm1009, %v1010, %v1010
        %v1012 = vrot.slane %v946, 1
        %v1013 = vrot.slane %v806, 1
        %v1014 = vsel %vm1009, %v1012, %v1013
        %v1015 = vrot.slane %v962, 1
        %v1016 = vsel %vm1009, %v1013, %v1015
        %v1017 = vrot.slane %v947, 1
        %v1018 = vrot.slane %v812, 1
        %v1019 = vsel %vm1009, %v1017, %v1018
        %v1020 = vrot.slane %v963, 1
        %v1021 = vsel %vm1009, %v1018, %v1020
        %v1022 = vrot.slane %v948, 1
        %v1023 = vrot.slane %v818, 1
        %v1024 = vsel %vm1009, %v1022, %v1023
        %v1025 = vrot.slane %v964, 1
        %v1026 = vsel %vm1009, %v1023, %v1025
        %v1027 = vrot.slane %v949, 1
        %v1028 = vrot.slane %v824, 1
        %v1029 = vsel %vm1009, %v1027, %v1028
        %v1030 = vrot.slane %v965, 1
        %v1031 = vsel %vm1009, %v1028, %v1030
        %v1032 = vrot.slane %v950, 1
        %v1033 = vrot.slane %v830, 1
        %v1034 = vsel %vm1009, %v1032, %v1033
        %v1035 = vrot.slane %v966, 1
        %v1036 = vsel %vm1009, %v1033, %v1035
        %v1037 = vrot.slane %v951, 1
        %v1038 = vrot.slane %v836, 1
        %v1039 = vsel %vm1009, %v1037, %v1038
        %v1040 = vrot.slane %v967, 1
        %v1041 = vsel %vm1009, %v1038, %v1040
        %v1042 = vrot.slane %v952, 1
        %v1043 = vrot.slane %v842, 1
        %v1044 = vsel %vm1009, %v1042, %v1043
        %v1045 = vrot.slane %v968, 1
        %v1046 = vsel %vm1009, %v1043, %v1045
        %v1047 = vrot.slane %v953, 1
        %v1048 = vrot.slane %v848, 1
        %v1049 = vsel %vm1009, %v1047, %v1048
        %v1050 = vrot.slane %v969, 1
        %v1051 = vsel %vm1009, %v1048, %v1050
        %v1052 = vrot.slane %v954, 1
        %v1053 = vrot.slane %v854, 1
        %v1054 = vsel %vm1009, %v1052, %v1053
        %v1055 = vrot.slane %v970, 1
        %v1056 = vsel %vm1009, %v1053, %v1055
        %v1057 = vrot.slane %v955, 1
        %v1058 = vrot.slane %v860, 1
        %v1059 = vsel %vm1009, %v1057, %v1058
        %v1060 = vrot.slane %v971, 1
        %v1061 = vsel %vm1009, %v1058, %v1060
        %v1062 = vrot.slane %v956, 1
        %v1063 = vrot.slane %v866, 1
        %v1064 = vsel %vm1009, %v1062, %v1063
        %v1065 = vrot.slane %v972, 1
        %v1066 = vsel %vm1009, %v1063, %v1065
        %v1067 = vrot.slane %v957, 1
        %v1068 = vrot.slane %v872, 1
        %v1069 = vsel %vm1009, %v1067, %v1068
        %v1070 = vrot.slane %v973, 1
        %v1071 = vsel %vm1009, %v1068, %v1070
        %v1072 = vrot.slane %v958, 1
        %v1073 = vrot.slane %v878, 1
        %v1074 = vsel %vm1009, %v1072, %v1073
        %v1075 = vrot.slane %v974, 1
        %v1076 = vsel %vm1009, %v1073, %v1075
        %v1077 = vrot.slane %v959, 1
        %v1078 = vrot.slane %v884, 1
        %v1079 = vsel %vm1009, %v1077, %v1078
        %v1080 = vrot.slane %v975, 1
        %v1081 = vsel %vm1009, %v1078, %v1080
        %v1082 = vrot.slane %v960, 1
        %v1083 = vrot.slane %v890, 1
        %v1084 = vsel %vm1009, %v1082, %v1083
        %v1085 = vrot.slane %v976, 1
        %v1086 = vsel %vm1009, %v1083, %v1085
        %vm1087 = vcmask 1045504
        %v1088 = vrot.slane 0.0, 2
        %v1089 = vsel %vm1087, %v1088, %v1088
        %v1090 = vrot.slane %v946, 2
        %v1091 = vrot.slane %v806, 2
        %v1092 = vsel %vm1087, %v1090, %v1091
        %v1093 = vrot.slane %v962, 2
        %v1094 = vsel %vm1087, %v1091, %v1093
        %v1095 = vrot.slane %v947, 2
        %v1096 = vrot.slane %v812, 2
        %v1097 = vsel %vm1087, %v1095, %v1096
        %v1098 = vrot.slane %v963, 2
        %v1099 = vsel %vm1087, %v1096, %v1098
        %v1100 = vrot.slane %v948, 2
        %v1101 = vrot.slane %v818, 2
        %v1102 = vsel %vm1087, %v1100, %v1101
        %v1103 = vrot.slane %v964, 2
        %v1104 = vsel %vm1087, %v1101, %v1103
        %v1105 = vrot.slane %v949, 2
        %v1106 = vrot.slane %v824, 2
        %v1107 = vsel %vm1087, %v1105, %v1106
        %v1108 = vrot.slane %v965, 2
        %v1109 = vsel %vm1087, %v1106, %v1108
        %v1110 = vrot.slane %v950, 2
        %v1111 = vrot.slane %v830, 2
        %v1112 = vsel %vm1087, %v1110, %v1111
        %v1113 = vrot.slane %v966, 2
        %v1114 = vsel %vm1087, %v1111, %v1113
        %v1115 = vrot.slane %v951, 2
        %v1116 = vrot.slane %v836, 2
        %v1117 = vsel %vm1087, %v1115, %v1116
        %v1118 = vrot.slane %v967, 2
        %v1119 = vsel %vm1087, %v1116, %v1118
        %v1120 = vrot.slane %v952, 2
        %v1121 = vrot.slane %v842, 2
        %v1122 = vsel %vm1087, %v1120, %v1121
        %v1123 = vrot.slane %v968, 2
        %v1124 = vsel %vm1087, %v1121, %v1123
        %v1125 = vrot.slane %v953, 2
        %v1126 = vrot.slane %v848, 2
        %v1127 = vsel %vm1087, %v1125, %v1126
        %v1128 = vrot.slane %v969, 2
        %v1129 = vsel %vm1087, %v1126, %v1128
        %v1130 = vrot.slane %v954, 2
        %v1131 = vrot.slane %v854, 2
        %v1132 = vsel %vm1087, %v1130, %v1131
        %v1133 = vrot.slane %v970, 2
        %v1134 = vsel %vm1087, %v1131, %v1133
        %v1135 = vrot.slane %v955, 2
        %v1136 = vrot.slane %v860, 2
        %v1137 = vsel %vm1087, %v1135, %v1136
        %v1138 = vrot.slane %v971, 2
        %v1139 = vsel %vm1087, %v1136, %v1138
        %v1140 = vrot.slane %v956, 2
        %v1141 = vrot.slane %v866, 2
        %v1142 = vsel %vm1087, %v1140, %v1141
        %v1143 = vrot.slane %v972, 2
        %v1144 = vsel %vm1087, %v1141, %v1143
        %v1145 = vrot.slane %v957, 2
        %v1146 = vrot.slane %v872, 2
        %v1147 = vsel %vm1087, %v1145, %v1146
        %v1148 = vrot.slane %v973, 2
        %v1149 = vsel %vm1087, %v1146, %v1148
        %v1150 = vrot.slane %v958, 2
        %v1151 = vrot.slane %v878, 2
        %v1152 = vsel %vm1087, %v1150, %v1151
        %v1153 = vrot.slane %v974, 2
        %v1154 = vsel %vm1087, %v1151, %v1153
        %v1155 = vrot.slane %v959, 2
        %v1156 = vrot.slane %v884, 2
        %v1157 = vsel %vm1087, %v1155, %v1156
        %v1158 = vrot.slane %v975, 2
        %v1159 = vsel %vm1087, %v1156, %v1158
        %v1160 = vrot.slane %v960, 2
        %v1161 = vrot.slane %v890, 2
        %v1162 = vsel %vm1087, %v1160, %v1161
        %v1163 = vrot.slane %v976, 2
        %v1164 = vsel %vm1087, %v1161, %v1163
        %v1167 = vrot.slane %v961, 1
        %v1168 = vrot.slane %v896, 1
        %v1169 = vsel %vm1009, %v1167, %v1168
        %v1170 = vrot.slane %v977, 1
        %v1171 = vsel %vm1009, %v1168, %v1170
        %v1172 = vrot.slane %v961, 2
        %v1173 = vrot.slane %v896, 2
        %v1174 = vsel %vm1087, %v1172, %v1173
        %v1175 = vrot.slane %v977, 2
        %v1176 = vsel %vm1087, %v1173, %v1175
        %1208 = vrot.lane.b32.xlu0 %v1011, 16
        %v1209 = vpop.permute.xlu0 %1208
        %1210 = vrot.lane.b32.xlu0 %v1014, 16
        %v1211 = vpop.permute.xlu0 %1210
        %1212 = vrot.lane.b32.xlu0 %v1016, 16
        %v1213 = vpop.permute.xlu0 %1212
        %1214 = vrot.lane.b32.xlu0 %v1019, 16
        %v1215 = vpop.permute.xlu0 %1214
        %1216 = vrot.lane.b32.xlu0 %v1021, 16
        %v1217 = vpop.permute.xlu0 %1216
        %1218 = vrot.lane.b32.xlu0 %v1024, 16
        %v1219 = vpop.permute.xlu0 %1218
        %1220 = vrot.lane.b32.xlu0 %v1026, 16
        %v1221 = vpop.permute.xlu0 %1220
        %1222 = vrot.lane.b32.xlu0 %v1029, 16
        %v1223 = vpop.permute.xlu0 %1222
        %1224 = vrot.lane.b32.xlu0 %v1031, 16
        %v1225 = vpop.permute.xlu0 %1224
        %1226 = vrot.lane.b32.xlu0 %v1034, 16
        %v1227 = vpop.permute.xlu0 %1226
        %1228 = vrot.lane.b32.xlu0 %v1036, 16
        %v1229 = vpop.permute.xlu0 %1228
        %1230 = vrot.lane.b32.xlu0 %v1039, 16
        %v1231 = vpop.permute.xlu0 %1230
        %1232 = vrot.lane.b32.xlu0 %v1041, 16
        %v1233 = vpop.permute.xlu0 %1232
        %1234 = vrot.lane.b32.xlu0 %v1044, 16
        %v1235 = vpop.permute.xlu0 %1234
        %1236 = vrot.lane.b32.xlu0 %v1046, 16
        %v1237 = vpop.permute.xlu0 %1236
        %1238 = vrot.lane.b32.xlu0 %v1049, 16
        %v1239 = vpop.permute.xlu0 %1238
        %1240 = vrot.lane.b32.xlu0 %v1051, 16
        %v1241 = vpop.permute.xlu0 %1240
        %1242 = vrot.lane.b32.xlu0 %v1054, 16
        %v1243 = vpop.permute.xlu0 %1242
        %1244 = vrot.lane.b32.xlu0 %v1056, 16
        %v1245 = vpop.permute.xlu0 %1244
        %1246 = vrot.lane.b32.xlu0 %v1059, 16
        %v1247 = vpop.permute.xlu0 %1246
        %1248 = vrot.lane.b32.xlu0 %v1061, 16
        %v1249 = vpop.permute.xlu0 %1248
        %1250 = vrot.lane.b32.xlu0 %v1064, 16
        %v1251 = vpop.permute.xlu0 %1250
        %1252 = vrot.lane.b32.xlu0 %v1066, 16
        %v1253 = vpop.permute.xlu0 %1252
        %1254 = vrot.lane.b32.xlu0 %v1069, 16
        %v1255 = vpop.permute.xlu0 %1254
        %1256 = vrot.lane.b32.xlu0 %v1071, 16
        %v1257 = vpop.permute.xlu0 %1256
        %1258 = vrot.lane.b32.xlu0 %v1074, 16
        %v1259 = vpop.permute.xlu0 %1258
        %1260 = vrot.lane.b32.xlu0 %v1076, 16
        %v1261 = vpop.permute.xlu0 %1260
        %1262 = vrot.lane.b32.xlu0 %v1079, 16
        %v1263 = vpop.permute.xlu0 %1262
        %1264 = vrot.lane.b32.xlu0 %v1081, 16
        %v1265 = vpop.permute.xlu0 %1264
        %1266 = vrot.lane.b32.xlu0 %v1084, 16
        %v1267 = vpop.permute.xlu0 %1266
        %1268 = vrot.lane.b32.xlu0 %v1086, 16
        %v1269 = vpop.permute.xlu0 %1268
        %1301 = vrot.lane.b32.xlu0 %v1089, 32
        %v1302 = vpop.permute.xlu0 %1301
        %1303 = vrot.lane.b32.xlu0 %v1092, 32
        %v1304 = vpop.permute.xlu0 %1303
        %1305 = vrot.lane.b32.xlu0 %v1094, 32
        %v1306 = vpop.permute.xlu0 %1305
        %1307 = vrot.lane.b32.xlu0 %v1097, 32
        %v1308 = vpop.permute.xlu0 %1307
        %1309 = vrot.lane.b32.xlu0 %v1099, 32
        %v1310 = vpop.permute.xlu0 %1309
        %1311 = vrot.lane.b32.xlu0 %v1102, 32
        %v1312 = vpop.permute.xlu0 %1311
        %1313 = vrot.lane.b32.xlu0 %v1104, 32
        %v1314 = vpop.permute.xlu0 %1313
        %1315 = vrot.lane.b32.xlu0 %v1107, 32
        %v1316 = vpop.permute.xlu0 %1315
        %1317 = vrot.lane.b32.xlu0 %v1109, 32
        %v1318 = vpop.permute.xlu0 %1317
        %1319 = vrot.lane.b32.xlu0 %v1112, 32
        %v1320 = vpop.permute.xlu0 %1319
        %1321 = vrot.lane.b32.xlu0 %v1114, 32
        %v1322 = vpop.permute.xlu0 %1321
        %1323 = vrot.lane.b32.xlu0 %v1117, 32
        %v1324 = vpop.permute.xlu0 %1323
        %1325 = vrot.lane.b32.xlu0 %v1119, 32
        %v1326 = vpop.permute.xlu0 %1325
        %1327 = vrot.lane.b32.xlu0 %v1122, 32
        %v1328 = vpop.permute.xlu0 %1327
        %1329 = vrot.lane.b32.xlu0 %v1124, 32
        %v1330 = vpop.permute.xlu0 %1329
        %1331 = vrot.lane.b32.xlu0 %v1127, 32
        %v1332 = vpop.permute.xlu0 %1331
        %1333 = vrot.lane.b32.xlu0 %v1129, 32
        %v1334 = vpop.permute.xlu0 %1333
        %1335 = vrot.lane.b32.xlu0 %v1132, 32
        %v1336 = vpop.permute.xlu0 %1335
        %1337 = vrot.lane.b32.xlu0 %v1134, 32
        %v1338 = vpop.permute.xlu0 %1337
        %1339 = vrot.lane.b32.xlu0 %v1137, 32
        %v1340 = vpop.permute.xlu0 %1339
        %1341 = vrot.lane.b32.xlu0 %v1139, 32
        %v1342 = vpop.permute.xlu0 %1341
        %1343 = vrot.lane.b32.xlu0 %v1142, 32
        %v1344 = vpop.permute.xlu0 %1343
        %1345 = vrot.lane.b32.xlu0 %v1144, 32
        %v1346 = vpop.permute.xlu0 %1345
        %1347 = vrot.lane.b32.xlu0 %v1147, 32
        %v1348 = vpop.permute.xlu0 %1347
        %1349 = vrot.lane.b32.xlu0 %v1149, 32
        %v1350 = vpop.permute.xlu0 %1349
        %1351 = vrot.lane.b32.xlu0 %v1152, 32
        %v1352 = vpop.permute.xlu0 %1351
        %1353 = vrot.lane.b32.xlu0 %v1154, 32
        %v1354 = vpop.permute.xlu0 %1353
        %1355 = vrot.lane.b32.xlu0 %v1157, 32
        %v1356 = vpop.permute.xlu0 %1355
        %1357 = vrot.lane.b32.xlu0 %v1159, 32
        %v1358 = vpop.permute.xlu0 %1357
        %1359 = vrot.lane.b32.xlu0 %v1162, 32
        %v1360 = vpop.permute.xlu0 %1359
        %1361 = vrot.lane.b32.xlu0 %v1164, 32
        %v1362 = vpop.permute.xlu0 %1361
        %1394 = vrot.lane.b32.xlu0 %v946, 48
        %v1395 = vpop.permute.xlu0 %1394
        %1396 = vrot.lane.b32.xlu0 %v806, 48
        %v1397 = vpop.permute.xlu0 %1396
        %1398 = vrot.lane.b32.xlu0 %v947, 48
        %v1399 = vpop.permute.xlu0 %1398
        %1400 = vrot.lane.b32.xlu0 %v812, 48
        %v1401 = vpop.permute.xlu0 %1400
        %1402 = vrot.lane.b32.xlu0 %v948, 48
        %v1403 = vpop.permute.xlu0 %1402
        %1404 = vrot.lane.b32.xlu0 %v818, 48
        %v1405 = vpop.permute.xlu0 %1404
        %1406 = vrot.lane.b32.xlu0 %v949, 48
        %v1407 = vpop.permute.xlu0 %1406
        %1408 = vrot.lane.b32.xlu0 %v824, 48
        %v1409 = vpop.permute.xlu0 %1408
        %1410 = vrot.lane.b32.xlu0 %v950, 48
        %v1411 = vpop.permute.xlu0 %1410
        %1412 = vrot.lane.b32.xlu0 %v830, 48
        %v1413 = vpop.permute.xlu0 %1412
        %1414 = vrot.lane.b32.xlu0 %v951, 48
        %v1415 = vpop.permute.xlu0 %1414
        %1416 = vrot.lane.b32.xlu0 %v836, 48
        %v1417 = vpop.permute.xlu0 %1416
        %1418 = vrot.lane.b32.xlu0 %v952, 48
        %v1419 = vpop.permute.xlu0 %1418
        %1420 = vrot.lane.b32.xlu0 %v842, 48
        %v1421 = vpop.permute.xlu0 %1420
        %1422 = vrot.lane.b32.xlu0 %v953, 48
        %v1423 = vpop.permute.xlu0 %1422
        %1424 = vrot.lane.b32.xlu0 %v848, 48
        %v1425 = vpop.permute.xlu0 %1424
        %1426 = vrot.lane.b32.xlu0 %v954, 48
        %v1427 = vpop.permute.xlu0 %1426
        %1428 = vrot.lane.b32.xlu0 %v854, 48
        %v1429 = vpop.permute.xlu0 %1428
        %1430 = vrot.lane.b32.xlu0 %v955, 48
        %v1431 = vpop.permute.xlu0 %1430
        %1432 = vrot.lane.b32.xlu0 %v860, 48
        %v1433 = vpop.permute.xlu0 %1432
        %1434 = vrot.lane.b32.xlu0 %v956, 48
        %v1435 = vpop.permute.xlu0 %1434
        %1436 = vrot.lane.b32.xlu0 %v866, 48
        %v1437 = vpop.permute.xlu0 %1436
        %1438 = vrot.lane.b32.xlu0 %v957, 48
        %v1439 = vpop.permute.xlu0 %1438
        %1440 = vrot.lane.b32.xlu0 %v872, 48
        %v1441 = vpop.permute.xlu0 %1440
        %1442 = vrot.lane.b32.xlu0 %v958, 48
        %v1443 = vpop.permute.xlu0 %1442
        %1444 = vrot.lane.b32.xlu0 %v878, 48
        %v1445 = vpop.permute.xlu0 %1444
        %1446 = vrot.lane.b32.xlu0 %v959, 48
        %v1447 = vpop.permute.xlu0 %1446
        %1448 = vrot.lane.b32.xlu0 %v884, 48
        %v1449 = vpop.permute.xlu0 %1448
        %1450 = vrot.lane.b32.xlu0 %v960, 48
        %v1451 = vpop.permute.xlu0 %1450
        %1452 = vrot.lane.b32.xlu0 %v890, 48
        %v1453 = vpop.permute.xlu0 %1452
        %1454 = vrot.lane.b32.xlu0 %v961, 48
        %v1455 = vpop.permute.xlu0 %1454
        %1456 = vrot.lane.b32.xlu0 %v896, 48
        %v1457 = vpop.permute.xlu0 %1456
        %1490 = vrot.lane.b32.xlu0 %v1014, 64
        %v1491 = vpop.permute.xlu0 %1490
        %1492 = vrot.lane.b32.xlu0 %v1016, 64
        %v1493 = vpop.permute.xlu0 %1492
        %1494 = vrot.lane.b32.xlu0 %v1019, 64
        %v1495 = vpop.permute.xlu0 %1494
        %1496 = vrot.lane.b32.xlu0 %v1021, 64
        %v1497 = vpop.permute.xlu0 %1496
        %1498 = vrot.lane.b32.xlu0 %v1024, 64
        %v1499 = vpop.permute.xlu0 %1498
        %1500 = vrot.lane.b32.xlu0 %v1026, 64
        %v1501 = vpop.permute.xlu0 %1500
        %1502 = vrot.lane.b32.xlu0 %v1029, 64
        %v1503 = vpop.permute.xlu0 %1502
        %1504 = vrot.lane.b32.xlu0 %v1031, 64
        %v1505 = vpop.permute.xlu0 %1504
        %1506 = vrot.lane.b32.xlu0 %v1034, 64
        %v1507 = vpop.permute.xlu0 %1506
        %1508 = vrot.lane.b32.xlu0 %v1036, 64
        %v1509 = vpop.permute.xlu0 %1508
        %1510 = vrot.lane.b32.xlu0 %v1039, 64
        %v1511 = vpop.permute.xlu0 %1510
        %1512 = vrot.lane.b32.xlu0 %v1041, 64
        %v1513 = vpop.permute.xlu0 %1512
        %1514 = vrot.lane.b32.xlu0 %v1044, 64
        %v1515 = vpop.permute.xlu0 %1514
        %1516 = vrot.lane.b32.xlu0 %v1046, 64
        %v1517 = vpop.permute.xlu0 %1516
        %1518 = vrot.lane.b32.xlu0 %v1049, 64
        %v1519 = vpop.permute.xlu0 %1518
        %1520 = vrot.lane.b32.xlu0 %v1051, 64
        %v1521 = vpop.permute.xlu0 %1520
        %1522 = vrot.lane.b32.xlu0 %v1054, 64
        %v1523 = vpop.permute.xlu0 %1522
        %1524 = vrot.lane.b32.xlu0 %v1056, 64
        %v1525 = vpop.permute.xlu0 %1524
        %1526 = vrot.lane.b32.xlu0 %v1059, 64
        %v1527 = vpop.permute.xlu0 %1526
        %1528 = vrot.lane.b32.xlu0 %v1061, 64
        %v1529 = vpop.permute.xlu0 %1528
        %1530 = vrot.lane.b32.xlu0 %v1064, 64
        %v1531 = vpop.permute.xlu0 %1530
        %1532 = vrot.lane.b32.xlu0 %v1066, 64
        %v1533 = vpop.permute.xlu0 %1532
        %1534 = vrot.lane.b32.xlu0 %v1069, 64
        %v1535 = vpop.permute.xlu0 %1534
        %1536 = vrot.lane.b32.xlu0 %v1071, 64
        %v1537 = vpop.permute.xlu0 %1536
        %1538 = vrot.lane.b32.xlu0 %v1074, 64
        %v1539 = vpop.permute.xlu0 %1538
        %1540 = vrot.lane.b32.xlu0 %v1076, 64
        %v1541 = vpop.permute.xlu0 %1540
        %1542 = vrot.lane.b32.xlu0 %v1079, 64
        %v1543 = vpop.permute.xlu0 %1542
        %1544 = vrot.lane.b32.xlu0 %v1081, 64
        %v1545 = vpop.permute.xlu0 %1544
        %1546 = vrot.lane.b32.xlu0 %v1084, 64
        %v1547 = vpop.permute.xlu0 %1546
        %1548 = vrot.lane.b32.xlu0 %v1086, 64
        %v1549 = vpop.permute.xlu0 %1548
        %1550 = vrot.lane.b32.xlu0 %v1169, 64
        %v1551 = vpop.permute.xlu0 %1550
        %1552 = vrot.lane.b32.xlu0 %v1171, 64
        %v1553 = vpop.permute.xlu0 %1552
        %1586 = vrot.lane.b32.xlu0 %v1092, 80
        %v1587 = vpop.permute.xlu0 %1586
        %1588 = vrot.lane.b32.xlu0 %v1094, 80
        %v1589 = vpop.permute.xlu0 %1588
        %1590 = vrot.lane.b32.xlu0 %v1097, 80
        %v1591 = vpop.permute.xlu0 %1590
        %1592 = vrot.lane.b32.xlu0 %v1099, 80
        %v1593 = vpop.permute.xlu0 %1592
        %1594 = vrot.lane.b32.xlu0 %v1102, 80
        %v1595 = vpop.permute.xlu0 %1594
        %1596 = vrot.lane.b32.xlu0 %v1104, 80
        %v1597 = vpop.permute.xlu0 %1596
        %1598 = vrot.lane.b32.xlu0 %v1107, 80
        %v1599 = vpop.permute.xlu0 %1598
        %1600 = vrot.lane.b32.xlu0 %v1109, 80
        %v1601 = vpop.permute.xlu0 %1600
        %1602 = vrot.lane.b32.xlu0 %v1112, 80
        %v1603 = vpop.permute.xlu0 %1602
        %1604 = vrot.lane.b32.xlu0 %v1114, 80
        %v1605 = vpop.permute.xlu0 %1604
        %1606 = vrot.lane.b32.xlu0 %v1117, 80
        %v1607 = vpop.permute.xlu0 %1606
        %1608 = vrot.lane.b32.xlu0 %v1119, 80
        %v1609 = vpop.permute.xlu0 %1608
        %1610 = vrot.lane.b32.xlu0 %v1122, 80
        %v1611 = vpop.permute.xlu0 %1610
        %1612 = vrot.lane.b32.xlu0 %v1124, 80
        %v1613 = vpop.permute.xlu0 %1612
        %1614 = vrot.lane.b32.xlu0 %v1127, 80
        %v1615 = vpop.permute.xlu0 %1614
        %1616 = vrot.lane.b32.xlu0 %v1129, 80
        %v1617 = vpop.permute.xlu0 %1616
        %1618 = vrot.lane.b32.xlu0 %v1132, 80
        %v1619 = vpop.permute.xlu0 %1618
        %1620 = vrot.lane.b32.xlu0 %v1134, 80
        %v1621 = vpop.permute.xlu0 %1620
        %1622 = vrot.lane.b32.xlu0 %v1137, 80
        %v1623 = vpop.permute.xlu0 %1622
        %1624 = vrot.lane.b32.xlu0 %v1139, 80
        %v1625 = vpop.permute.xlu0 %1624
        %1626 = vrot.lane.b32.xlu0 %v1142, 80
        %v1627 = vpop.permute.xlu0 %1626
        %1628 = vrot.lane.b32.xlu0 %v1144, 80
        %v1629 = vpop.permute.xlu0 %1628
        %1630 = vrot.lane.b32.xlu0 %v1147, 80
        %v1631 = vpop.permute.xlu0 %1630
        %1632 = vrot.lane.b32.xlu0 %v1149, 80
        %v1633 = vpop.permute.xlu0 %1632
        %1634 = vrot.lane.b32.xlu0 %v1152, 80
        %v1635 = vpop.permute.xlu0 %1634
        %1636 = vrot.lane.b32.xlu0 %v1154, 80
        %v1637 = vpop.permute.xlu0 %1636
        %1638 = vrot.lane.b32.xlu0 %v1157, 80
        %v1639 = vpop.permute.xlu0 %1638
        %1640 = vrot.lane.b32.xlu0 %v1159, 80
        %v1641 = vpop.permute.xlu0 %1640
        %1642 = vrot.lane.b32.xlu0 %v1162, 80
        %v1643 = vpop.permute.xlu0 %1642
        %1644 = vrot.lane.b32.xlu0 %v1164, 80
        %v1645 = vpop.permute.xlu0 %1644
        %1646 = vrot.lane.b32.xlu0 %v1174, 80
        %v1647 = vpop.permute.xlu0 %1646
        %1648 = vrot.lane.b32.xlu0 %v1176, 80
        %v1649 = vpop.permute.xlu0 %1648
        %1682 = vrot.lane.b32.xlu0 %v947, 96
        %v1683 = vpop.permute.xlu0 %1682
        %1684 = vrot.lane.b32.xlu0 %v812, 96
        %v1685 = vpop.permute.xlu0 %1684
        %1686 = vrot.lane.b32.xlu0 %v948, 96
        %v1687 = vpop.permute.xlu0 %1686
        %1688 = vrot.lane.b32.xlu0 %v818, 96
        %v1689 = vpop.permute.xlu0 %1688
        %1690 = vrot.lane.b32.xlu0 %v949, 96
        %v1691 = vpop.permute.xlu0 %1690
        %1692 = vrot.lane.b32.xlu0 %v824, 96
        %v1693 = vpop.permute.xlu0 %1692
        %1694 = vrot.lane.b32.xlu0 %v950, 96
        %v1695 = vpop.permute.xlu0 %1694
        %1696 = vrot.lane.b32.xlu0 %v830, 96
        %v1697 = vpop.permute.xlu0 %1696
        %1698 = vrot.lane.b32.xlu0 %v951, 96
        %v1699 = vpop.permute.xlu0 %1698
        %1700 = vrot.lane.b32.xlu0 %v836, 96
        %v1701 = vpop.permute.xlu0 %1700
        %1702 = vrot.lane.b32.xlu0 %v952, 96
        %v1703 = vpop.permute.xlu0 %1702
        %1704 = vrot.lane.b32.xlu0 %v842, 96
        %v1705 = vpop.permute.xlu0 %1704
        %1706 = vrot.lane.b32.xlu0 %v953, 96
        %v1707 = vpop.permute.xlu0 %1706
        %1708 = vrot.lane.b32.xlu0 %v848, 96
        %v1709 = vpop.permute.xlu0 %1708
        %1710 = vrot.lane.b32.xlu0 %v954, 96
        %v1711 = vpop.permute.xlu0 %1710
        %1712 = vrot.lane.b32.xlu0 %v854, 96
        %v1713 = vpop.permute.xlu0 %1712
        %1714 = vrot.lane.b32.xlu0 %v955, 96
        %v1715 = vpop.permute.xlu0 %1714
        %1716 = vrot.lane.b32.xlu0 %v860, 96
        %v1717 = vpop.permute.xlu0 %1716
        %1718 = vrot.lane.b32.xlu0 %v956, 96
        %v1719 = vpop.permute.xlu0 %1718
        %1720 = vrot.lane.b32.xlu0 %v866, 96
        %v1721 = vpop.permute.xlu0 %1720
        %1722 = vrot.lane.b32.xlu0 %v957, 96
        %v1723 = vpop.permute.xlu0 %1722
        %1724 = vrot.lane.b32.xlu0 %v872, 96
        %v1725 = vpop.permute.xlu0 %1724
        %1726 = vrot.lane.b32.xlu0 %v958, 96
        %v1727 = vpop.permute.xlu0 %1726
        %1728 = vrot.lane.b32.xlu0 %v878, 96
        %v1729 = vpop.permute.xlu0 %1728
        %1730 = vrot.lane.b32.xlu0 %v959, 96
        %v1731 = vpop.permute.xlu0 %1730
        %1732 = vrot.lane.b32.xlu0 %v884, 96
        %v1733 = vpop.permute.xlu0 %1732
        %1734 = vrot.lane.b32.xlu0 %v960, 96
        %v1735 = vpop.permute.xlu0 %1734
        %1736 = vrot.lane.b32.xlu0 %v890, 96
        %v1737 = vpop.permute.xlu0 %1736
        %1738 = vrot.lane.b32.xlu0 %v961, 96
        %v1739 = vpop.permute.xlu0 %1738
        %1740 = vrot.lane.b32.xlu0 %v896, 96
        %v1741 = vpop.permute.xlu0 %1740
        %1742 = vrot.lane.b32.xlu0 0.0, 96
        %v1743 = vpop.permute.xlu0 %1742
        %1775 = vrot.lane.b32.xlu0 %v1019, 112
        %v1776 = vpop.permute.xlu0 %1775
        %1777 = vrot.lane.b32.xlu0 %v1021, 112
        %v1778 = vpop.permute.xlu0 %1777
        %1779 = vrot.lane.b32.xlu0 %v1024, 112
        %v1780 = vpop.permute.xlu0 %1779
        %1781 = vrot.lane.b32.xlu0 %v1026, 112
        %v1782 = vpop.permute.xlu0 %1781
        %1783 = vrot.lane.b32.xlu0 %v1029, 112
        %v1784 = vpop.permute.xlu0 %1783
        %1785 = vrot.lane.b32.xlu0 %v1031, 112
        %v1786 = vpop.permute.xlu0 %1785
        %1787 = vrot.lane.b32.xlu0 %v1034, 112
        %v1788 = vpop.permute.xlu0 %1787
        %1789 = vrot.lane.b32.xlu0 %v1036, 112
        %v1790 = vpop.permute.xlu0 %1789
        %1791 = vrot.lane.b32.xlu0 %v1039, 112
        %v1792 = vpop.permute.xlu0 %1791
        %1793 = vrot.lane.b32.xlu0 %v1041, 112
        %v1794 = vpop.permute.xlu0 %1793
        %1795 = vrot.lane.b32.xlu0 %v1044, 112
        %v1796 = vpop.permute.xlu0 %1795
        %1797 = vrot.lane.b32.xlu0 %v1046, 112
        %v1798 = vpop.permute.xlu0 %1797
        %1799 = vrot.lane.b32.xlu0 %v1049, 112
        %v1800 = vpop.permute.xlu0 %1799
        %1801 = vrot.lane.b32.xlu0 %v1051, 112
        %v1802 = vpop.permute.xlu0 %1801
        %1803 = vrot.lane.b32.xlu0 %v1054, 112
        %v1804 = vpop.permute.xlu0 %1803
        %1805 = vrot.lane.b32.xlu0 %v1056, 112
        %v1806 = vpop.permute.xlu0 %1805
        %1807 = vrot.lane.b32.xlu0 %v1059, 112
        %v1808 = vpop.permute.xlu0 %1807
        %1809 = vrot.lane.b32.xlu0 %v1061, 112
        %v1810 = vpop.permute.xlu0 %1809
        %1811 = vrot.lane.b32.xlu0 %v1064, 112
        %v1812 = vpop.permute.xlu0 %1811
        %1813 = vrot.lane.b32.xlu0 %v1066, 112
        %v1814 = vpop.permute.xlu0 %1813
        %1815 = vrot.lane.b32.xlu0 %v1069, 112
        %v1816 = vpop.permute.xlu0 %1815
        %1817 = vrot.lane.b32.xlu0 %v1071, 112
        %v1818 = vpop.permute.xlu0 %1817
        %1819 = vrot.lane.b32.xlu0 %v1074, 112
        %v1820 = vpop.permute.xlu0 %1819
        %1821 = vrot.lane.b32.xlu0 %v1076, 112
        %v1822 = vpop.permute.xlu0 %1821
        %1823 = vrot.lane.b32.xlu0 %v1079, 112
        %v1824 = vpop.permute.xlu0 %1823
        %1825 = vrot.lane.b32.xlu0 %v1081, 112
        %v1826 = vpop.permute.xlu0 %1825
        %1827 = vrot.lane.b32.xlu0 %v1084, 112
        %v1828 = vpop.permute.xlu0 %1827
        %1829 = vrot.lane.b32.xlu0 %v1086, 112
        %v1830 = vpop.permute.xlu0 %1829
        %1831 = vrot.lane.b32.xlu0 %v1169, 112
        %v1832 = vpop.permute.xlu0 %1831
        %1833 = vrot.lane.b32.xlu0 %v1171, 112
        %v1834 = vpop.permute.xlu0 %1833
        %1835 = vrot.lane.b32.xlu0 %v1011, 112
        %v1836 = vpop.permute.xlu0 %1835
        %v1868 = vsel %vm480, 0.0, %v1209
        %v1869 = vsel %vm480, %v946, %v1211
        %v1870 = vsel %vm480, %v806, %v1213
        %v1871 = vsel %vm480, %v947, %v1215
        %v1872 = vsel %vm480, %v812, %v1217
        %v1873 = vsel %vm480, %v948, %v1219
        %v1874 = vsel %vm480, %v818, %v1221
        %v1875 = vsel %vm480, %v949, %v1223
        %v1876 = vsel %vm480, %v824, %v1225
        %v1877 = vsel %vm480, %v950, %v1227
        %v1878 = vsel %vm480, %v830, %v1229
        %v1879 = vsel %vm480, %v951, %v1231
        %v1880 = vsel %vm480, %v836, %v1233
        %v1881 = vsel %vm480, %v952, %v1235
        %v1882 = vsel %vm480, %v842, %v1237
        %v1883 = vsel %vm480, %v953, %v1239
        %v1884 = vsel %vm480, %v848, %v1241
        %v1885 = vsel %vm480, %v954, %v1243
        %v1886 = vsel %vm480, %v854, %v1245
        %v1887 = vsel %vm480, %v955, %v1247
        %v1888 = vsel %vm480, %v860, %v1249
        %v1889 = vsel %vm480, %v956, %v1251
        %v1890 = vsel %vm480, %v866, %v1253
        %v1891 = vsel %vm480, %v957, %v1255
        %v1892 = vsel %vm480, %v872, %v1257
        %v1893 = vsel %vm480, %v958, %v1259
        %v1894 = vsel %vm480, %v878, %v1261
        %v1895 = vsel %vm480, %v959, %v1263
        %v1896 = vsel %vm480, %v884, %v1265
        %v1897 = vsel %vm480, %v960, %v1267
        %v1898 = vsel %vm480, %v890, %v1269
        %vm1899 = vcmask 261120
        %v1900 = vsel %vm1899, %v1868, %v1302
        %v1901 = vsel %vm1899, %v1869, %v1304
        %v1902 = vsel %vm1899, %v1870, %v1306
        %v1903 = vsel %vm1899, %v1871, %v1308
        %v1904 = vsel %vm1899, %v1872, %v1310
        %v1905 = vsel %vm1899, %v1873, %v1312
        %v1906 = vsel %vm1899, %v1874, %v1314
        %v1907 = vsel %vm1899, %v1875, %v1316
        %v1908 = vsel %vm1899, %v1876, %v1318
        %v1909 = vsel %vm1899, %v1877, %v1320
        %v1910 = vsel %vm1899, %v1878, %v1322
        %v1911 = vsel %vm1899, %v1879, %v1324
        %v1912 = vsel %vm1899, %v1880, %v1326
        %v1913 = vsel %vm1899, %v1881, %v1328
        %v1914 = vsel %vm1899, %v1882, %v1330
        %v1915 = vsel %vm1899, %v1883, %v1332
        %v1916 = vsel %vm1899, %v1884, %v1334
        %v1917 = vsel %vm1899, %v1885, %v1336
        %v1918 = vsel %vm1899, %v1886, %v1338
        %v1919 = vsel %vm1899, %v1887, %v1340
        %v1920 = vsel %vm1899, %v1888, %v1342
        %v1921 = vsel %vm1899, %v1889, %v1344
        %v1922 = vsel %vm1899, %v1890, %v1346
        %v1923 = vsel %vm1899, %v1891, %v1348
        %v1924 = vsel %vm1899, %v1892, %v1350
        %v1925 = vsel %vm1899, %v1893, %v1352
        %v1926 = vsel %vm1899, %v1894, %v1354
        %v1927 = vsel %vm1899, %v1895, %v1356
        %v1928 = vsel %vm1899, %v1896, %v1358
        %v1929 = vsel %vm1899, %v1897, %v1360
        %v1930 = vsel %vm1899, %v1898, %v1362
        %vm1931 = vcmask 392192
        %v1932 = vsel %vm1931, %v1900, %v1395
        %v1933 = vsel %vm1931, %v1900, %v1397
        %v1934 = vsel %vm1931, %v1901, %v1399
        %v1935 = vsel %vm1931, %v1902, %v1401
        %v1936 = vsel %vm1931, %v1903, %v1403
        %v1937 = vsel %vm1931, %v1904, %v1405
        %v1938 = vsel %vm1931, %v1905, %v1407
        %v1939 = vsel %vm1931, %v1906, %v1409
        %v1940 = vsel %vm1931, %v1907, %v1411
        %v1941 = vsel %vm1931, %v1908, %v1413
        %v1942 = vsel %vm1931, %v1909, %v1415
        %v1943 = vsel %vm1931, %v1910, %v1417
        %v1944 = vsel %vm1931, %v1911, %v1419
        %v1945 = vsel %vm1931, %v1912, %v1421
        %v1946 = vsel %vm1931, %v1913, %v1423
        %v1947 = vsel %vm1931, %v1914, %v1425
        %v1948 = vsel %vm1931, %v1915, %v1427
        %v1949 = vsel %vm1931, %v1916, %v1429
        %v1950 = vsel %vm1931, %v1917, %v1431
        %v1951 = vsel %vm1931, %v1918, %v1433
        %v1952 = vsel %vm1931, %v1919, %v1435
        %v1953 = vsel %vm1931, %v1920, %v1437
        %v1954 = vsel %vm1931, %v1921, %v1439
        %v1955 = vsel %vm1931, %v1922, %v1441
        %v1956 = vsel %vm1931, %v1923, %v1443
        %v1957 = vsel %vm1931, %v1924, %v1445
        %v1958 = vsel %vm1931, %v1925, %v1447
        %v1959 = vsel %vm1931, %v1926, %v1449
        %v1960 = vsel %vm1931, %v1927, %v1451
        %v1961 = vsel %vm1931, %v1928, %v1453
        %v1962 = vsel %vm1931, %v1929, %v1455
        %v1963 = vsel %vm1931, %v1930, %v1457
        %vm1964 = vcmask 523264
        %v1965 = vsel %vm1964, %v1932, %v1491
        %v1966 = vsel %vm1964, %v1933, %v1493
        %v1967 = vsel %vm1964, %v1934, %v1495
        %v1968 = vsel %vm1964, %v1935, %v1497
        %v1969 = vsel %vm1964, %v1936, %v1499
        %v1970 = vsel %vm1964, %v1937, %v1501
        %v1971 = vsel %vm1964, %v1938, %v1503
        %v1972 = vsel %vm1964, %v1939, %v1505
        %v1973 = vsel %vm1964, %v1940, %v1507
        %v1974 = vsel %vm1964, %v1941, %v1509
        %v1975 = vsel %vm1964, %v1942, %v1511
        %v1976 = vsel %vm1964, %v1943, %v1513
        %v1977 = vsel %vm1964, %v1944, %v1515
        %v1978 = vsel %vm1964, %v1945, %v1517
        %v1979 = vsel %vm1964, %v1946, %v1519
        %v1980 = vsel %vm1964, %v1947, %v1521
        %v1981 = vsel %vm1964, %v1948, %v1523
        %v1982 = vsel %vm1964, %v1949, %v1525
        %v1983 = vsel %vm1964, %v1950, %v1527
        %v1984 = vsel %vm1964, %v1951, %v1529
        %v1985 = vsel %vm1964, %v1952, %v1531
        %v1986 = vsel %vm1964, %v1953, %v1533
        %v1987 = vsel %vm1964, %v1954, %v1535
        %v1988 = vsel %vm1964, %v1955, %v1537
        %v1989 = vsel %vm1964, %v1956, %v1539
        %v1990 = vsel %vm1964, %v1957, %v1541
        %v1991 = vsel %vm1964, %v1958, %v1543
        %v1992 = vsel %vm1964, %v1959, %v1545
        %v1993 = vsel %vm1964, %v1960, %v1547
        %v1994 = vsel %vm1964, %v1961, %v1549
        %v1995 = vsel %vm1964, %v1962, %v1551
        %v1996 = vsel %vm1964, %v1963, %v1553
        %vm1997 = vcmask 654336
        %v1998 = vsel %vm1997, %v1965, %v1587
        %v1999 = vsel %vm1997, %v1966, %v1589
        %v2000 = vsel %vm1997, %v1967, %v1591
        %v2001 = vsel %vm1997, %v1968, %v1593
        %v2002 = vsel %vm1997, %v1969, %v1595
        %v2003 = vsel %vm1997, %v1970, %v1597
        %v2004 = vsel %vm1997, %v1971, %v1599
        %v2005 = vsel %vm1997, %v1972, %v1601
        %v2006 = vsel %vm1997, %v1973, %v1603
        %v2007 = vsel %vm1997, %v1974, %v1605
        %v2008 = vsel %vm1997, %v1975, %v1607
        %v2009 = vsel %vm1997, %v1976, %v1609
        %v2010 = vsel %vm1997, %v1977, %v1611
        %v2011 = vsel %vm1997, %v1978, %v1613
        %v2012 = vsel %vm1997, %v1979, %v1615
        %v2013 = vsel %vm1997, %v1980, %v1617
        %v2014 = vsel %vm1997, %v1981, %v1619
        %v2015 = vsel %vm1997, %v1982, %v1621
        %v2016 = vsel %vm1997, %v1983, %v1623
        %v2017 = vsel %vm1997, %v1984, %v1625
        %v2018 = vsel %vm1997, %v1985, %v1627
        %v2019 = vsel %vm1997, %v1986, %v1629
        %v2020 = vsel %vm1997, %v1987, %v1631
        %v2021 = vsel %vm1997, %v1988, %v1633
        %v2022 = vsel %vm1997, %v1989, %v1635
        %v2023 = vsel %vm1997, %v1990, %v1637
        %v2024 = vsel %vm1997, %v1991, %v1639
        %v2025 = vsel %vm1997, %v1992, %v1641
        %v2026 = vsel %vm1997, %v1993, %v1643
        %v2027 = vsel %vm1997, %v1994, %v1645
        %v2028 = vsel %vm1997, %v1995, %v1647
        %v2029 = vsel %vm1997, %v1996, %v1649
        %vm2030 = vcmask 785408
        %v2031 = vsel %vm2030, %v1998, %v1683
        %v2032 = vsel %vm2030, %v1999, %v1685
        %v2033 = vsel %vm2030, %v2000, %v1687
        %v2034 = vsel %vm2030, %v2001, %v1689
        %v2035 = vsel %vm2030, %v2002, %v1691
        %v2036 = vsel %vm2030, %v2003, %v1693
        %v2037 = vsel %vm2030, %v2004, %v1695
        %v2038 = vsel %vm2030, %v2005, %v1697
        %v2039 = vsel %vm2030, %v2006, %v1699
        %v2040 = vsel %vm2030, %v2007, %v1701
        %v2041 = vsel %vm2030, %v2008, %v1703
        %v2042 = vsel %vm2030, %v2009, %v1705
        %v2043 = vsel %vm2030, %v2010, %v1707
        %v2044 = vsel %vm2030, %v2011, %v1709
        %v2045 = vsel %vm2030, %v2012, %v1711
        %v2046 = vsel %vm2030, %v2013, %v1713
        %v2047 = vsel %vm2030, %v2014, %v1715
        %v2048 = vsel %vm2030, %v2015, %v1717
        %v2049 = vsel %vm2030, %v2016, %v1719
        %v2050 = vsel %vm2030, %v2017, %v1721
        %v2051 = vsel %vm2030, %v2018, %v1723
        %v2052 = vsel %vm2030, %v2019, %v1725
        %v2053 = vsel %vm2030, %v2020, %v1727
        %v2054 = vsel %vm2030, %v2021, %v1729
        %v2055 = vsel %vm2030, %v2022, %v1731
        %v2056 = vsel %vm2030, %v2023, %v1733
        %v2057 = vsel %vm2030, %v2024, %v1735
        %v2058 = vsel %vm2030, %v2025, %v1737
        %v2059 = vsel %vm2030, %v2026, %v1739
        %v2060 = vsel %vm2030, %v2027, %v1741
        %v2061 = vsel %vm2030, %v2028, %v1743
        %v2062 = vsel %vm2030, %v2029, %v1743
        %vm2063 = vcmask 916480
        %v2064 = vsel %vm2063, %v2031, %v1776
        %v2065 = vsel %vm2063, %v2032, %v1778
        %v2066 = vsel %vm2063, %v2033, %v1780
        %v2067 = vsel %vm2063, %v2034, %v1782
        %v2068 = vsel %vm2063, %v2035, %v1784
        %v2069 = vsel %vm2063, %v2036, %v1786
        %v2070 = vsel %vm2063, %v2037, %v1788
        %v2071 = vsel %vm2063, %v2038, %v1790
        %v2072 = vsel %vm2063, %v2039, %v1792
        %v2073 = vsel %vm2063, %v2040, %v1794
        %v2074 = vsel %vm2063, %v2041, %v1796
        %v2075 = vsel %vm2063, %v2042, %v1798
        %v2076 = vsel %vm2063, %v2043, %v1800
        %v2077 = vsel %vm2063, %v2044, %v1802
        %v2078 = vsel %vm2063, %v2045, %v1804
        %v2079 = vsel %vm2063, %v2046, %v1806
        %v2080 = vsel %vm2063, %v2047, %v1808
        %v2081 = vsel %vm2063, %v2048, %v1810
        %v2082 = vsel %vm2063, %v2049, %v1812
        %v2083 = vsel %vm2063, %v2050, %v1814
        %v2084 = vsel %vm2063, %v2051, %v1816
        %v2085 = vsel %vm2063, %v2052, %v1818
        %v2086 = vsel %vm2063, %v2053, %v1820
        %v2087 = vsel %vm2063, %v2054, %v1822
        %v2088 = vsel %vm2063, %v2055, %v1824
        %v2089 = vsel %vm2063, %v2056, %v1826
        %v2090 = vsel %vm2063, %v2057, %v1828
        %v2091 = vsel %vm2063, %v2058, %v1830
        %v2092 = vsel %vm2063, %v2059, %v1832
        %v2093 = vsel %vm2063, %v2060, %v1834
        %v2094 = vsel %vm2063, %v2061, %v1836
        %v2095 = vsel %vm2063, %v2062, %v1836
        %v2096 = vpack.c.bf16 %v2065, %v2064
        %v2097 = vpack.c.bf16 %v1099, %v1097
        %v2098 = vpack.c.bf16 %v2067, %v2066
        %v2099 = vpack.c.bf16 %v1104, %v1102
        %v2100 = vpack.c.bf16 %v2069, %v2068
        %v2101 = vpack.c.bf16 %v1109, %v1107
        %v2102 = vpack.c.bf16 %v2071, %v2070
        %v2103 = vpack.c.bf16 %v1114, %v1112
        %v2104 = vpack.c.bf16 %v2073, %v2072
        %v2105 = vpack.c.bf16 %v1119, %v1117
        %v2106 = vpack.c.bf16 %v2075, %v2074
        %v2107 = vpack.c.bf16 %v1124, %v1122
        %v2108 = vpack.c.bf16 %v2077, %v2076
        %v2109 = vpack.c.bf16 %v1129, %v1127
        %v2110 = vpack.c.bf16 %v2079, %v2078
        %v2111 = vpack.c.bf16 %v1134, %v1132
        %v2112 = vpack.c.bf16 %v2081, %v2080
        %v2113 = vpack.c.bf16 %v1139, %v1137
        %v2114 = vpack.c.bf16 %v2083, %v2082
        %v2115 = vpack.c.bf16 %v1144, %v1142
        %v2116 = vpack.c.bf16 %v2085, %v2084
        %v2117 = vpack.c.bf16 %v1149, %v1147
        %v2118 = vpack.c.bf16 %v2087, %v2086
        %v2119 = vpack.c.bf16 %v1154, %v1152
        %v2120 = vpack.c.bf16 %v2089, %v2088
        %v2121 = vpack.c.bf16 %v1159, %v1157
        %v2122 = vpack.c.bf16 %v2091, %v2090
        %v2123 = vpack.c.bf16 %v1164, %v1162
        %v2124 = vpack.c.bf16 %v2093, %v2092
        %v2125 = vpack.c.bf16 %v1176, %v1174
        %v2126 = vpack.c.bf16 %v2095, %v2094
        %v2127 = vpack.c.bf16 %v1089, %v1089
        %v2128 = vld [vmem:[%s3] sm:$0xf]
        %v2129 = vld [vmem:[%s3 + $0x4] sm:$0xf]
        %v2130 = vld [vmem:[%s3 + $0x8] sm:$0xf]
        %v2131 = vld [vmem:[%s3 + $0xc] sm:$0xf]
        %v2132 = vld [vmem:[%s3 + $0x10] sm:$0xf]
        %v2133 = vld [vmem:[%s3 + $0x14] sm:$0xf]
        %v2134 = vld [vmem:[%s3 + $0x18] sm:$0xf]
        %v2135 = vld [vmem:[%s3 + $0x1c] sm:$0xf]
        %v2136 = vld [vmem:[%s3 + $0x20] sm:$0xf]
        %v2137 = vld [vmem:[%s3 + $0x24] sm:$0xf]
        %v2138 = vld [vmem:[%s3 + $0x28] sm:$0xf]
        %v2139 = vld [vmem:[%s3 + $0x2c] sm:$0xf]
        %v2140 = vld [vmem:[%s3 + $0x30] sm:$0xf]
        %v2141 = vld [vmem:[%s3 + $0x34] sm:$0xf]
        %v2142 = vld [vmem:[%s3 + $0x38] sm:$0xf]
        %v2143 = vld [vmem:[%s3 + $0x3c] sm:$0xf]
        %v2144 = vld [vmem:[%s3 + $0x40] sm:$0xf]
        %v2145 = vld [vmem:[%s3 + $0x44] sm:$0xf]
        %v2146 = vld [vmem:[%s4] sm:$0x1]
        %v2148 = vlaneseq
        %v2149 = vshrl.u32 %v2148, 7
        %v2150 = vsub.s32 0, %v2149
        %v2151 = vrot.slane %v2146, %v2150
        %v2171 = vunpack.c.l.b16 %v2128
        %v2172 = vunpack.c.l.b16 %v2129
        %v2173 = vunpack.c.l.b16 %v2130
        %v2174 = vunpack.c.l.b16 %v2131
        %v2175 = vunpack.c.l.b16 %v2132
        %v2176 = vunpack.c.l.b16 %v2133
        %v2177 = vunpack.c.l.b16 %v2134
        %v2178 = vunpack.c.l.b16 %v2135
        %v2179 = vunpack.c.l.b16 %v2136
        %v2180 = vunpack.c.l.b16 %v2137
        %v2181 = vunpack.c.l.b16 %v2138
        %v2182 = vunpack.c.l.b16 %v2139
        %v2183 = vunpack.c.l.b16 %v2140
        %v2184 = vunpack.c.l.b16 %v2141
        %v2185 = vunpack.c.l.b16 %v2142
        %v2186 = vunpack.c.l.b16 %v2143
        %v2187 = vunpack.c.l.b16 %v2144
        %v2188 = vunpack.c.l.b16 %v2145
        %v2189 = vpack.c.b16 %v2172, %v2171
        %v2190 = vpack.c.b16 %v2174, %v2173
        %v2191 = vpack.c.b16 %v2176, %v2175
        %v2192 = vpack.c.b16 %v2178, %v2177
        %v2193 = vpack.c.b16 %v2180, %v2179
        %v2194 = vpack.c.b16 %v2182, %v2181
        %v2195 = vpack.c.b16 %v2184, %v2183
        %v2196 = vpack.c.b16 %v2186, %v2185
        %v2197 = vpack.c.b16 %v2188, %v2187
        %v2208 = vsel %vm480, %v2097, 0
        %v2211 = vsel %vm480, %v2099, 0
        %v2214 = vsel %vm480, %v2101, 0
        %v2217 = vsel %vm480, %v2103, 0
        %v2220 = vsel %vm480, %v2105, 0
        %v2223 = vsel %vm480, %v2107, 0
        %v2226 = vsel %vm480, %v2109, 0
        %v2229 = vsel %vm480, %v2111, 0
        %v2232 = vsel %vm480, %v2113, 0
        %v2235 = vsel %vm480, %v2115, 0
        %v2238 = vsel %vm480, %v2117, 0
        %v2241 = vsel %vm480, %v2119, 0
        %v2244 = vsel %vm480, %v2121, 0
        %v2247 = vsel %vm480, %v2123, 0
        %v2250 = vsel %vm480, %v2125, 0
        %v2253 = vsel %vm480, %v2127, 0
        %2255 = vmatprep.subr.bf16.mxu0 0
        %2256 = vmatpush1.bf16.msra.mxu0 %v2196
        %2257 = vmatprep.subr.bf16.mxu0 0
        %2258 = vmatpush1.bf16.msra.mxu0 %v2195
        %2259 = vmatprep.subr.bf16.mxu0 0
        %2260 = vmatpush1.bf16.msra.mxu0 %v2194
        %2261 = vmatprep.subr.bf16.mxu0 0
        %2262 = vmatpush1.bf16.msra.mxu0 %v2193
        %2263 = vmatprep.subr.bf16.mxu0 0
        %2264 = vmatpush1.bf16.msra.mxu0 %v2192
        %2265 = vmatprep.subr.bf16.mxu0 0
        %2266 = vmatpush1.bf16.msra.mxu0 %v2191
        %2267 = vmatprep.subr.bf16.mxu0 0
        %2268 = vmatpush1.bf16.msra.mxu0 %v2190
        %2269 = vmatprep.subr.bf16.mxu0 0
        %2270 = vmatpush1.bf16.msra.mxu0 %v2189
        %2271 = vmatprep.subr.bf16.mxu0 0
        %2272 = vmatpush2.bf16.msra.mxu0 0
        %2273 = vmatprep.subr.bf16.mxu0 0
        %2274 = vmatpush2.bf16.msra.mxu0 0
        %2275 = vmatprep.subr.bf16.mxu0 0
        %2276 = vmatpush2.bf16.msra.mxu0 0
        %2277 = vmatprep.subr.bf16.mxu0 0
        %2278 = vmatpush2.bf16.msra.mxu0 0
        %2279 = vmatprep.subr.bf16.mxu0 0
        %2280 = vmatpush2.bf16.msra.mxu0 0
        %2281 = vmatprep.subr.bf16.mxu0 0
        %2282 = vmatpush2.bf16.msra.mxu0 0
        %2283 = vmatprep.subr.bf16.mxu0 0
        %2284 = vmatpush2.bf16.msra.mxu0 0
        %2285 = vmatprep.subr.bf16.mxu0 0
        %2286 = vmatpush2.bf16.msra.mxu0 %v2197
        %2287 = vmatprep.mubr.bf16.mxu0 %v2208
        %2288 = vmatmul.mubr.bf16.gmra.mxu0 %v2096
        %v2289 = vpop.f32.mrf.mxu0
        %v2290 = vadd.f32 %v2151, %v2289
        %v2291 = vpop.f32.mrf.mxu0
        %v2292 = vpop.f32.mrf.mxu0
        %v2293 = vadd.f32 %v2151, %v2292
        %v2294 = vpop.f32.mrf.mxu0
        %2295 = vmatprep.mubr.bf16.mxu0 %v2211
        %2296 = vmatmul.mubr.bf16.gmra.mxu0 %v2098
        %v2297 = vpop.f32.mrf.mxu0
        %v2298 = vadd.f32 %v2151, %v2297
        %v2299 = vpop.f32.mrf.mxu0
        %v2300 = vpop.f32.mrf.mxu0
        %v2301 = vadd.f32 %v2151, %v2300
        %v2302 = vpop.f32.mrf.mxu0
        %2303 = vmatprep.mubr.bf16.mxu0 %v2214
        %2304 = vmatmul.mubr.bf16.gmra.mxu0 %v2100
        %v2305 = vpop.f32.mrf.mxu0
        %v2306 = vadd.f32 %v2151, %v2305
        %v2307 = vpop.f32.mrf.mxu0
        %v2308 = vpop.f32.mrf.mxu0
        %v2309 = vadd.f32 %v2151, %v2308
        %v2310 = vpop.f32.mrf.mxu0
        %2311 = vmatprep.mubr.bf16.mxu0 %v2217
        %2312 = vmatmul.mubr.bf16.gmra.mxu0 %v2102
        %v2313 = vpop.f32.mrf.mxu0
        %v2314 = vadd.f32 %v2151, %v2313
        %v2315 = vpop.f32.mrf.mxu0
        %v2316 = vpop.f32.mrf.mxu0
        %v2317 = vadd.f32 %v2151, %v2316
        %v2318 = vpop.f32.mrf.mxu0
        %2319 = vmatprep.mubr.bf16.mxu0 %v2220
        %2320 = vmatmul.mubr.bf16.gmra.mxu0 %v2104
        %v2321 = vpop.f32.mrf.mxu0
        %v2322 = vadd.f32 %v2151, %v2321
        %v2323 = vpop.f32.mrf.mxu0
        %v2324 = vpop.f32.mrf.mxu0
        %v2325 = vadd.f32 %v2151, %v2324
        %v2326 = vpop.f32.mrf.mxu0
        %2327 = vmatprep.mubr.bf16.mxu0 %v2223
        %2328 = vmatmul.mubr.bf16.gmra.mxu0 %v2106
        %v2329 = vpop.f32.mrf.mxu0
        %v2330 = vadd.f32 %v2151, %v2329
        %v2331 = vpop.f32.mrf.mxu0
        %v2332 = vpop.f32.mrf.mxu0
        %v2333 = vadd.f32 %v2151, %v2332
        %v2334 = vpop.f32.mrf.mxu0
        %2335 = vmatprep.mubr.bf16.mxu0 %v2226
        %2336 = vmatmul.mubr.bf16.gmra.mxu0 %v2108
        %v2337 = vpop.f32.mrf.mxu0
        %v2338 = vadd.f32 %v2151, %v2337
        %v2339 = vpop.f32.mrf.mxu0
        %v2340 = vpop.f32.mrf.mxu0
        %v2341 = vadd.f32 %v2151, %v2340
        %v2342 = vpop.f32.mrf.mxu0
        %2343 = vmatprep.mubr.bf16.mxu0 %v2229
        %2344 = vmatmul.mubr.bf16.gmra.mxu0 %v2110
        %v2345 = vpop.f32.mrf.mxu0
        %v2346 = vadd.f32 %v2151, %v2345
        %v2347 = vpop.f32.mrf.mxu0
        %v2348 = vpop.f32.mrf.mxu0
        %v2349 = vadd.f32 %v2151, %v2348
        %v2350 = vpop.f32.mrf.mxu0
        %2351 = vmatprep.mubr.bf16.mxu0 %v2232
        %2352 = vmatmul.mubr.bf16.gmra.mxu0 %v2112
        %v2353 = vpop.f32.mrf.mxu0
        %v2354 = vadd.f32 %v2151, %v2353
        %v2355 = vpop.f32.mrf.mxu0
        %v2356 = vpop.f32.mrf.mxu0
        %v2357 = vadd.f32 %v2151, %v2356
        %v2358 = vpop.f32.mrf.mxu0
        %2359 = vmatprep.mubr.bf16.mxu0 %v2235
        %2360 = vmatmul.mubr.bf16.gmra.mxu0 %v2114
        %v2361 = vpop.f32.mrf.mxu0
        %v2362 = vadd.f32 %v2151, %v2361
        %v2363 = vpop.f32.mrf.mxu0
        %v2364 = vpop.f32.mrf.mxu0
        %v2365 = vadd.f32 %v2151, %v2364
        %v2366 = vpop.f32.mrf.mxu0
        %2367 = vmatprep.mubr.bf16.mxu0 %v2238
        %2368 = vmatmul.mubr.bf16.gmra.mxu0 %v2116
        %v2369 = vpop.f32.mrf.mxu0
        %v2370 = vadd.f32 %v2151, %v2369
        %v2371 = vpop.f32.mrf.mxu0
        %v2372 = vpop.f32.mrf.mxu0
        %v2373 = vadd.f32 %v2151, %v2372
        %v2374 = vpop.f32.mrf.mxu0
        %2375 = vmatprep.mubr.bf16.mxu0 %v2241
        %2376 = vmatmul.mubr.bf16.gmra.mxu0 %v2118
        %v2377 = vpop.f32.mrf.mxu0
        %v2378 = vadd.f32 %v2151, %v2377
        %v2379 = vpop.f32.mrf.mxu0
        %v2380 = vpop.f32.mrf.mxu0
        %v2381 = vadd.f32 %v2151, %v2380
        %v2382 = vpop.f32.mrf.mxu0
        %2383 = vmatprep.mubr.bf16.mxu0 %v2244
        %2384 = vmatmul.mubr.bf16.gmra.mxu0 %v2120
        %v2385 = vpop.f32.mrf.mxu0
        %v2386 = vadd.f32 %v2151, %v2385
        %v2387 = vpop.f32.mrf.mxu0
        %v2388 = vpop.f32.mrf.mxu0
        %v2389 = vadd.f32 %v2151, %v2388
        %v2390 = vpop.f32.mrf.mxu0
        %2391 = vmatprep.mubr.bf16.mxu0 %v2247
        %2392 = vmatmul.mubr.bf16.gmra.mxu0 %v2122
        %v2393 = vpop.f32.mrf.mxu0
        %v2394 = vadd.f32 %v2151, %v2393
        %v2395 = vpop.f32.mrf.mxu0
        %v2396 = vpop.f32.mrf.mxu0
        %v2397 = vadd.f32 %v2151, %v2396
        %v2398 = vpop.f32.mrf.mxu0
        %2399 = vmatprep.mubr.bf16.mxu0 %v2250
        %2400 = vmatmul.mubr.bf16.gmra.mxu0 %v2124
        %v2401 = vpop.f32.mrf.mxu0
        %v2402 = vadd.f32 %v2151, %v2401
        %v2403 = vpop.f32.mrf.mxu0
        %v2404 = vpop.f32.mrf.mxu0
        %v2405 = vadd.f32 %v2151, %v2404
        %v2406 = vpop.f32.mrf.mxu0
        %2407 = vmatprep.mubr.bf16.mxu0 %v2253
        %2408 = vmatmul.mubr.bf16.gmra.mxu0 %v2126
        %v2409 = vpop.f32.mrf.mxu0
        %v2410 = vadd.f32 %v2151, %v2409
        %v2411 = vpop.f32.mrf.mxu0
        %v2412 = vpop.f32.mrf.mxu0
        %v2413 = vadd.f32 %v2151, %v2412
        %v2414 = vpop.f32.mrf.mxu0
        %2415 = vdwg.mxu0
        %v2416 = vmax.f32 %v2290, 0.0
        %v2417 = vmax.f32 %v2293, 0.0
        %v2418 = vmax.f32 %v2298, 0.0
        %v2419 = vmax.f32 %v2301, 0.0
        %v2420 = vmax.f32 %v2306, 0.0
        %v2421 = vmax.f32 %v2309, 0.0
        %v2422 = vmax.f32 %v2314, 0.0
        %v2423 = vmax.f32 %v2317, 0.0
        %v2424 = vmax.f32 %v2322, 0.0
        %v2425 = vmax.f32 %v2325, 0.0
        %v2426 = vmax.f32 %v2330, 0.0
        %v2427 = vmax.f32 %v2333, 0.0
        %v2428 = vmax.f32 %v2338, 0.0
        %v2429 = vmax.f32 %v2341, 0.0
        %v2430 = vmax.f32 %v2346, 0.0
        %v2431 = vmax.f32 %v2349, 0.0
        %v2432 = vmax.f32 %v2354, 0.0
        %v2433 = vmax.f32 %v2357, 0.0
        %v2434 = vmax.f32 %v2362, 0.0
        %v2435 = vmax.f32 %v2365, 0.0
        %v2436 = vmax.f32 %v2370, 0.0
        %v2437 = vmax.f32 %v2373, 0.0
        %v2438 = vmax.f32 %v2378, 0.0
        %v2439 = vmax.f32 %v2381, 0.0
        %v2440 = vmax.f32 %v2386, 0.0
        %v2441 = vmax.f32 %v2389, 0.0
        %v2442 = vmax.f32 %v2394, 0.0
        %v2443 = vmax.f32 %v2397, 0.0
        %v2444 = vmax.f32 %v2402, 0.0
        %v2445 = vmax.f32 %v2405, 0.0
        %v2446 = vmax.f32 %v2410, 0.0
        %v2447 = vmax.f32 %v2413, 0.0
        %vm2448 = vcmask 1041408
        %v2449 = vrot.slane %v690, 6
        %v2450 = vrot.slane %v691, 6
        %v2451 = vsel %vm2448, %v2449, %v2450
        %v2452 = vrot.slane %v692, 6
        %v2453 = vrot.slane %v693, 6
        %v2454 = vsel %vm2448, %v2452, %v2453
        %v2455 = vrot.slane %v694, 6
        %v2456 = vrot.slane %v695, 6
        %v2457 = vsel %vm2448, %v2455, %v2456
        %v2458 = vrot.slane %v696, 6
        %v2459 = vrot.slane %v697, 6
        %v2460 = vsel %vm2448, %v2458, %v2459
        %v2461 = vrot.slane %v698, 6
        %v2462 = vrot.slane %v699, 6
        %v2463 = vsel %vm2448, %v2461, %v2462
        %v2464 = vrot.slane %v700, 6
        %v2465 = vrot.slane %v701, 6
        %v2466 = vsel %vm2448, %v2464, %v2465
        %v2467 = vrot.slane %v702, 6
        %v2468 = vrot.slane %v703, 6
        %v2469 = vsel %vm2448, %v2467, %v2468
        %v2470 = vrot.slane %v704, 6
        %v2471 = vrot.slane %v705, 6
        %v2472 = vsel %vm2448, %v2470, %v2471
        %v2473 = vrot.slane %v706, 6
        %v2474 = vrot.slane %v707, 6
        %v2475 = vsel %vm2448, %v2473, %v2474
        %v2476 = vrot.slane %v708, 6
        %v2477 = vrot.slane %v709, 6
        %v2478 = vsel %vm2448, %v2476, %v2477
        %v2479 = vrot.slane %v710, 6
        %v2480 = vrot.slane %v711, 6
        %v2481 = vsel %vm2448, %v2479, %v2480
        %v2482 = vrot.slane %v712, 6
        %v2483 = vrot.slane %v713, 6
        %v2484 = vsel %vm2448, %v2482, %v2483
        %v2485 = vrot.slane %v714, 6
        %v2486 = vrot.slane %v715, 6
        %v2487 = vsel %vm2448, %v2485, %v2486
        %v2488 = vrot.slane %v716, 6
        %v2489 = vrot.slane %v717, 6
        %v2490 = vsel %vm2448, %v2488, %v2489
        %v2491 = vrot.slane %v718, 6
        %v2492 = vrot.slane %v719, 6
        %v2493 = vsel %vm2448, %v2491, %v2492
        %v2494 = vrot.slane %v720, 6
        %v2495 = vrot.slane %v721, 6
        %v2496 = vsel %vm2448, %v2494, %v2495
        %2497 = vrot.lane.b32.xlu0 %v2449, 96
        %v2498 = vpop.permute.xlu0 %2497
        %2499 = vrot.lane.b32.xlu0 %v2451, 96
        %v2500 = vpop.permute.xlu0 %2499
        %2501 = vrot.lane.b32.xlu0 %v2450, 96
        %v2502 = vpop.permute.xlu0 %2501
        %2503 = vrot.lane.b32.xlu0 %v2452, 96
        %v2504 = vpop.permute.xlu0 %2503
        %2505 = vrot.lane.b32.xlu0 %v2454, 96
        %v2506 = vpop.permute.xlu0 %2505
        %2507 = vrot.lane.b32.xlu0 %v2453, 96
        %v2508 = vpop.permute.xlu0 %2507
        %2509 = vrot.lane.b32.xlu0 %v2455, 96
        %v2510 = vpop.permute.xlu0 %2509
        %2511 = vrot.lane.b32.xlu0 %v2457, 96
        %v2512 = vpop.permute.xlu0 %2511
        %2513 = vrot.lane.b32.xlu0 %v2456, 96
        %v2514 = vpop.permute.xlu0 %2513
        %2515 = vrot.lane.b32.xlu0 %v2458, 96
        %v2516 = vpop.permute.xlu0 %2515
        %2517 = vrot.lane.b32.xlu0 %v2460, 96
        %v2518 = vpop.permute.xlu0 %2517
        %2519 = vrot.lane.b32.xlu0 %v2459, 96
        %v2520 = vpop.permute.xlu0 %2519
        %2521 = vrot.lane.b32.xlu0 %v2461, 96
        %v2522 = vpop.permute.xlu0 %2521
        %2523 = vrot.lane.b32.xlu0 %v2463, 96
        %v2524 = vpop.permute.xlu0 %2523
        %2525 = vrot.lane.b32.xlu0 %v2462, 96
        %v2526 = vpop.permute.xlu0 %2525
        %2527 = vrot.lane.b32.xlu0 %v2464, 96
        %v2528 = vpop.permute.xlu0 %2527
        %2529 = vrot.lane.b32.xlu0 %v2466, 96
        %v2530 = vpop.permute.xlu0 %2529
        %2531 = vrot.lane.b32.xlu0 %v2465, 96
        %v2532 = vpop.permute.xlu0 %2531
        %2533 = vrot.lane.b32.xlu0 %v2467, 96
        %v2534 = vpop.permute.xlu0 %2533
        %2535 = vrot.lane.b32.xlu0 %v2469, 96
        %v2536 = vpop.permute.xlu0 %2535
        %2537 = vrot.lane.b32.xlu0 %v2468, 96
        %v2538 = vpop.permute.xlu0 %2537
        %2539 = vrot.lane.b32.xlu0 %v2470, 96
        %v2540 = vpop.permute.xlu0 %2539
        %2541 = vrot.lane.b32.xlu0 %v2472, 96
        %v2542 = vpop.permute.xlu0 %2541
        %2543 = vrot.lane.b32.xlu0 %v2471, 96
        %v2544 = vpop.permute.xlu0 %2543
        %2545 = vrot.lane.b32.xlu0 %v2473, 96
        %v2546 = vpop.permute.xlu0 %2545
        %2547 = vrot.lane.b32.xlu0 %v2475, 96
        %v2548 = vpop.permute.xlu0 %2547
        %2549 = vrot.lane.b32.xlu0 %v2474, 96
        %v2550 = vpop.permute.xlu0 %2549
        %2551 = vrot.lane.b32.xlu0 %v2476, 96
        %v2552 = vpop.permute.xlu0 %2551
        %2553 = vrot.lane.b32.xlu0 %v2478, 96
        %v2554 = vpop.permute.xlu0 %2553
        %2555 = vrot.lane.b32.xlu0 %v2477, 96
        %v2556 = vpop.permute.xlu0 %2555
        %2557 = vrot.lane.b32.xlu0 %v2479, 96
        %v2558 = vpop.permute.xlu0 %2557
        %2559 = vrot.lane.b32.xlu0 %v2481, 96
        %v2560 = vpop.permute.xlu0 %2559
        %2561 = vrot.lane.b32.xlu0 %v2480, 96
        %v2562 = vpop.permute.xlu0 %2561
        %2563 = vrot.lane.b32.xlu0 %v2482, 96
        %v2564 = vpop.permute.xlu0 %2563
        %2565 = vrot.lane.b32.xlu0 %v2484, 96
        %v2566 = vpop.permute.xlu0 %2565
        %2567 = vrot.lane.b32.xlu0 %v2483, 96
        %v2568 = vpop.permute.xlu0 %2567
        %2569 = vrot.lane.b32.xlu0 %v2485, 96
        %v2570 = vpop.permute.xlu0 %2569
        %2571 = vrot.lane.b32.xlu0 %v2487, 96
        %v2572 = vpop.permute.xlu0 %2571
        %2573 = vrot.lane.b32.xlu0 %v2486, 96
        %v2574 = vpop.permute.xlu0 %2573
        %2575 = vrot.lane.b32.xlu0 %v2488, 96
        %v2576 = vpop.permute.xlu0 %2575
        %2577 = vrot.lane.b32.xlu0 %v2490, 96
        %v2578 = vpop.permute.xlu0 %2577
        %2579 = vrot.lane.b32.xlu0 %v2489, 96
        %v2580 = vpop.permute.xlu0 %2579
        %2581 = vrot.lane.b32.xlu0 %v2491, 96
        %v2582 = vpop.permute.xlu0 %2581
        %2583 = vrot.lane.b32.xlu0 %v2493, 96
        %v2584 = vpop.permute.xlu0 %2583
        %2585 = vrot.lane.b32.xlu0 %v2492, 96
        %v2586 = vpop.permute.xlu0 %2585
        %2587 = vrot.lane.b32.xlu0 %v2494, 96
        %v2588 = vpop.permute.xlu0 %2587
        %2589 = vrot.lane.b32.xlu0 %v2496, 96
        %v2590 = vpop.permute.xlu0 %2589
        %2591 = vrot.lane.b32.xlu0 %v2495, 96
        %v2592 = vpop.permute.xlu0 %2591
        %v2639 = vsel %vm2448, 0.0, %v2498
        %v2640 = vsel %vm2448, 0.0, %v2504
        %v2641 = vsel %vm2448, 0.0, %v2510
        %v2642 = vsel %vm2448, 0.0, %v2516
        %v2643 = vsel %vm2448, 0.0, %v2522
        %v2644 = vsel %vm2448, 0.0, %v2528
        %v2645 = vsel %vm2448, 0.0, %v2534
        %v2646 = vsel %vm2448, 0.0, %v2540
        %v2647 = vsel %vm2448, 0.0, %v2546
        %v2648 = vsel %vm2448, 0.0, %v2552
        %v2649 = vsel %vm2448, 0.0, %v2558
        %v2650 = vsel %vm2448, 0.0, %v2564
        %v2651 = vsel %vm2448, 0.0, %v2570
        %v2652 = vsel %vm2448, 0.0, %v2576
        %v2653 = vsel %vm2448, 0.0, %v2582
        %v2654 = vsel %vm2448, 0.0, %v2588
        %v2655 = vsel %vm2448, %v2502, 0.0
        %v2656 = vsel %vm2448, %v2508, 0.0
        %v2657 = vsel %vm2448, %v2514, 0.0
        %v2658 = vsel %vm2448, %v2520, 0.0
        %v2659 = vsel %vm2448, %v2526, 0.0
        %v2660 = vsel %vm2448, %v2532, 0.0
        %v2661 = vsel %vm2448, %v2538, 0.0
        %v2662 = vsel %vm2448, %v2544, 0.0
        %v2663 = vsel %vm2448, %v2550, 0.0
        %v2664 = vsel %vm2448, %v2556, 0.0
        %v2665 = vsel %vm2448, %v2562, 0.0
        %v2666 = vsel %vm2448, %v2568, 0.0
        %v2667 = vsel %vm2448, %v2574, 0.0
        %v2668 = vsel %vm2448, %v2580, 0.0
        %v2669 = vsel %vm2448, %v2586, 0.0
        %v2670 = vsel %vm2448, %v2592, 0.0
        %v2699 = vrot.slane %v2639, 1
        %v2700 = vrot.slane %v2500, 1
        %v2701 = vsel %vm1009, %v2699, %v2700
        %v2702 = vrot.slane %v2655, 1
        %v2703 = vsel %vm1009, %v2700, %v2702
        %v2704 = vrot.slane %v2640, 1
        %v2705 = vrot.slane %v2506, 1
        %v2706 = vsel %vm1009, %v2704, %v2705
        %v2707 = vrot.slane %v2656, 1
        %v2708 = vsel %vm1009, %v2705, %v2707
        %v2709 = vrot.slane %v2641, 1
        %v2710 = vrot.slane %v2512, 1
        %v2711 = vsel %vm1009, %v2709, %v2710
        %v2712 = vrot.slane %v2657, 1
        %v2713 = vsel %vm1009, %v2710, %v2712
        %v2714 = vrot.slane %v2642, 1
        %v2715 = vrot.slane %v2518, 1
        %v2716 = vsel %vm1009, %v2714, %v2715
        %v2717 = vrot.slane %v2658, 1
        %v2718 = vsel %vm1009, %v2715, %v2717
        %v2719 = vrot.slane %v2643, 1
        %v2720 = vrot.slane %v2524, 1
        %v2721 = vsel %vm1009, %v2719, %v2720
        %v2722 = vrot.slane %v2659, 1
        %v2723 = vsel %vm1009, %v2720, %v2722
        %v2724 = vrot.slane %v2644, 1
        %v2725 = vrot.slane %v2530, 1
        %v2726 = vsel %vm1009, %v2724, %v2725
        %v2727 = vrot.slane %v2660, 1
        %v2728 = vsel %vm1009, %v2725, %v2727
        %v2729 = vrot.slane %v2645, 1
        %v2730 = vrot.slane %v2536, 1
        %v2731 = vsel %vm1009, %v2729, %v2730
        %v2732 = vrot.slane %v2661, 1
        %v2733 = vsel %vm1009, %v2730, %v2732
        %v2734 = vrot.slane %v2646, 1
        %v2735 = vrot.slane %v2542, 1
        %v2736 = vsel %vm1009, %v2734, %v2735
        %v2737 = vrot.slane %v2662, 1
        %v2738 = vsel %vm1009, %v2735, %v2737
        %v2739 = vrot.slane %v2647, 1
        %v2740 = vrot.slane %v2548, 1
        %v2741 = vsel %vm1009, %v2739, %v2740
        %v2742 = vrot.slane %v2663, 1
        %v2743 = vsel %vm1009, %v2740, %v2742
        %v2744 = vrot.slane %v2648, 1
        %v2745 = vrot.slane %v2554, 1
        %v2746 = vsel %vm1009, %v2744, %v2745
        %v2747 = vrot.slane %v2664, 1
        %v2748 = vsel %vm1009, %v2745, %v2747
        %v2749 = vrot.slane %v2649, 1
        %v2750 = vrot.slane %v2560, 1
        %v2751 = vsel %vm1009, %v2749, %v2750
        %v2752 = vrot.slane %v2665, 1
        %v2753 = vsel %vm1009, %v2750, %v2752
        %v2754 = vrot.slane %v2650, 1
        %v2755 = vrot.slane %v2566, 1
        %v2756 = vsel %vm1009, %v2754, %v2755
        %v2757 = vrot.slane %v2666, 1
        %v2758 = vsel %vm1009, %v2755, %v2757
        %v2759 = vrot.slane %v2651, 1
        %v2760 = vrot.slane %v2572, 1
        %v2761 = vsel %vm1009, %v2759, %v2760
        %v2762 = vrot.slane %v2667, 1
        %v2763 = vsel %vm1009, %v2760, %v2762
        %v2764 = vrot.slane %v2652, 1
        %v2765 = vrot.slane %v2578, 1
        %v2766 = vsel %vm1009, %v2764, %v2765
        %v2767 = vrot.slane %v2668, 1
        %v2768 = vsel %vm1009, %v2765, %v2767
        %v2769 = vrot.slane %v2639, 2
        %v2770 = vrot.slane %v2500, 2
        %v2771 = vsel %vm1087, %v2769, %v2770
        %v2772 = vrot.slane %v2655, 2
        %v2773 = vsel %vm1087, %v2770, %v2772
        %v2774 = vrot.slane %v2640, 2
        %v2775 = vrot.slane %v2506, 2
        %v2776 = vsel %vm1087, %v2774, %v2775
        %v2777 = vrot.slane %v2656, 2
        %v2778 = vsel %vm1087, %v2775, %v2777
        %v2779 = vrot.slane %v2641, 2
        %v2780 = vrot.slane %v2512, 2
        %v2781 = vsel %vm1087, %v2779, %v2780
        %v2782 = vrot.slane %v2657, 2
        %v2783 = vsel %vm1087, %v2780, %v2782
        %v2784 = vrot.slane %v2642, 2
        %v2785 = vrot.slane %v2518, 2
        %v2786 = vsel %vm1087, %v2784, %v2785
        %v2787 = vrot.slane %v2658, 2
        %v2788 = vsel %vm1087, %v2785, %v2787
        %v2789 = vrot.slane %v2643, 2
        %v2790 = vrot.slane %v2524, 2
        %v2791 = vsel %vm1087, %v2789, %v2790
        %v2792 = vrot.slane %v2659, 2
        %v2793 = vsel %vm1087, %v2790, %v2792
        %v2794 = vrot.slane %v2644, 2
        %v2795 = vrot.slane %v2530, 2
        %v2796 = vsel %vm1087, %v2794, %v2795
        %v2797 = vrot.slane %v2660, 2
        %v2798 = vsel %vm1087, %v2795, %v2797
        %v2799 = vrot.slane %v2645, 2
        %v2800 = vrot.slane %v2536, 2
        %v2801 = vsel %vm1087, %v2799, %v2800
        %v2802 = vrot.slane %v2661, 2
        %v2803 = vsel %vm1087, %v2800, %v2802
        %v2804 = vrot.slane %v2646, 2
        %v2805 = vrot.slane %v2542, 2
        %v2806 = vsel %vm1087, %v2804, %v2805
        %v2807 = vrot.slane %v2662, 2
        %v2808 = vsel %vm1087, %v2805, %v2807
        %v2809 = vrot.slane %v2647, 2
        %v2810 = vrot.slane %v2548, 2
        %v2811 = vsel %vm1087, %v2809, %v2810
        %v2812 = vrot.slane %v2663, 2
        %v2813 = vsel %vm1087, %v2810, %v2812
        %v2814 = vrot.slane %v2648, 2
        %v2815 = vrot.slane %v2554, 2
        %v2816 = vsel %vm1087, %v2814, %v2815
        %v2817 = vrot.slane %v2664, 2
        %v2818 = vsel %vm1087, %v2815, %v2817
        %v2819 = vrot.slane %v2649, 2
        %v2820 = vrot.slane %v2560, 2
        %v2821 = vsel %vm1087, %v2819, %v2820
        %v2822 = vrot.slane %v2665, 2
        %v2823 = vsel %vm1087, %v2820, %v2822
        %v2824 = vrot.slane %v2650, 2
        %v2825 = vrot.slane %v2566, 2
        %v2826 = vsel %vm1087, %v2824, %v2825
        %v2827 = vrot.slane %v2666, 2
        %v2828 = vsel %vm1087, %v2825, %v2827
        %v2829 = vrot.slane %v2651, 2
        %v2830 = vrot.slane %v2572, 2
        %v2831 = vsel %vm1087, %v2829, %v2830
        %v2832 = vrot.slane %v2667, 2
        %v2833 = vsel %vm1087, %v2830, %v2832
        %v2834 = vrot.slane %v2652, 2
        %v2835 = vrot.slane %v2578, 2
        %v2836 = vsel %vm1087, %v2834, %v2835
        %v2837 = vrot.slane %v2668, 2
        %v2838 = vsel %vm1087, %v2835, %v2837
        %vm2839 = vcmask 1044480
        %v2840 = vrot.slane 0.0, 3
        %v2841 = vsel %vm2839, %v2840, %v2840
        %v2842 = vrot.slane %v2639, 3
        %v2843 = vrot.slane %v2500, 3
        %v2844 = vsel %vm2839, %v2842, %v2843
        %v2845 = vrot.slane %v2655, 3
        %v2846 = vsel %vm2839, %v2843, %v2845
        %v2847 = vrot.slane %v2640, 3
        %v2848 = vrot.slane %v2506, 3
        %v2849 = vsel %vm2839, %v2847, %v2848
        %v2850 = vrot.slane %v2656, 3
        %v2851 = vsel %vm2839, %v2848, %v2850
        %v2852 = vrot.slane %v2641, 3
        %v2853 = vrot.slane %v2512, 3
        %v2854 = vsel %vm2839, %v2852, %v2853
        %v2855 = vrot.slane %v2657, 3
        %v2856 = vsel %vm2839, %v2853, %v2855
        %v2857 = vrot.slane %v2642, 3
        %v2858 = vrot.slane %v2518, 3
        %v2859 = vsel %vm2839, %v2857, %v2858
        %v2860 = vrot.slane %v2658, 3
        %v2861 = vsel %vm2839, %v2858, %v2860
        %v2862 = vrot.slane %v2643, 3
        %v2863 = vrot.slane %v2524, 3
        %v2864 = vsel %vm2839, %v2862, %v2863
        %v2865 = vrot.slane %v2659, 3
        %v2866 = vsel %vm2839, %v2863, %v2865
        %v2867 = vrot.slane %v2644, 3
        %v2868 = vrot.slane %v2530, 3
        %v2869 = vsel %vm2839, %v2867, %v2868
        %v2870 = vrot.slane %v2660, 3
        %v2871 = vsel %vm2839, %v2868, %v2870
        %v2872 = vrot.slane %v2645, 3
        %v2873 = vrot.slane %v2536, 3
        %v2874 = vsel %vm2839, %v2872, %v2873
        %v2875 = vrot.slane %v2661, 3
        %v2876 = vsel %vm2839, %v2873, %v2875
        %v2877 = vrot.slane %v2646, 3
        %v2878 = vrot.slane %v2542, 3
        %v2879 = vsel %vm2839, %v2877, %v2878
        %v2880 = vrot.slane %v2662, 3
        %v2881 = vsel %vm2839, %v2878, %v2880
        %v2882 = vrot.slane %v2647, 3
        %v2883 = vrot.slane %v2548, 3
        %v2884 = vsel %vm2839, %v2882, %v2883
        %v2885 = vrot.slane %v2663, 3
        %v2886 = vsel %vm2839, %v2883, %v2885
        %v2887 = vrot.slane %v2648, 3
        %v2888 = vrot.slane %v2554, 3
        %v2889 = vsel %vm2839, %v2887, %v2888
        %v2890 = vrot.slane %v2664, 3
        %v2891 = vsel %vm2839, %v2888, %v2890
        %v2892 = vrot.slane %v2649, 3
        %v2893 = vrot.slane %v2560, 3
        %v2894 = vsel %vm2839, %v2892, %v2893
        %v2895 = vrot.slane %v2665, 3
        %v2896 = vsel %vm2839, %v2893, %v2895
        %v2897 = vrot.slane %v2650, 3
        %v2898 = vrot.slane %v2566, 3
        %v2899 = vsel %vm2839, %v2897, %v2898
        %v2900 = vrot.slane %v2666, 3
        %v2901 = vsel %vm2839, %v2898, %v2900
        %v2902 = vrot.slane %v2651, 3
        %v2903 = vrot.slane %v2572, 3
        %v2904 = vsel %vm2839, %v2902, %v2903
        %v2905 = vrot.slane %v2667, 3
        %v2906 = vsel %vm2839, %v2903, %v2905
        %v2907 = vrot.slane %v2652, 3
        %v2908 = vrot.slane %v2578, 3
        %v2909 = vsel %vm2839, %v2907, %v2908
        %v2910 = vrot.slane %v2668, 3
        %v2911 = vsel %vm2839, %v2908, %v2910
        %vm2912 = vcmask 1043456
        %v2913 = vrot.slane 0.0, 4
        %v2914 = vsel %vm2912, %v2913, %v2913
        %v2915 = vrot.slane %v2639, 4
        %v2916 = vrot.slane %v2500, 4
        %v2917 = vsel %vm2912, %v2915, %v2916
        %v2918 = vrot.slane %v2655, 4
        %v2919 = vsel %vm2912, %v2916, %v2918
        %v2920 = vrot.slane %v2640, 4
        %v2921 = vrot.slane %v2506, 4
        %v2922 = vsel %vm2912, %v2920, %v2921
        %v2923 = vrot.slane %v2656, 4
        %v2924 = vsel %vm2912, %v2921, %v2923
        %v2925 = vrot.slane %v2641, 4
        %v2926 = vrot.slane %v2512, 4
        %v2927 = vsel %vm2912, %v2925, %v2926
        %v2928 = vrot.slane %v2657, 4
        %v2929 = vsel %vm2912, %v2926, %v2928
        %v2930 = vrot.slane %v2642, 4
        %v2931 = vrot.slane %v2518, 4
        %v2932 = vsel %vm2912, %v2930, %v2931
        %v2933 = vrot.slane %v2658, 4
        %v2934 = vsel %vm2912, %v2931, %v2933
        %v2935 = vrot.slane %v2643, 4
        %v2936 = vrot.slane %v2524, 4
        %v2937 = vsel %vm2912, %v2935, %v2936
        %v2938 = vrot.slane %v2659, 4
        %v2939 = vsel %vm2912, %v2936, %v2938
        %v2940 = vrot.slane %v2644, 4
        %v2941 = vrot.slane %v2530, 4
        %v2942 = vsel %vm2912, %v2940, %v2941
        %v2943 = vrot.slane %v2660, 4
        %v2944 = vsel %vm2912, %v2941, %v2943
        %v2945 = vrot.slane %v2645, 4
        %v2946 = vrot.slane %v2536, 4
        %v2947 = vsel %vm2912, %v2945, %v2946
        %v2948 = vrot.slane %v2661, 4
        %v2949 = vsel %vm2912, %v2946, %v2948
        %v2950 = vrot.slane %v2646, 4
        %v2951 = vrot.slane %v2542, 4
        %v2952 = vsel %vm2912, %v2950, %v2951
        %v2953 = vrot.slane %v2662, 4
        %v2954 = vsel %vm2912, %v2951, %v2953
        %v2955 = vrot.slane %v2647, 4
        %v2956 = vrot.slane %v2548, 4
        %v2957 = vsel %vm2912, %v2955, %v2956
        %v2958 = vrot.slane %v2663, 4
        %v2959 = vsel %vm2912, %v2956, %v2958
        %v2960 = vrot.slane %v2648, 4
        %v2961 = vrot.slane %v2554, 4
        %v2962 = vsel %vm2912, %v2960, %v2961
        %v2963 = vrot.slane %v2664, 4
        %v2964 = vsel %vm2912, %v2961, %v2963
        %v2965 = vrot.slane %v2649, 4
        %v2966 = vrot.slane %v2560, 4
        %v2967 = vsel %vm2912, %v2965, %v2966
        %v2968 = vrot.slane %v2665, 4
        %v2969 = vsel %vm2912, %v2966, %v2968
        %v2970 = vrot.slane %v2650, 4
        %v2971 = vrot.slane %v2566, 4
        %v2972 = vsel %vm2912, %v2970, %v2971
        %v2973 = vrot.slane %v2666, 4
        %v2974 = vsel %vm2912, %v2971, %v2973
        %v2975 = vrot.slane %v2651, 4
        %v2976 = vrot.slane %v2572, 4
        %v2977 = vsel %vm2912, %v2975, %v2976
        %v2978 = vrot.slane %v2667, 4
        %v2979 = vsel %vm2912, %v2976, %v2978
        %v2980 = vrot.slane %v2652, 4
        %v2981 = vrot.slane %v2578, 4
        %v2982 = vsel %vm2912, %v2980, %v2981
        %v2983 = vrot.slane %v2668, 4
        %v2984 = vsel %vm2912, %v2981, %v2983
        %v2987 = vrot.slane %v2653, 1
        %v2988 = vrot.slane %v2584, 1
        %v2989 = vsel %vm1009, %v2987, %v2988
        %v2990 = vrot.slane %v2669, 1
        %v2991 = vsel %vm1009, %v2988, %v2990
        %v2992 = vrot.slane %v2653, 2
        %v2993 = vrot.slane %v2584, 2
        %v2994 = vsel %vm1087, %v2992, %v2993
        %v2995 = vrot.slane %v2669, 2
        %v2996 = vsel %vm1087, %v2993, %v2995
        %v2997 = vrot.slane %v2653, 3
        %v2998 = vrot.slane %v2584, 3
        %v2999 = vsel %vm2839, %v2997, %v2998
        %v3000 = vrot.slane %v2669, 3
        %v3001 = vsel %vm2839, %v2998, %v3000
        %v3002 = vrot.slane %v2653, 4
        %v3003 = vrot.slane %v2584, 4
        %v3004 = vsel %vm2912, %v3002, %v3003
        %v3005 = vrot.slane %v2669, 4
        %v3006 = vsel %vm2912, %v3003, %v3005
        %v3009 = vrot.slane %v2654, 1
        %v3010 = vrot.slane %v2590, 1
        %v3011 = vsel %vm1009, %v3009, %v3010
        %v3012 = vrot.slane %v2670, 1
        %v3013 = vsel %vm1009, %v3010, %v3012
        %v3014 = vrot.slane %v2654, 2
        %v3015 = vrot.slane %v2590, 2
        %v3016 = vsel %vm1087, %v3014, %v3015
        %v3017 = vrot.slane %v2670, 2
        %v3018 = vsel %vm1087, %v3015, %v3017
        %v3019 = vrot.slane %v2654, 3
        %v3020 = vrot.slane %v2590, 3
        %v3021 = vsel %vm2839, %v3019, %v3020
        %v3022 = vrot.slane %v2670, 3
        %v3023 = vsel %vm2839, %v3020, %v3022
        %v3024 = vrot.slane %v2654, 4
        %v3025 = vrot.slane %v2590, 4
        %v3026 = vsel %vm2912, %v3024, %v3025
        %v3027 = vrot.slane %v2670, 4
        %v3028 = vsel %vm2912, %v3025, %v3027
        %3060 = vrot.lane.b32.xlu0 %v1011, 8
        %v3061 = vpop.permute.xlu0 %3060
        %3062 = vrot.lane.b32.xlu0 %v2701, 8
        %v3063 = vpop.permute.xlu0 %3062
        %3064 = vrot.lane.b32.xlu0 %v2703, 8
        %v3065 = vpop.permute.xlu0 %3064
        %3066 = vrot.lane.b32.xlu0 %v2706, 8
        %v3067 = vpop.permute.xlu0 %3066
        %3068 = vrot.lane.b32.xlu0 %v2708, 8
        %v3069 = vpop.permute.xlu0 %3068
        %3070 = vrot.lane.b32.xlu0 %v2711, 8
        %v3071 = vpop.permute.xlu0 %3070
        %3072 = vrot.lane.b32.xlu0 %v2713, 8
        %v3073 = vpop.permute.xlu0 %3072
        %3074 = vrot.lane.b32.xlu0 %v2716, 8
        %v3075 = vpop.permute.xlu0 %3074
        %3076 = vrot.lane.b32.xlu0 %v2718, 8
        %v3077 = vpop.permute.xlu0 %3076
        %3078 = vrot.lane.b32.xlu0 %v2721, 8
        %v3079 = vpop.permute.xlu0 %3078
        %3080 = vrot.lane.b32.xlu0 %v2723, 8
        %v3081 = vpop.permute.xlu0 %3080
        %3082 = vrot.lane.b32.xlu0 %v2726, 8
        %v3083 = vpop.permute.xlu0 %3082
        %3084 = vrot.lane.b32.xlu0 %v2728, 8
        %v3085 = vpop.permute.xlu0 %3084
        %3086 = vrot.lane.b32.xlu0 %v2731, 8
        %v3087 = vpop.permute.xlu0 %3086
        %3088 = vrot.lane.b32.xlu0 %v2733, 8
        %v3089 = vpop.permute.xlu0 %3088
        %3090 = vrot.lane.b32.xlu0 %v2736, 8
        %v3091 = vpop.permute.xlu0 %3090
        %3092 = vrot.lane.b32.xlu0 %v2738, 8
        %v3093 = vpop.permute.xlu0 %3092
        %3094 = vrot.lane.b32.xlu0 %v2741, 8
        %v3095 = vpop.permute.xlu0 %3094
        %3096 = vrot.lane.b32.xlu0 %v2743, 8
        %v3097 = vpop.permute.xlu0 %3096
        %3098 = vrot.lane.b32.xlu0 %v2746, 8
        %v3099 = vpop.permute.xlu0 %3098
        %3100 = vrot.lane.b32.xlu0 %v2748, 8
        %v3101 = vpop.permute.xlu0 %3100
        %3102 = vrot.lane.b32.xlu0 %v2751, 8
        %v3103 = vpop.permute.xlu0 %3102
        %3104 = vrot.lane.b32.xlu0 %v2753, 8
        %v3105 = vpop.permute.xlu0 %3104
        %3106 = vrot.lane.b32.xlu0 %v2756, 8
        %v3107 = vpop.permute.xlu0 %3106
        %3108 = vrot.lane.b32.xlu0 %v2758, 8
        %v3109 = vpop.permute.xlu0 %3108
        %3110 = vrot.lane.b32.xlu0 %v2761, 8
        %v3111 = vpop.permute.xlu0 %3110
        %3112 = vrot.lane.b32.xlu0 %v2763, 8
        %v3113 = vpop.permute.xlu0 %3112
        %3114 = vrot.lane.b32.xlu0 %v2766, 8
        %v3115 = vpop.permute.xlu0 %3114
        %3116 = vrot.lane.b32.xlu0 %v2768, 8
        %v3117 = vpop.permute.xlu0 %3116
        %3147 = vrot.lane.b32.xlu0 %v1089, 16
        %v3148 = vpop.permute.xlu0 %3147
        %3149 = vrot.lane.b32.xlu0 %v2771, 16
        %v3150 = vpop.permute.xlu0 %3149
        %3151 = vrot.lane.b32.xlu0 %v2773, 16
        %v3152 = vpop.permute.xlu0 %3151
        %3153 = vrot.lane.b32.xlu0 %v2776, 16
        %v3154 = vpop.permute.xlu0 %3153
        %3155 = vrot.lane.b32.xlu0 %v2778, 16
        %v3156 = vpop.permute.xlu0 %3155
        %3157 = vrot.lane.b32.xlu0 %v2781, 16
        %v3158 = vpop.permute.xlu0 %3157
        %3159 = vrot.lane.b32.xlu0 %v2783, 16
        %v3160 = vpop.permute.xlu0 %3159
        %3161 = vrot.lane.b32.xlu0 %v2786, 16
        %v3162 = vpop.permute.xlu0 %3161
        %3163 = vrot.lane.b32.xlu0 %v2788, 16
        %v3164 = vpop.permute.xlu0 %3163
        %3165 = vrot.lane.b32.xlu0 %v2791, 16
        %v3166 = vpop.permute.xlu0 %3165
        %3167 = vrot.lane.b32.xlu0 %v2793, 16
        %v3168 = vpop.permute.xlu0 %3167
        %3169 = vrot.lane.b32.xlu0 %v2796, 16
        %v3170 = vpop.permute.xlu0 %3169
        %3171 = vrot.lane.b32.xlu0 %v2798, 16
        %v3172 = vpop.permute.xlu0 %3171
        %3173 = vrot.lane.b32.xlu0 %v2801, 16
        %v3174 = vpop.permute.xlu0 %3173
        %3175 = vrot.lane.b32.xlu0 %v2803, 16
        %v3176 = vpop.permute.xlu0 %3175
        %3177 = vrot.lane.b32.xlu0 %v2806, 16
        %v3178 = vpop.permute.xlu0 %3177
        %3179 = vrot.lane.b32.xlu0 %v2808, 16
        %v3180 = vpop.permute.xlu0 %3179
        %3181 = vrot.lane.b32.xlu0 %v2811, 16
        %v3182 = vpop.permute.xlu0 %3181
        %3183 = vrot.lane.b32.xlu0 %v2813, 16
        %v3184 = vpop.permute.xlu0 %3183
        %3185 = vrot.lane.b32.xlu0 %v2816, 16
        %v3186 = vpop.permute.xlu0 %3185
        %3187 = vrot.lane.b32.xlu0 %v2818, 16
        %v3188 = vpop.permute.xlu0 %3187
        %3189 = vrot.lane.b32.xlu0 %v2821, 16
        %v3190 = vpop.permute.xlu0 %3189
        %3191 = vrot.lane.b32.xlu0 %v2823, 16
        %v3192 = vpop.permute.xlu0 %3191
        %3193 = vrot.lane.b32.xlu0 %v2826, 16
        %v3194 = vpop.permute.xlu0 %3193
        %3195 = vrot.lane.b32.xlu0 %v2828, 16
        %v3196 = vpop.permute.xlu0 %3195
        %3197 = vrot.lane.b32.xlu0 %v2831, 16
        %v3198 = vpop.permute.xlu0 %3197
        %3199 = vrot.lane.b32.xlu0 %v2833, 16
        %v3200 = vpop.permute.xlu0 %3199
        %3201 = vrot.lane.b32.xlu0 %v2836, 16
        %v3202 = vpop.permute.xlu0 %3201
        %3203 = vrot.lane.b32.xlu0 %v2838, 16
        %v3204 = vpop.permute.xlu0 %3203
        %3234 = vrot.lane.b32.xlu0 %v2841, 24
        %v3235 = vpop.permute.xlu0 %3234
        %3236 = vrot.lane.b32.xlu0 %v2844, 24
        %v3237 = vpop.permute.xlu0 %3236
        %3238 = vrot.lane.b32.xlu0 %v2846, 24
        %v3239 = vpop.permute.xlu0 %3238
        %3240 = vrot.lane.b32.xlu0 %v2849, 24
        %v3241 = vpop.permute.xlu0 %3240
        %3242 = vrot.lane.b32.xlu0 %v2851, 24
        %v3243 = vpop.permute.xlu0 %3242
        %3244 = vrot.lane.b32.xlu0 %v2854, 24
        %v3245 = vpop.permute.xlu0 %3244
        %3246 = vrot.lane.b32.xlu0 %v2856, 24
        %v3247 = vpop.permute.xlu0 %3246
        %3248 = vrot.lane.b32.xlu0 %v2859, 24
        %v3249 = vpop.permute.xlu0 %3248
        %3250 = vrot.lane.b32.xlu0 %v2861, 24
        %v3251 = vpop.permute.xlu0 %3250
        %3252 = vrot.lane.b32.xlu0 %v2864, 24
        %v3253 = vpop.permute.xlu0 %3252
        %3254 = vrot.lane.b32.xlu0 %v2866, 24
        %v3255 = vpop.permute.xlu0 %3254
        %3256 = vrot.lane.b32.xlu0 %v2869, 24
        %v3257 = vpop.permute.xlu0 %3256
        %3258 = vrot.lane.b32.xlu0 %v2871, 24
        %v3259 = vpop.permute.xlu0 %3258
        %3260 = vrot.lane.b32.xlu0 %v2874, 24
        %v3261 = vpop.permute.xlu0 %3260
        %3262 = vrot.lane.b32.xlu0 %v2876, 24
        %v3263 = vpop.permute.xlu0 %3262
        %3264 = vrot.lane.b32.xlu0 %v2879, 24
        %v3265 = vpop.permute.xlu0 %3264
        %3266 = vrot.lane.b32.xlu0 %v2881, 24
        %v3267 = vpop.permute.xlu0 %3266
        %3268 = vrot.lane.b32.xlu0 %v2884, 24
        %v3269 = vpop.permute.xlu0 %3268
        %3270 = vrot.lane.b32.xlu0 %v2886, 24
        %v3271 = vpop.permute.xlu0 %3270
        %3272 = vrot.lane.b32.xlu0 %v2889, 24
        %v3273 = vpop.permute.xlu0 %3272
        %3274 = vrot.lane.b32.xlu0 %v2891, 24
        %v3275 = vpop.permute.xlu0 %3274
        %3276 = vrot.lane.b32.xlu0 %v2894, 24
        %v3277 = vpop.permute.xlu0 %3276
        %3278 = vrot.lane.b32.xlu0 %v2896, 24
        %v3279 = vpop.permute.xlu0 %3278
        %3280 = vrot.lane.b32.xlu0 %v2899, 24
        %v3281 = vpop.permute.xlu0 %3280
        %3282 = vrot.lane.b32.xlu0 %v2901, 24
        %v3283 = vpop.permute.xlu0 %3282
        %3284 = vrot.lane.b32.xlu0 %v2904, 24
        %v3285 = vpop.permute.xlu0 %3284
        %3286 = vrot.lane.b32.xlu0 %v2906, 24
        %v3287 = vpop.permute.xlu0 %3286
        %3288 = vrot.lane.b32.xlu0 %v2909, 24
        %v3289 = vpop.permute.xlu0 %3288
        %3290 = vrot.lane.b32.xlu0 %v2911, 24
        %v3291 = vpop.permute.xlu0 %3290
        %3321 = vrot.lane.b32.xlu0 %v2914, 32
        %v3322 = vpop.permute.xlu0 %3321
        %3323 = vrot.lane.b32.xlu0 %v2917, 32
        %v3324 = vpop.permute.xlu0 %3323
        %3325 = vrot.lane.b32.xlu0 %v2919, 32
        %v3326 = vpop.permute.xlu0 %3325
        %3327 = vrot.lane.b32.xlu0 %v2922, 32
        %v3328 = vpop.permute.xlu0 %3327
        %3329 = vrot.lane.b32.xlu0 %v2924, 32
        %v3330 = vpop.permute.xlu0 %3329
        %3331 = vrot.lane.b32.xlu0 %v2927, 32
        %v3332 = vpop.permute.xlu0 %3331
        %3333 = vrot.lane.b32.xlu0 %v2929, 32
        %v3334 = vpop.permute.xlu0 %3333
        %3335 = vrot.lane.b32.xlu0 %v2932, 32
        %v3336 = vpop.permute.xlu0 %3335
        %3337 = vrot.lane.b32.xlu0 %v2934, 32
        %v3338 = vpop.permute.xlu0 %3337
        %3339 = vrot.lane.b32.xlu0 %v2937, 32
        %v3340 = vpop.permute.xlu0 %3339
        %3341 = vrot.lane.b32.xlu0 %v2939, 32
        %v3342 = vpop.permute.xlu0 %3341
        %3343 = vrot.lane.b32.xlu0 %v2942, 32
        %v3344 = vpop.permute.xlu0 %3343
        %3345 = vrot.lane.b32.xlu0 %v2944, 32
        %v3346 = vpop.permute.xlu0 %3345
        %3347 = vrot.lane.b32.xlu0 %v2947, 32
        %v3348 = vpop.permute.xlu0 %3347
        %3349 = vrot.lane.b32.xlu0 %v2949, 32
        %v3350 = vpop.permute.xlu0 %3349
        %3351 = vrot.lane.b32.xlu0 %v2952, 32
        %v3352 = vpop.permute.xlu0 %3351
        %3353 = vrot.lane.b32.xlu0 %v2954, 32
        %v3354 = vpop.permute.xlu0 %3353
        %3355 = vrot.lane.b32.xlu0 %v2957, 32
        %v3356 = vpop.permute.xlu0 %3355
        %3357 = vrot.lane.b32.xlu0 %v2959, 32
        %v3358 = vpop.permute.xlu0 %3357
        %3359 = vrot.lane.b32.xlu0 %v2962, 32
        %v3360 = vpop.permute.xlu0 %3359
        %3361 = vrot.lane.b32.xlu0 %v2964, 32
        %v3362 = vpop.permute.xlu0 %3361
        %3363 = vrot.lane.b32.xlu0 %v2967, 32
        %v3364 = vpop.permute.xlu0 %3363
        %3365 = vrot.lane.b32.xlu0 %v2969, 32
        %v3366 = vpop.permute.xlu0 %3365
        %3367 = vrot.lane.b32.xlu0 %v2972, 32
        %v3368 = vpop.permute.xlu0 %3367
        %3369 = vrot.lane.b32.xlu0 %v2974, 32
        %v3370 = vpop.permute.xlu0 %3369
        %3371 = vrot.lane.b32.xlu0 %v2977, 32
        %v3372 = vpop.permute.xlu0 %3371
        %3373 = vrot.lane.b32.xlu0 %v2979, 32
        %v3374 = vpop.permute.xlu0 %3373
        %3375 = vrot.lane.b32.xlu0 %v2982, 32
        %v3376 = vpop.permute.xlu0 %3375
        %3377 = vrot.lane.b32.xlu0 %v2984, 32
        %v3378 = vpop.permute.xlu0 %3377
        %3408 = vrot.lane.b32.xlu0 0.0, 40
        %v3409 = vpop.permute.xlu0 %3408
        %3410 = vrot.lane.b32.xlu0 %v2639, 40
        %v3411 = vpop.permute.xlu0 %3410
        %3412 = vrot.lane.b32.xlu0 %v2500, 40
        %v3413 = vpop.permute.xlu0 %3412
        %3414 = vrot.lane.b32.xlu0 %v2640, 40
        %v3415 = vpop.permute.xlu0 %3414
        %3416 = vrot.lane.b32.xlu0 %v2506, 40
        %v3417 = vpop.permute.xlu0 %3416
        %3418 = vrot.lane.b32.xlu0 %v2641, 40
        %v3419 = vpop.permute.xlu0 %3418
        %3420 = vrot.lane.b32.xlu0 %v2512, 40
        %v3421 = vpop.permute.xlu0 %3420
        %3422 = vrot.lane.b32.xlu0 %v2642, 40
        %v3423 = vpop.permute.xlu0 %3422
        %3424 = vrot.lane.b32.xlu0 %v2518, 40
        %v3425 = vpop.permute.xlu0 %3424
        %3426 = vrot.lane.b32.xlu0 %v2643, 40
        %v3427 = vpop.permute.xlu0 %3426
        %3428 = vrot.lane.b32.xlu0 %v2524, 40
        %v3429 = vpop.permute.xlu0 %3428
        %3430 = vrot.lane.b32.xlu0 %v2644, 40
        %v3431 = vpop.permute.xlu0 %3430
        %3432 = vrot.lane.b32.xlu0 %v2530, 40
        %v3433 = vpop.permute.xlu0 %3432
        %3434 = vrot.lane.b32.xlu0 %v2645, 40
        %v3435 = vpop.permute.xlu0 %3434
        %3436 = vrot.lane.b32.xlu0 %v2536, 40
        %v3437 = vpop.permute.xlu0 %3436
        %3438 = vrot.lane.b32.xlu0 %v2646, 40
        %v3439 = vpop.permute.xlu0 %3438
        %3440 = vrot.lane.b32.xlu0 %v2542, 40
        %v3441 = vpop.permute.xlu0 %3440
        %3442 = vrot.lane.b32.xlu0 %v2647, 40
        %v3443 = vpop.permute.xlu0 %3442
        %3444 = vrot.lane.b32.xlu0 %v2548, 40
        %v3445 = vpop.permute.xlu0 %3444
        %3446 = vrot.lane.b32.xlu0 %v2648, 40
        %v3447 = vpop.permute.xlu0 %3446
        %3448 = vrot.lane.b32.xlu0 %v2554, 40
        %v3449 = vpop.permute.xlu0 %3448
        %3450 = vrot.lane.b32.xlu0 %v2649, 40
        %v3451 = vpop.permute.xlu0 %3450
        %3452 = vrot.lane.b32.xlu0 %v2560, 40
        %v3453 = vpop.permute.xlu0 %3452
        %3454 = vrot.lane.b32.xlu0 %v2650, 40
        %v3455 = vpop.permute.xlu0 %3454
        %3456 = vrot.lane.b32.xlu0 %v2566, 40
        %v3457 = vpop.permute.xlu0 %3456
        %3458 = vrot.lane.b32.xlu0 %v2651, 40
        %v3459 = vpop.permute.xlu0 %3458
        %3460 = vrot.lane.b32.xlu0 %v2572, 40
        %v3461 = vpop.permute.xlu0 %3460
        %3462 = vrot.lane.b32.xlu0 %v2652, 40
        %v3463 = vpop.permute.xlu0 %3462
        %3464 = vrot.lane.b32.xlu0 %v2578, 40
        %v3465 = vpop.permute.xlu0 %3464
        %3466 = vrot.lane.b32.xlu0 %v2653, 40
        %v3467 = vpop.permute.xlu0 %3466
        %3468 = vrot.lane.b32.xlu0 %v2584, 40
        %v3469 = vpop.permute.xlu0 %3468
        %3501 = vrot.lane.b32.xlu0 %v1011, 48
        %v3502 = vpop.permute.xlu0 %3501
        %3503 = vrot.lane.b32.xlu0 %v2701, 48
        %v3504 = vpop.permute.xlu0 %3503
        %3505 = vrot.lane.b32.xlu0 %v2703, 48
        %v3506 = vpop.permute.xlu0 %3505
        %3507 = vrot.lane.b32.xlu0 %v2706, 48
        %v3508 = vpop.permute.xlu0 %3507
        %3509 = vrot.lane.b32.xlu0 %v2708, 48
        %v3510 = vpop.permute.xlu0 %3509
        %3511 = vrot.lane.b32.xlu0 %v2711, 48
        %v3512 = vpop.permute.xlu0 %3511
        %3513 = vrot.lane.b32.xlu0 %v2713, 48
        %v3514 = vpop.permute.xlu0 %3513
        %3515 = vrot.lane.b32.xlu0 %v2716, 48
        %v3516 = vpop.permute.xlu0 %3515
        %3517 = vrot.lane.b32.xlu0 %v2718, 48
        %v3518 = vpop.permute.xlu0 %3517
        %3519 = vrot.lane.b32.xlu0 %v2721, 48
        %v3520 = vpop.permute.xlu0 %3519
        %3521 = vrot.lane.b32.xlu0 %v2723, 48
        %v3522 = vpop.permute.xlu0 %3521
        %3523 = vrot.lane.b32.xlu0 %v2726, 48
        %v3524 = vpop.permute.xlu0 %3523
        %3525 = vrot.lane.b32.xlu0 %v2728, 48
        %v3526 = vpop.permute.xlu0 %3525
        %3527 = vrot.lane.b32.xlu0 %v2731, 48
        %v3528 = vpop.permute.xlu0 %3527
        %3529 = vrot.lane.b32.xlu0 %v2733, 48
        %v3530 = vpop.permute.xlu0 %3529
        %3531 = vrot.lane.b32.xlu0 %v2736, 48
        %v3532 = vpop.permute.xlu0 %3531
        %3533 = vrot.lane.b32.xlu0 %v2738, 48
        %v3534 = vpop.permute.xlu0 %3533
        %3535 = vrot.lane.b32.xlu0 %v2741, 48
        %v3536 = vpop.permute.xlu0 %3535
        %3537 = vrot.lane.b32.xlu0 %v2743, 48
        %v3538 = vpop.permute.xlu0 %3537
        %3539 = vrot.lane.b32.xlu0 %v2746, 48
        %v3540 = vpop.permute.xlu0 %3539
        %3541 = vrot.lane.b32.xlu0 %v2748, 48
        %v3542 = vpop.permute.xlu0 %3541
        %3543 = vrot.lane.b32.xlu0 %v2751, 48
        %v3544 = vpop.permute.xlu0 %3543
        %3545 = vrot.lane.b32.xlu0 %v2753, 48
        %v3546 = vpop.permute.xlu0 %3545
        %3547 = vrot.lane.b32.xlu0 %v2756, 48
        %v3548 = vpop.permute.xlu0 %3547
        %3549 = vrot.lane.b32.xlu0 %v2758, 48
        %v3550 = vpop.permute.xlu0 %3549
        %3551 = vrot.lane.b32.xlu0 %v2761, 48
        %v3552 = vpop.permute.xlu0 %3551
        %3553 = vrot.lane.b32.xlu0 %v2763, 48
        %v3554 = vpop.permute.xlu0 %3553
        %3555 = vrot.lane.b32.xlu0 %v2766, 48
        %v3556 = vpop.permute.xlu0 %3555
        %3557 = vrot.lane.b32.xlu0 %v2768, 48
        %v3558 = vpop.permute.xlu0 %3557
        %3559 = vrot.lane.b32.xlu0 %v2989, 48
        %v3560 = vpop.permute.xlu0 %3559
        %3561 = vrot.lane.b32.xlu0 %v2991, 48
        %v3562 = vpop.permute.xlu0 %3561
        %3594 = vrot.lane.b32.xlu0 %v1089, 56
        %v3595 = vpop.permute.xlu0 %3594
        %3596 = vrot.lane.b32.xlu0 %v2771, 56
        %v3597 = vpop.permute.xlu0 %3596
        %3598 = vrot.lane.b32.xlu0 %v2773, 56
        %v3599 = vpop.permute.xlu0 %3598
        %3600 = vrot.lane.b32.xlu0 %v2776, 56
        %v3601 = vpop.permute.xlu0 %3600
        %3602 = vrot.lane.b32.xlu0 %v2778, 56
        %v3603 = vpop.permute.xlu0 %3602
        %3604 = vrot.lane.b32.xlu0 %v2781, 56
        %v3605 = vpop.permute.xlu0 %3604
        %3606 = vrot.lane.b32.xlu0 %v2783, 56
        %v3607 = vpop.permute.xlu0 %3606
        %3608 = vrot.lane.b32.xlu0 %v2786, 56
        %v3609 = vpop.permute.xlu0 %3608
        %3610 = vrot.lane.b32.xlu0 %v2788, 56
        %v3611 = vpop.permute.xlu0 %3610
        %3612 = vrot.lane.b32.xlu0 %v2791, 56
        %v3613 = vpop.permute.xlu0 %3612
        %3614 = vrot.lane.b32.xlu0 %v2793, 56
        %v3615 = vpop.permute.xlu0 %3614
        %3616 = vrot.lane.b32.xlu0 %v2796, 56
        %v3617 = vpop.permute.xlu0 %3616
        %3618 = vrot.lane.b32.xlu0 %v2798, 56
        %v3619 = vpop.permute.xlu0 %3618
        %3620 = vrot.lane.b32.xlu0 %v2801, 56
        %v3621 = vpop.permute.xlu0 %3620
        %3622 = vrot.lane.b32.xlu0 %v2803, 56
        %v3623 = vpop.permute.xlu0 %3622
        %3624 = vrot.lane.b32.xlu0 %v2806, 56
        %v3625 = vpop.permute.xlu0 %3624
        %3626 = vrot.lane.b32.xlu0 %v2808, 56
        %v3627 = vpop.permute.xlu0 %3626
        %3628 = vrot.lane.b32.xlu0 %v2811, 56
        %v3629 = vpop.permute.xlu0 %3628
        %3630 = vrot.lane.b32.xlu0 %v2813, 56
        %v3631 = vpop.permute.xlu0 %3630
        %3632 = vrot.lane.b32.xlu0 %v2816, 56
        %v3633 = vpop.permute.xlu0 %3632
        %3634 = vrot.lane.b32.xlu0 %v2818, 56
        %v3635 = vpop.permute.xlu0 %3634
        %3636 = vrot.lane.b32.xlu0 %v2821, 56
        %v3637 = vpop.permute.xlu0 %3636
        %3638 = vrot.lane.b32.xlu0 %v2823, 56
        %v3639 = vpop.permute.xlu0 %3638
        %3640 = vrot.lane.b32.xlu0 %v2826, 56
        %v3641 = vpop.permute.xlu0 %3640
        %3642 = vrot.lane.b32.xlu0 %v2828, 56
        %v3643 = vpop.permute.xlu0 %3642
        %3644 = vrot.lane.b32.xlu0 %v2831, 56
        %v3645 = vpop.permute.xlu0 %3644
        %3646 = vrot.lane.b32.xlu0 %v2833, 56
        %v3647 = vpop.permute.xlu0 %3646
        %3648 = vrot.lane.b32.xlu0 %v2836, 56
        %v3649 = vpop.permute.xlu0 %3648
        %3650 = vrot.lane.b32.xlu0 %v2838, 56
        %v3651 = vpop.permute.xlu0 %3650
        %3652 = vrot.lane.b32.xlu0 %v2994, 56
        %v3653 = vpop.permute.xlu0 %3652
        %3654 = vrot.lane.b32.xlu0 %v2996, 56
        %v3655 = vpop.permute.xlu0 %3654
        %3687 = vrot.lane.b32.xlu0 %v2841, 64
        %v3688 = vpop.permute.xlu0 %3687
        %3689 = vrot.lane.b32.xlu0 %v2844, 64
        %v3690 = vpop.permute.xlu0 %3689
        %3691 = vrot.lane.b32.xlu0 %v2846, 64
        %v3692 = vpop.permute.xlu0 %3691
        %3693 = vrot.lane.b32.xlu0 %v2849, 64
        %v3694 = vpop.permute.xlu0 %3693
        %3695 = vrot.lane.b32.xlu0 %v2851, 64
        %v3696 = vpop.permute.xlu0 %3695
        %3697 = vrot.lane.b32.xlu0 %v2854, 64
        %v3698 = vpop.permute.xlu0 %3697
        %3699 = vrot.lane.b32.xlu0 %v2856, 64
        %v3700 = vpop.permute.xlu0 %3699
        %3701 = vrot.lane.b32.xlu0 %v2859, 64
        %v3702 = vpop.permute.xlu0 %3701
        %3703 = vrot.lane.b32.xlu0 %v2861, 64
        %v3704 = vpop.permute.xlu0 %3703
        %3705 = vrot.lane.b32.xlu0 %v2864, 64
        %v3706 = vpop.permute.xlu0 %3705
        %3707 = vrot.lane.b32.xlu0 %v2866, 64
        %v3708 = vpop.permute.xlu0 %3707
        %3709 = vrot.lane.b32.xlu0 %v2869, 64
        %v3710 = vpop.permute.xlu0 %3709
        %3711 = vrot.lane.b32.xlu0 %v2871, 64
        %v3712 = vpop.permute.xlu0 %3711
        %3713 = vrot.lane.b32.xlu0 %v2874, 64
        %v3714 = vpop.permute.xlu0 %3713
        %3715 = vrot.lane.b32.xlu0 %v2876, 64
        %v3716 = vpop.permute.xlu0 %3715
        %3717 = vrot.lane.b32.xlu0 %v2879, 64
        %v3718 = vpop.permute.xlu0 %3717
        %3719 = vrot.lane.b32.xlu0 %v2881, 64
        %v3720 = vpop.permute.xlu0 %3719
        %3721 = vrot.lane.b32.xlu0 %v2884, 64
        %v3722 = vpop.permute.xlu0 %3721
        %3723 = vrot.lane.b32.xlu0 %v2886, 64
        %v3724 = vpop.permute.xlu0 %3723
        %3725 = vrot.lane.b32.xlu0 %v2889, 64
        %v3726 = vpop.permute.xlu0 %3725
        %3727 = vrot.lane.b32.xlu0 %v2891, 64
        %v3728 = vpop.permute.xlu0 %3727
        %3729 = vrot.lane.b32.xlu0 %v2894, 64
        %v3730 = vpop.permute.xlu0 %3729
        %3731 = vrot.lane.b32.xlu0 %v2896, 64
        %v3732 = vpop.permute.xlu0 %3731
        %3733 = vrot.lane.b32.xlu0 %v2899, 64
        %v3734 = vpop.permute.xlu0 %3733
        %3735 = vrot.lane.b32.xlu0 %v2901, 64
        %v3736 = vpop.permute.xlu0 %3735
        %3737 = vrot.lane.b32.xlu0 %v2904, 64
        %v3738 = vpop.permute.xlu0 %3737
        %3739 = vrot.lane.b32.xlu0 %v2906, 64
        %v3740 = vpop.permute.xlu0 %3739
        %3741 = vrot.lane.b32.xlu0 %v2909, 64
        %v3742 = vpop.permute.xlu0 %3741
        %3743 = vrot.lane.b32.xlu0 %v2911, 64
        %v3744 = vpop.permute.xlu0 %3743
        %3745 = vrot.lane.b32.xlu0 %v2999, 64
        %v3746 = vpop.permute.xlu0 %3745
        %3747 = vrot.lane.b32.xlu0 %v3001, 64
        %v3748 = vpop.permute.xlu0 %3747
        %3780 = vrot.lane.b32.xlu0 %v2914, 72
        %v3781 = vpop.permute.xlu0 %3780
        %3782 = vrot.lane.b32.xlu0 %v2917, 72
        %v3783 = vpop.permute.xlu0 %3782
        %3784 = vrot.lane.b32.xlu0 %v2919, 72
        %v3785 = vpop.permute.xlu0 %3784
        %3786 = vrot.lane.b32.xlu0 %v2922, 72
        %v3787 = vpop.permute.xlu0 %3786
        %3788 = vrot.lane.b32.xlu0 %v2924, 72
        %v3789 = vpop.permute.xlu0 %3788
        %3790 = vrot.lane.b32.xlu0 %v2927, 72
        %v3791 = vpop.permute.xlu0 %3790
        %3792 = vrot.lane.b32.xlu0 %v2929, 72
        %v3793 = vpop.permute.xlu0 %3792
        %3794 = vrot.lane.b32.xlu0 %v2932, 72
        %v3795 = vpop.permute.xlu0 %3794
        %3796 = vrot.lane.b32.xlu0 %v2934, 72
        %v3797 = vpop.permute.xlu0 %3796
        %3798 = vrot.lane.b32.xlu0 %v2937, 72
        %v3799 = vpop.permute.xlu0 %3798
        %3800 = vrot.lane.b32.xlu0 %v2939, 72
        %v3801 = vpop.permute.xlu0 %3800
        %3802 = vrot.lane.b32.xlu0 %v2942, 72
        %v3803 = vpop.permute.xlu0 %3802
        %3804 = vrot.lane.b32.xlu0 %v2944, 72
        %v3805 = vpop.permute.xlu0 %3804
        %3806 = vrot.lane.b32.xlu0 %v2947, 72
        %v3807 = vpop.permute.xlu0 %3806
        %3808 = vrot.lane.b32.xlu0 %v2949, 72
        %v3809 = vpop.permute.xlu0 %3808
        %3810 = vrot.lane.b32.xlu0 %v2952, 72
        %v3811 = vpop.permute.xlu0 %3810
        %3812 = vrot.lane.b32.xlu0 %v2954, 72
        %v3813 = vpop.permute.xlu0 %3812
        %3814 = vrot.lane.b32.xlu0 %v2957, 72
        %v3815 = vpop.permute.xlu0 %3814
        %3816 = vrot.lane.b32.xlu0 %v2959, 72
        %v3817 = vpop.permute.xlu0 %3816
        %3818 = vrot.lane.b32.xlu0 %v2962, 72
        %v3819 = vpop.permute.xlu0 %3818
        %3820 = vrot.lane.b32.xlu0 %v2964, 72
        %v3821 = vpop.permute.xlu0 %3820
        %3822 = vrot.lane.b32.xlu0 %v2967, 72
        %v3823 = vpop.permute.xlu0 %3822
        %3824 = vrot.lane.b32.xlu0 %v2969, 72
        %v3825 = vpop.permute.xlu0 %3824
        %3826 = vrot.lane.b32.xlu0 %v2972, 72
        %v3827 = vpop.permute.xlu0 %3826
        %3828 = vrot.lane.b32.xlu0 %v2974, 72
        %v3829 = vpop.permute.xlu0 %3828
        %3830 = vrot.lane.b32.xlu0 %v2977, 72
        %v3831 = vpop.permute.xlu0 %3830
        %3832 = vrot.lane.b32.xlu0 %v2979, 72
        %v3833 = vpop.permute.xlu0 %3832
        %3834 = vrot.lane.b32.xlu0 %v2982, 72
        %v3835 = vpop.permute.xlu0 %3834
        %3836 = vrot.lane.b32.xlu0 %v2984, 72
        %v3837 = vpop.permute.xlu0 %3836
        %3838 = vrot.lane.b32.xlu0 %v3004, 72
        %v3839 = vpop.permute.xlu0 %3838
        %3840 = vrot.lane.b32.xlu0 %v3006, 72
        %v3841 = vpop.permute.xlu0 %3840
        %3873 = vrot.lane.b32.xlu0 %v2639, 80
        %v3874 = vpop.permute.xlu0 %3873
        %3875 = vrot.lane.b32.xlu0 %v2500, 80
        %v3876 = vpop.permute.xlu0 %3875
        %3877 = vrot.lane.b32.xlu0 %v2640, 80
        %v3878 = vpop.permute.xlu0 %3877
        %3879 = vrot.lane.b32.xlu0 %v2506, 80
        %v3880 = vpop.permute.xlu0 %3879
        %3881 = vrot.lane.b32.xlu0 %v2641, 80
        %v3882 = vpop.permute.xlu0 %3881
        %3883 = vrot.lane.b32.xlu0 %v2512, 80
        %v3884 = vpop.permute.xlu0 %3883
        %3885 = vrot.lane.b32.xlu0 %v2642, 80
        %v3886 = vpop.permute.xlu0 %3885
        %3887 = vrot.lane.b32.xlu0 %v2518, 80
        %v3888 = vpop.permute.xlu0 %3887
        %3889 = vrot.lane.b32.xlu0 %v2643, 80
        %v3890 = vpop.permute.xlu0 %3889
        %3891 = vrot.lane.b32.xlu0 %v2524, 80
        %v3892 = vpop.permute.xlu0 %3891
        %3893 = vrot.lane.b32.xlu0 %v2644, 80
        %v3894 = vpop.permute.xlu0 %3893
        %3895 = vrot.lane.b32.xlu0 %v2530, 80
        %v3896 = vpop.permute.xlu0 %3895
        %3897 = vrot.lane.b32.xlu0 %v2645, 80
        %v3898 = vpop.permute.xlu0 %3897
        %3899 = vrot.lane.b32.xlu0 %v2536, 80
        %v3900 = vpop.permute.xlu0 %3899
        %3901 = vrot.lane.b32.xlu0 %v2646, 80
        %v3902 = vpop.permute.xlu0 %3901
        %3903 = vrot.lane.b32.xlu0 %v2542, 80
        %v3904 = vpop.permute.xlu0 %3903
        %3905 = vrot.lane.b32.xlu0 %v2647, 80
        %v3906 = vpop.permute.xlu0 %3905
        %3907 = vrot.lane.b32.xlu0 %v2548, 80
        %v3908 = vpop.permute.xlu0 %3907
        %3909 = vrot.lane.b32.xlu0 %v2648, 80
        %v3910 = vpop.permute.xlu0 %3909
        %3911 = vrot.lane.b32.xlu0 %v2554, 80
        %v3912 = vpop.permute.xlu0 %3911
        %3913 = vrot.lane.b32.xlu0 %v2649, 80
        %v3914 = vpop.permute.xlu0 %3913
        %3915 = vrot.lane.b32.xlu0 %v2560, 80
        %v3916 = vpop.permute.xlu0 %3915
        %3917 = vrot.lane.b32.xlu0 %v2650, 80
        %v3918 = vpop.permute.xlu0 %3917
        %3919 = vrot.lane.b32.xlu0 %v2566, 80
        %v3920 = vpop.permute.xlu0 %3919
        %3921 = vrot.lane.b32.xlu0 %v2651, 80
        %v3922 = vpop.permute.xlu0 %3921
        %3923 = vrot.lane.b32.xlu0 %v2572, 80
        %v3924 = vpop.permute.xlu0 %3923
        %3925 = vrot.lane.b32.xlu0 %v2652, 80
        %v3926 = vpop.permute.xlu0 %3925
        %3927 = vrot.lane.b32.xlu0 %v2578, 80
        %v3928 = vpop.permute.xlu0 %3927
        %3929 = vrot.lane.b32.xlu0 %v2653, 80
        %v3930 = vpop.permute.xlu0 %3929
        %3931 = vrot.lane.b32.xlu0 %v2584, 80
        %v3932 = vpop.permute.xlu0 %3931
        %3933 = vrot.lane.b32.xlu0 %v2654, 80
        %v3934 = vpop.permute.xlu0 %3933
        %3935 = vrot.lane.b32.xlu0 %v2590, 80
        %v3936 = vpop.permute.xlu0 %3935
        %3969 = vrot.lane.b32.xlu0 %v2701, 88
        %v3970 = vpop.permute.xlu0 %3969
        %3971 = vrot.lane.b32.xlu0 %v2703, 88
        %v3972 = vpop.permute.xlu0 %3971
        %3973 = vrot.lane.b32.xlu0 %v2706, 88
        %v3974 = vpop.permute.xlu0 %3973
        %3975 = vrot.lane.b32.xlu0 %v2708, 88
        %v3976 = vpop.permute.xlu0 %3975
        %3977 = vrot.lane.b32.xlu0 %v2711, 88
        %v3978 = vpop.permute.xlu0 %3977
        %3979 = vrot.lane.b32.xlu0 %v2713, 88
        %v3980 = vpop.permute.xlu0 %3979
        %3981 = vrot.lane.b32.xlu0 %v2716, 88
        %v3982 = vpop.permute.xlu0 %3981
        %3983 = vrot.lane.b32.xlu0 %v2718, 88
        %v3984 = vpop.permute.xlu0 %3983
        %3985 = vrot.lane.b32.xlu0 %v2721, 88
        %v3986 = vpop.permute.xlu0 %3985
        %3987 = vrot.lane.b32.xlu0 %v2723, 88
        %v3988 = vpop.permute.xlu0 %3987
        %3989 = vrot.lane.b32.xlu0 %v2726, 88
        %v3990 = vpop.permute.xlu0 %3989
        %3991 = vrot.lane.b32.xlu0 %v2728, 88
        %v3992 = vpop.permute.xlu0 %3991
        %3993 = vrot.lane.b32.xlu0 %v2731, 88
        %v3994 = vpop.permute.xlu0 %3993
        %3995 = vrot.lane.b32.xlu0 %v2733, 88
        %v3996 = vpop.permute.xlu0 %3995
        %3997 = vrot.lane.b32.xlu0 %v2736, 88
        %v3998 = vpop.permute.xlu0 %3997
        %3999 = vrot.lane.b32.xlu0 %v2738, 88
        %v4000 = vpop.permute.xlu0 %3999
        %4001 = vrot.lane.b32.xlu0 %v2741, 88
        %v4002 = vpop.permute.xlu0 %4001
        %4003 = vrot.lane.b32.xlu0 %v2743, 88
        %v4004 = vpop.permute.xlu0 %4003
        %4005 = vrot.lane.b32.xlu0 %v2746, 88
        %v4006 = vpop.permute.xlu0 %4005
        %4007 = vrot.lane.b32.xlu0 %v2748, 88
        %v4008 = vpop.permute.xlu0 %4007
        %4009 = vrot.lane.b32.xlu0 %v2751, 88
        %v4010 = vpop.permute.xlu0 %4009
        %4011 = vrot.lane.b32.xlu0 %v2753, 88
        %v4012 = vpop.permute.xlu0 %4011
        %4013 = vrot.lane.b32.xlu0 %v2756, 88
        %v4014 = vpop.permute.xlu0 %4013
        %4015 = vrot.lane.b32.xlu0 %v2758, 88
        %v4016 = vpop.permute.xlu0 %4015
        %4017 = vrot.lane.b32.xlu0 %v2761, 88
        %v4018 = vpop.permute.xlu0 %4017
        %4019 = vrot.lane.b32.xlu0 %v2763, 88
        %v4020 = vpop.permute.xlu0 %4019
        %4021 = vrot.lane.b32.xlu0 %v2766, 88
        %v4022 = vpop.permute.xlu0 %4021
        %4023 = vrot.lane.b32.xlu0 %v2768, 88
        %v4024 = vpop.permute.xlu0 %4023
        %4025 = vrot.lane.b32.xlu0 %v2989, 88
        %v4026 = vpop.permute.xlu0 %4025
        %4027 = vrot.lane.b32.xlu0 %v2991, 88
        %v4028 = vpop.permute.xlu0 %4027
        %4029 = vrot.lane.b32.xlu0 %v3011, 88
        %v4030 = vpop.permute.xlu0 %4029
        %4031 = vrot.lane.b32.xlu0 %v3013, 88
        %v4032 = vpop.permute.xlu0 %4031
        %4065 = vrot.lane.b32.xlu0 %v2771, 96
        %v4066 = vpop.permute.xlu0 %4065
        %4067 = vrot.lane.b32.xlu0 %v2773, 96
        %v4068 = vpop.permute.xlu0 %4067
        %4069 = vrot.lane.b32.xlu0 %v2776, 96
        %v4070 = vpop.permute.xlu0 %4069
        %4071 = vrot.lane.b32.xlu0 %v2778, 96
        %v4072 = vpop.permute.xlu0 %4071
        %4073 = vrot.lane.b32.xlu0 %v2781, 96
        %v4074 = vpop.permute.xlu0 %4073
        %4075 = vrot.lane.b32.xlu0 %v2783, 96
        %v4076 = vpop.permute.xlu0 %4075
        %4077 = vrot.lane.b32.xlu0 %v2786, 96
        %v4078 = vpop.permute.xlu0 %4077
        %4079 = vrot.lane.b32.xlu0 %v2788, 96
        %v4080 = vpop.permute.xlu0 %4079
        %4081 = vrot.lane.b32.xlu0 %v2791, 96
        %v4082 = vpop.permute.xlu0 %4081
        %4083 = vrot.lane.b32.xlu0 %v2793, 96
        %v4084 = vpop.permute.xlu0 %4083
        %4085 = vrot.lane.b32.xlu0 %v2796, 96
        %v4086 = vpop.permute.xlu0 %4085
        %4087 = vrot.lane.b32.xlu0 %v2798, 96
        %v4088 = vpop.permute.xlu0 %4087
        %4089 = vrot.lane.b32.xlu0 %v2801, 96
        %v4090 = vpop.permute.xlu0 %4089
        %4091 = vrot.lane.b32.xlu0 %v2803, 96
        %v4092 = vpop.permute.xlu0 %4091
        %4093 = vrot.lane.b32.xlu0 %v2806, 96
        %v4094 = vpop.permute.xlu0 %4093
        %4095 = vrot.lane.b32.xlu0 %v2808, 96
        %v4096 = vpop.permute.xlu0 %4095
        %4097 = vrot.lane.b32.xlu0 %v2811, 96
        %v4098 = vpop.permute.xlu0 %4097
        %4099 = vrot.lane.b32.xlu0 %v2813, 96
        %v4100 = vpop.permute.xlu0 %4099
        %4101 = vrot.lane.b32.xlu0 %v2816, 96
        %v4102 = vpop.permute.xlu0 %4101
        %4103 = vrot.lane.b32.xlu0 %v2818, 96
        %v4104 = vpop.permute.xlu0 %4103
        %4105 = vrot.lane.b32.xlu0 %v2821, 96
        %v4106 = vpop.permute.xlu0 %4105
        %4107 = vrot.lane.b32.xlu0 %v2823, 96
        %v4108 = vpop.permute.xlu0 %4107
        %4109 = vrot.lane.b32.xlu0 %v2826, 96
        %v4110 = vpop.permute.xlu0 %4109
        %4111 = vrot.lane.b32.xlu0 %v2828, 96
        %v4112 = vpop.permute.xlu0 %4111
        %4113 = vrot.lane.b32.xlu0 %v2831, 96
        %v4114 = vpop.permute.xlu0 %4113
        %4115 = vrot.lane.b32.xlu0 %v2833, 96
        %v4116 = vpop.permute.xlu0 %4115
        %4117 = vrot.lane.b32.xlu0 %v2836, 96
        %v4118 = vpop.permute.xlu0 %4117
        %4119 = vrot.lane.b32.xlu0 %v2838, 96
        %v4120 = vpop.permute.xlu0 %4119
        %4121 = vrot.lane.b32.xlu0 %v2994, 96
        %v4122 = vpop.permute.xlu0 %4121
        %4123 = vrot.lane.b32.xlu0 %v2996, 96
        %v4124 = vpop.permute.xlu0 %4123
        %4125 = vrot.lane.b32.xlu0 %v3016, 96
        %v4126 = vpop.permute.xlu0 %4125
        %4127 = vrot.lane.b32.xlu0 %v3018, 96
        %v4128 = vpop.permute.xlu0 %4127
        %4161 = vrot.lane.b32.xlu0 %v2844, 104
        %v4162 = vpop.permute.xlu0 %4161
        %4163 = vrot.lane.b32.xlu0 %v2846, 104
        %v4164 = vpop.permute.xlu0 %4163
        %4165 = vrot.lane.b32.xlu0 %v2849, 104
        %v4166 = vpop.permute.xlu0 %4165
        %4167 = vrot.lane.b32.xlu0 %v2851, 104
        %v4168 = vpop.permute.xlu0 %4167
        %4169 = vrot.lane.b32.xlu0 %v2854, 104
        %v4170 = vpop.permute.xlu0 %4169
        %4171 = vrot.lane.b32.xlu0 %v2856, 104
        %v4172 = vpop.permute.xlu0 %4171
        %4173 = vrot.lane.b32.xlu0 %v2859, 104
        %v4174 = vpop.permute.xlu0 %4173
        %4175 = vrot.lane.b32.xlu0 %v2861, 104
        %v4176 = vpop.permute.xlu0 %4175
        %4177 = vrot.lane.b32.xlu0 %v2864, 104
        %v4178 = vpop.permute.xlu0 %4177
        %4179 = vrot.lane.b32.xlu0 %v2866, 104
        %v4180 = vpop.permute.xlu0 %4179
        %4181 = vrot.lane.b32.xlu0 %v2869, 104
        %v4182 = vpop.permute.xlu0 %4181
        %4183 = vrot.lane.b32.xlu0 %v2871, 104
        %v4184 = vpop.permute.xlu0 %4183
        %4185 = vrot.lane.b32.xlu0 %v2874, 104
        %v4186 = vpop.permute.xlu0 %4185
        %4187 = vrot.lane.b32.xlu0 %v2876, 104
        %v4188 = vpop.permute.xlu0 %4187
        %4189 = vrot.lane.b32.xlu0 %v2879, 104
        %v4190 = vpop.permute.xlu0 %4189
        %4191 = vrot.lane.b32.xlu0 %v2881, 104
        %v4192 = vpop.permute.xlu0 %4191
        %4193 = vrot.lane.b32.xlu0 %v2884, 104
        %v4194 = vpop.permute.xlu0 %4193
        %4195 = vrot.lane.b32.xlu0 %v2886, 104
        %v4196 = vpop.permute.xlu0 %4195
        %4197 = vrot.lane.b32.xlu0 %v2889, 104
        %v4198 = vpop.permute.xlu0 %4197
        %4199 = vrot.lane.b32.xlu0 %v2891, 104
        %v4200 = vpop.permute.xlu0 %4199
        %4201 = vrot.lane.b32.xlu0 %v2894, 104
        %v4202 = vpop.permute.xlu0 %4201
        %4203 = vrot.lane.b32.xlu0 %v2896, 104
        %v4204 = vpop.permute.xlu0 %4203
        %4205 = vrot.lane.b32.xlu0 %v2899, 104
        %v4206 = vpop.permute.xlu0 %4205
        %4207 = vrot.lane.b32.xlu0 %v2901, 104
        %v4208 = vpop.permute.xlu0 %4207
        %4209 = vrot.lane.b32.xlu0 %v2904, 104
        %v4210 = vpop.permute.xlu0 %4209
        %4211 = vrot.lane.b32.xlu0 %v2906, 104
        %v4212 = vpop.permute.xlu0 %4211
        %4213 = vrot.lane.b32.xlu0 %v2909, 104
        %v4214 = vpop.permute.xlu0 %4213
        %4215 = vrot.lane.b32.xlu0 %v2911, 104
        %v4216 = vpop.permute.xlu0 %4215
        %4217 = vrot.lane.b32.xlu0 %v2999, 104
        %v4218 = vpop.permute.xlu0 %4217
        %4219 = vrot.lane.b32.xlu0 %v3001, 104
        %v4220 = vpop.permute.xlu0 %4219
        %4221 = vrot.lane.b32.xlu0 %v3021, 104
        %v4222 = vpop.permute.xlu0 %4221
        %4223 = vrot.lane.b32.xlu0 %v3023, 104
        %v4224 = vpop.permute.xlu0 %4223
        %4257 = vrot.lane.b32.xlu0 %v2917, 112
        %v4258 = vpop.permute.xlu0 %4257
        %4259 = vrot.lane.b32.xlu0 %v2919, 112
        %v4260 = vpop.permute.xlu0 %4259
        %4261 = vrot.lane.b32.xlu0 %v2922, 112
        %v4262 = vpop.permute.xlu0 %4261
        %4263 = vrot.lane.b32.xlu0 %v2924, 112
        %v4264 = vpop.permute.xlu0 %4263
        %4265 = vrot.lane.b32.xlu0 %v2927, 112
        %v4266 = vpop.permute.xlu0 %4265
        %4267 = vrot.lane.b32.xlu0 %v2929, 112
        %v4268 = vpop.permute.xlu0 %4267
        %4269 = vrot.lane.b32.xlu0 %v2932, 112
        %v4270 = vpop.permute.xlu0 %4269
        %4271 = vrot.lane.b32.xlu0 %v2934, 112
        %v4272 = vpop.permute.xlu0 %4271
        %4273 = vrot.lane.b32.xlu0 %v2937, 112
        %v4274 = vpop.permute.xlu0 %4273
        %4275 = vrot.lane.b32.xlu0 %v2939, 112
        %v4276 = vpop.permute.xlu0 %4275
        %4277 = vrot.lane.b32.xlu0 %v2942, 112
        %v4278 = vpop.permute.xlu0 %4277
        %4279 = vrot.lane.b32.xlu0 %v2944, 112
        %v4280 = vpop.permute.xlu0 %4279
        %4281 = vrot.lane.b32.xlu0 %v2947, 112
        %v4282 = vpop.permute.xlu0 %4281
        %4283 = vrot.lane.b32.xlu0 %v2949, 112
        %v4284 = vpop.permute.xlu0 %4283
        %4285 = vrot.lane.b32.xlu0 %v2952, 112
        %v4286 = vpop.permute.xlu0 %4285
        %4287 = vrot.lane.b32.xlu0 %v2954, 112
        %v4288 = vpop.permute.xlu0 %4287
        %4289 = vrot.lane.b32.xlu0 %v2957, 112
        %v4290 = vpop.permute.xlu0 %4289
        %4291 = vrot.lane.b32.xlu0 %v2959, 112
        %v4292 = vpop.permute.xlu0 %4291
        %4293 = vrot.lane.b32.xlu0 %v2962, 112
        %v4294 = vpop.permute.xlu0 %4293
        %4295 = vrot.lane.b32.xlu0 %v2964, 112
        %v4296 = vpop.permute.xlu0 %4295
        %4297 = vrot.lane.b32.xlu0 %v2967, 112
        %v4298 = vpop.permute.xlu0 %4297
        %4299 = vrot.lane.b32.xlu0 %v2969, 112
        %v4300 = vpop.permute.xlu0 %4299
        %4301 = vrot.lane.b32.xlu0 %v2972, 112
        %v4302 = vpop.permute.xlu0 %4301
        %4303 = vrot.lane.b32.xlu0 %v2974, 112
        %v4304 = vpop.permute.xlu0 %4303
        %4305 = vrot.lane.b32.xlu0 %v2977, 112
        %v4306 = vpop.permute.xlu0 %4305
        %4307 = vrot.lane.b32.xlu0 %v2979, 112
        %v4308 = vpop.permute.xlu0 %4307
        %4309 = vrot.lane.b32.xlu0 %v2982, 112
        %v4310 = vpop.permute.xlu0 %4309
        %4311 = vrot.lane.b32.xlu0 %v2984, 112
        %v4312 = vpop.permute.xlu0 %4311
        %4313 = vrot.lane.b32.xlu0 %v3004, 112
        %v4314 = vpop.permute.xlu0 %4313
        %4315 = vrot.lane.b32.xlu0 %v3006, 112
        %v4316 = vpop.permute.xlu0 %4315
        %4317 = vrot.lane.b32.xlu0 %v3026, 112
        %v4318 = vpop.permute.xlu0 %4317
        %4319 = vrot.lane.b32.xlu0 %v3028, 112
        %v4320 = vpop.permute.xlu0 %4319
        %4353 = vrot.lane.b32.xlu0 %v2640, 120
        %v4354 = vpop.permute.xlu0 %4353
        %4355 = vrot.lane.b32.xlu0 %v2506, 120
        %v4356 = vpop.permute.xlu0 %4355
        %4357 = vrot.lane.b32.xlu0 %v2641, 120
        %v4358 = vpop.permute.xlu0 %4357
        %4359 = vrot.lane.b32.xlu0 %v2512, 120
        %v4360 = vpop.permute.xlu0 %4359
        %4361 = vrot.lane.b32.xlu0 %v2642, 120
        %v4362 = vpop.permute.xlu0 %4361
        %4363 = vrot.lane.b32.xlu0 %v2518, 120
        %v4364 = vpop.permute.xlu0 %4363
        %4365 = vrot.lane.b32.xlu0 %v2643, 120
        %v4366 = vpop.permute.xlu0 %4365
        %4367 = vrot.lane.b32.xlu0 %v2524, 120
        %v4368 = vpop.permute.xlu0 %4367
        %4369 = vrot.lane.b32.xlu0 %v2644, 120
        %v4370 = vpop.permute.xlu0 %4369
        %4371 = vrot.lane.b32.xlu0 %v2530, 120
        %v4372 = vpop.permute.xlu0 %4371
        %4373 = vrot.lane.b32.xlu0 %v2645, 120
        %v4374 = vpop.permute.xlu0 %4373
        %4375 = vrot.lane.b32.xlu0 %v2536, 120
        %v4376 = vpop.permute.xlu0 %4375
        %4377 = vrot.lane.b32.xlu0 %v2646, 120
        %v4378 = vpop.permute.xlu0 %4377
        %4379 = vrot.lane.b32.xlu0 %v2542, 120
        %v4380 = vpop.permute.xlu0 %4379
        %4381 = vrot.lane.b32.xlu0 %v2647, 120
        %v4382 = vpop.permute.xlu0 %4381
        %4383 = vrot.lane.b32.xlu0 %v2548, 120
        %v4384 = vpop.permute.xlu0 %4383
        %4385 = vrot.lane.b32.xlu0 %v2648, 120
        %v4386 = vpop.permute.xlu0 %4385
        %4387 = vrot.lane.b32.xlu0 %v2554, 120
        %v4388 = vpop.permute.xlu0 %4387
        %4389 = vrot.lane.b32.xlu0 %v2649, 120
        %v4390 = vpop.permute.xlu0 %4389
        %4391 = vrot.lane.b32.xlu0 %v2560, 120
        %v4392 = vpop.permute.xlu0 %4391
        %4393 = vrot.lane.b32.xlu0 %v2650, 120
        %v4394 = vpop.permute.xlu0 %4393
        %4395 = vrot.lane.b32.xlu0 %v2566, 120
        %v4396 = vpop.permute.xlu0 %4395
        %4397 = vrot.lane.b32.xlu0 %v2651, 120
        %v4398 = vpop.permute.xlu0 %4397
        %4399 = vrot.lane.b32.xlu0 %v2572, 120
        %v4400 = vpop.permute.xlu0 %4399
        %4401 = vrot.lane.b32.xlu0 %v2652, 120
        %v4402 = vpop.permute.xlu0 %4401
        %4403 = vrot.lane.b32.xlu0 %v2578, 120
        %v4404 = vpop.permute.xlu0 %4403
        %4405 = vrot.lane.b32.xlu0 %v2653, 120
        %v4406 = vpop.permute.xlu0 %4405
        %4407 = vrot.lane.b32.xlu0 %v2584, 120
        %v4408 = vpop.permute.xlu0 %4407
        %4409 = vrot.lane.b32.xlu0 %v2654, 120
        %v4410 = vpop.permute.xlu0 %4409
        %4411 = vrot.lane.b32.xlu0 %v2590, 120
        %v4412 = vpop.permute.xlu0 %4411
        %4413 = vrot.lane.b32.xlu0 0.0, 120
        %v4414 = vpop.permute.xlu0 %4413
        %vm4446 = vcmask 64512
        %v4447 = vsel %vm4446, 0.0, %v3061
        %v4448 = vsel %vm4446, %v2639, %v3063
        %v4449 = vsel %vm4446, %v2500, %v3065
        %v4450 = vsel %vm4446, %v2640, %v3067
        %v4451 = vsel %vm4446, %v2506, %v3069
        %v4452 = vsel %vm4446, %v2641, %v3071
        %v4453 = vsel %vm4446, %v2512, %v3073
        %v4454 = vsel %vm4446, %v2642, %v3075
        %v4455 = vsel %vm4446, %v2518, %v3077
        %v4456 = vsel %vm4446, %v2643, %v3079
        %v4457 = vsel %vm4446, %v2524, %v3081
        %v4458 = vsel %vm4446, %v2644, %v3083
        %v4459 = vsel %vm4446, %v2530, %v3085
        %v4460 = vsel %vm4446, %v2645, %v3087
        %v4461 = vsel %vm4446, %v2536, %v3089
        %v4462 = vsel %vm4446, %v2646, %v3091
        %v4463 = vsel %vm4446, %v2542, %v3093
        %v4464 = vsel %vm4446, %v2647, %v3095
        %v4465 = vsel %vm4446, %v2548, %v3097
        %v4466 = vsel %vm4446, %v2648, %v3099
        %v4467 = vsel %vm4446, %v2554, %v3101
        %v4468 = vsel %vm4446, %v2649, %v3103
        %v4469 = vsel %vm4446, %v2560, %v3105
        %v4470 = vsel %vm4446, %v2650, %v3107
        %v4471 = vsel %vm4446, %v2566, %v3109
        %v4472 = vsel %vm4446, %v2651, %v3111
        %v4473 = vsel %vm4446, %v2572, %v3113
        %v4474 = vsel %vm4446, %v2652, %v3115
        %v4475 = vsel %vm4446, %v2578, %v3117
        %v4476 = vsel %vm480, %v4447, %v3148
        %v4477 = vsel %vm480, %v4448, %v3150
        %v4478 = vsel %vm480, %v4449, %v3152
        %v4479 = vsel %vm480, %v4450, %v3154
        %v4480 = vsel %vm480, %v4451, %v3156
        %v4481 = vsel %vm480, %v4452, %v3158
        %v4482 = vsel %vm480, %v4453, %v3160
        %v4483 = vsel %vm480, %v4454, %v3162
        %v4484 = vsel %vm480, %v4455, %v3164
        %v4485 = vsel %vm480, %v4456, %v3166
        %v4486 = vsel %vm480, %v4457, %v3168
        %v4487 = vsel %vm480, %v4458, %v3170
        %v4488 = vsel %vm480, %v4459, %v3172
        %v4489 = vsel %vm480, %v4460, %v3174
        %v4490 = vsel %vm480, %v4461, %v3176
        %v4491 = vsel %vm480, %v4462, %v3178
        %v4492 = vsel %vm480, %v4463, %v3180
        %v4493 = vsel %vm480, %v4464, %v3182
        %v4494 = vsel %vm480, %v4465, %v3184
        %v4495 = vsel %vm480, %v4466, %v3186
        %v4496 = vsel %vm480, %v4467, %v3188
        %v4497 = vsel %vm480, %v4468, %v3190
        %v4498 = vsel %vm480, %v4469, %v3192
        %v4499 = vsel %vm480, %v4470, %v3194
        %v4500 = vsel %vm480, %v4471, %v3196
        %v4501 = vsel %vm480, %v4472, %v3198
        %v4502 = vsel %vm480, %v4473, %v3200
        %v4503 = vsel %vm480, %v4474, %v3202
        %v4504 = vsel %vm480, %v4475, %v3204
        %vm4505 = vcmask 195584
        %v4506 = vsel %vm4505, %v4476, %v3235
        %v4507 = vsel %vm4505, %v4477, %v3237
        %v4508 = vsel %vm4505, %v4478, %v3239
        %v4509 = vsel %vm4505, %v4479, %v3241
        %v4510 = vsel %vm4505, %v4480, %v3243
        %v4511 = vsel %vm4505, %v4481, %v3245
        %v4512 = vsel %vm4505, %v4482, %v3247
        %v4513 = vsel %vm4505, %v4483, %v3249
        %v4514 = vsel %vm4505, %v4484, %v3251
        %v4515 = vsel %vm4505, %v4485, %v3253
        %v4516 = vsel %vm4505, %v4486, %v3255
        %v4517 = vsel %vm4505, %v4487, %v3257
        %v4518 = vsel %vm4505, %v4488, %v3259
        %v4519 = vsel %vm4505, %v4489, %v3261
        %v4520 = vsel %vm4505, %v4490, %v3263
        %v4521 = vsel %vm4505, %v4491, %v3265
        %v4522 = vsel %vm4505, %v4492, %v3267
        %v4523 = vsel %vm4505, %v4493, %v3269
        %v4524 = vsel %vm4505, %v4494, %v3271
        %v4525 = vsel %vm4505, %v4495, %v3273
        %v4526 = vsel %vm4505, %v4496, %v3275
        %v4527 = vsel %vm4505, %v4497, %v3277
        %v4528 = vsel %vm4505, %v4498, %v3279
        %v4529 = vsel %vm4505, %v4499, %v3281
        %v4530 = vsel %vm4505, %v4500, %v3283
        %v4531 = vsel %vm4505, %v4501, %v3285
        %v4532 = vsel %vm4505, %v4502, %v3287
        %v4533 = vsel %vm4505, %v4503, %v3289
        %v4534 = vsel %vm4505, %v4504, %v3291
        %v4535 = vsel %vm1899, %v4506, %v3322
        %v4536 = vsel %vm1899, %v4507, %v3324
        %v4537 = vsel %vm1899, %v4508, %v3326
        %v4538 = vsel %vm1899, %v4509, %v3328
        %v4539 = vsel %vm1899, %v4510, %v3330
        %v4540 = vsel %vm1899, %v4511, %v3332
        %v4541 = vsel %vm1899, %v4512, %v3334
        %v4542 = vsel %vm1899, %v4513, %v3336
        %v4543 = vsel %vm1899, %v4514, %v3338
        %v4544 = vsel %vm1899, %v4515, %v3340
        %v4545 = vsel %vm1899, %v4516, %v3342
        %v4546 = vsel %vm1899, %v4517, %v3344
        %v4547 = vsel %vm1899, %v4518, %v3346
        %v4548 = vsel %vm1899, %v4519, %v3348
        %v4549 = vsel %vm1899, %v4520, %v3350
        %v4550 = vsel %vm1899, %v4521, %v3352
        %v4551 = vsel %vm1899, %v4522, %v3354
        %v4552 = vsel %vm1899, %v4523, %v3356
        %v4553 = vsel %vm1899, %v4524, %v3358
        %v4554 = vsel %vm1899, %v4525, %v3360
        %v4555 = vsel %vm1899, %v4526, %v3362
        %v4556 = vsel %vm1899, %v4527, %v3364
        %v4557 = vsel %vm1899, %v4528, %v3366
        %v4558 = vsel %vm1899, %v4529, %v3368
        %v4559 = vsel %vm1899, %v4530, %v3370
        %v4560 = vsel %vm1899, %v4531, %v3372
        %v4561 = vsel %vm1899, %v4532, %v3374
        %v4562 = vsel %vm1899, %v4533, %v3376
        %v4563 = vsel %vm1899, %v4534, %v3378
        %vm4564 = vcmask 326656
        %v4565 = vsel %vm4564, %v4535, %v3409
        %v4566 = vsel %vm4564, %v4535, %v3411
        %v4567 = vsel %vm4564, %v4535, %v3413
        %v4568 = vsel %vm4564, %v4536, %v3415
        %v4569 = vsel %vm4564, %v4537, %v3417
        %v4570 = vsel %vm4564, %v4538, %v3419
        %v4571 = vsel %vm4564, %v4539, %v3421
        %v4572 = vsel %vm4564, %v4540, %v3423
        %v4573 = vsel %vm4564, %v4541, %v3425
        %v4574 = vsel %vm4564, %v4542, %v3427
        %v4575 = vsel %vm4564, %v4543, %v3429
        %v4576 = vsel %vm4564, %v4544, %v3431
        %v4577 = vsel %vm4564, %v4545, %v3433
        %v4578 = vsel %vm4564, %v4546, %v3435
        %v4579 = vsel %vm4564, %v4547, %v3437
        %v4580 = vsel %vm4564, %v4548, %v3439
        %v4581 = vsel %vm4564, %v4549, %v3441
        %v4582 = vsel %vm4564, %v4550, %v3443
        %v4583 = vsel %vm4564, %v4551, %v3445
        %v4584 = vsel %vm4564, %v4552, %v3447
        %v4585 = vsel %vm4564, %v4553, %v3449
        %v4586 = vsel %vm4564, %v4554, %v3451
        %v4587 = vsel %vm4564, %v4555, %v3453
        %v4588 = vsel %vm4564, %v4556, %v3455
        %v4589 = vsel %vm4564, %v4557, %v3457
        %v4590 = vsel %vm4564, %v4558, %v3459
        %v4591 = vsel %vm4564, %v4559, %v3461
        %v4592 = vsel %vm4564, %v4560, %v3463
        %v4593 = vsel %vm4564, %v4561, %v3465
        %v4594 = vsel %vm4564, %v4562, %v3467
        %v4595 = vsel %vm4564, %v4563, %v3469
        %v4596 = vsel %vm1931, %v4565, %v3502
        %v4597 = vsel %vm1931, %v4566, %v3504
        %v4598 = vsel %vm1931, %v4567, %v3506
        %v4599 = vsel %vm1931, %v4568, %v3508
        %v4600 = vsel %vm1931, %v4569, %v3510
        %v4601 = vsel %vm1931, %v4570, %v3512
        %v4602 = vsel %vm1931, %v4571, %v3514
        %v4603 = vsel %vm1931, %v4572, %v3516
        %v4604 = vsel %vm1931, %v4573, %v3518
        %v4605 = vsel %vm1931, %v4574, %v3520
        %v4606 = vsel %vm1931, %v4575, %v3522
        %v4607 = vsel %vm1931, %v4576, %v3524
        %v4608 = vsel %vm1931, %v4577, %v3526
        %v4609 = vsel %vm1931, %v4578, %v3528
        %v4610 = vsel %vm1931, %v4579, %v3530
        %v4611 = vsel %vm1931, %v4580, %v3532
        %v4612 = vsel %vm1931, %v4581, %v3534
        %v4613 = vsel %vm1931, %v4582, %v3536
        %v4614 = vsel %vm1931, %v4583, %v3538
        %v4615 = vsel %vm1931, %v4584, %v3540
        %v4616 = vsel %vm1931, %v4585, %v3542
        %v4617 = vsel %vm1931, %v4586, %v3544
        %v4618 = vsel %vm1931, %v4587, %v3546
        %v4619 = vsel %vm1931, %v4588, %v3548
        %v4620 = vsel %vm1931, %v4589, %v3550
        %v4621 = vsel %vm1931, %v4590, %v3552
        %v4622 = vsel %vm1931, %v4591, %v3554
        %v4623 = vsel %vm1931, %v4592, %v3556
        %v4624 = vsel %vm1931, %v4593, %v3558
        %v4625 = vsel %vm1931, %v4594, %v3560
        %v4626 = vsel %vm1931, %v4595, %v3562
        %vm4627 = vcmask 457728
        %v4628 = vsel %vm4627, %v4596, %v3595
        %v4629 = vsel %vm4627, %v4597, %v3597
        %v4630 = vsel %vm4627, %v4598, %v3599
        %v4631 = vsel %vm4627, %v4599, %v3601
        %v4632 = vsel %vm4627, %v4600, %v3603
        %v4633 = vsel %vm4627, %v4601, %v3605
        %v4634 = vsel %vm4627, %v4602, %v3607
        %v4635 = vsel %vm4627, %v4603, %v3609
        %v4636 = vsel %vm4627, %v4604, %v3611
        %v4637 = vsel %vm4627, %v4605, %v3613
        %v4638 = vsel %vm4627, %v4606, %v3615
        %v4639 = vsel %vm4627, %v4607, %v3617
        %v4640 = vsel %vm4627, %v4608, %v3619
        %v4641 = vsel %vm4627, %v4609, %v3621
        %v4642 = vsel %vm4627, %v4610, %v3623
        %v4643 = vsel %vm4627, %v4611, %v3625
        %v4644 = vsel %vm4627, %v4612, %v3627
        %v4645 = vsel %vm4627, %v4613, %v3629
        %v4646 = vsel %vm4627, %v4614, %v3631
        %v4647 = vsel %vm4627, %v4615, %v3633
        %v4648 = vsel %vm4627, %v4616, %v3635
        %v4649 = vsel %vm4627, %v4617, %v3637
        %v4650 = vsel %vm4627, %v4618, %v3639
        %v4651 = vsel %vm4627, %v4619, %v3641
        %v4652 = vsel %vm4627, %v4620, %v3643
        %v4653 = vsel %vm4627, %v4621, %v3645
        %v4654 = vsel %vm4627, %v4622, %v3647
        %v4655 = vsel %vm4627, %v4623, %v3649
        %v4656 = vsel %vm4627, %v4624, %v3651
        %v4657 = vsel %vm4627, %v4625, %v3653
        %v4658 = vsel %vm4627, %v4626, %v3655
        %v4659 = vsel %vm1964, %v4628, %v3688
        %v4660 = vsel %vm1964, %v4629, %v3690
        %v4661 = vsel %vm1964, %v4630, %v3692
        %v4662 = vsel %vm1964, %v4631, %v3694
        %v4663 = vsel %vm1964, %v4632, %v3696
        %v4664 = vsel %vm1964, %v4633, %v3698
        %v4665 = vsel %vm1964, %v4634, %v3700
        %v4666 = vsel %vm1964, %v4635, %v3702
        %v4667 = vsel %vm1964, %v4636, %v3704
        %v4668 = vsel %vm1964, %v4637, %v3706
        %v4669 = vsel %vm1964, %v4638, %v3708
        %v4670 = vsel %vm1964, %v4639, %v3710
        %v4671 = vsel %vm1964, %v4640, %v3712
        %v4672 = vsel %vm1964, %v4641, %v3714
        %v4673 = vsel %vm1964, %v4642, %v3716
        %v4674 = vsel %vm1964, %v4643, %v3718
        %v4675 = vsel %vm1964, %v4644, %v3720
        %v4676 = vsel %vm1964, %v4645, %v3722
        %v4677 = vsel %vm1964, %v4646, %v3724
        %v4678 = vsel %vm1964, %v4647, %v3726
        %v4679 = vsel %vm1964, %v4648, %v3728
        %v4680 = vsel %vm1964, %v4649, %v3730
        %v4681 = vsel %vm1964, %v4650, %v3732
        %v4682 = vsel %vm1964, %v4651, %v3734
        %v4683 = vsel %vm1964, %v4652, %v3736
        %v4684 = vsel %vm1964, %v4653, %v3738
        %v4685 = vsel %vm1964, %v4654, %v3740
        %v4686 = vsel %vm1964, %v4655, %v3742
        %v4687 = vsel %vm1964, %v4656, %v3744
        %v4688 = vsel %vm1964, %v4657, %v3746
        %v4689 = vsel %vm1964, %v4658, %v3748
        %vm4690 = vcmask 588800
        %v4691 = vsel %vm4690, %v4659, %v3781
        %v4692 = vsel %vm4690, %v4660, %v3783
        %v4693 = vsel %vm4690, %v4661, %v3785
        %v4694 = vsel %vm4690, %v4662, %v3787
        %v4695 = vsel %vm4690, %v4663, %v3789
        %v4696 = vsel %vm4690, %v4664, %v3791
        %v4697 = vsel %vm4690, %v4665, %v3793
        %v4698 = vsel %vm4690, %v4666, %v3795
        %v4699 = vsel %vm4690, %v4667, %v3797
        %v4700 = vsel %vm4690, %v4668, %v3799
        %v4701 = vsel %vm4690, %v4669, %v3801
        %v4702 = vsel %vm4690, %v4670, %v3803
        %v4703 = vsel %vm4690, %v4671, %v3805
        %v4704 = vsel %vm4690, %v4672, %v3807
        %v4705 = vsel %vm4690, %v4673, %v3809
        %v4706 = vsel %vm4690, %v4674, %v3811
        %v4707 = vsel %vm4690, %v4675, %v3813
        %v4708 = vsel %vm4690, %v4676, %v3815
        %v4709 = vsel %vm4690, %v4677, %v3817
        %v4710 = vsel %vm4690, %v4678, %v3819
        %v4711 = vsel %vm4690, %v4679, %v3821
        %v4712 = vsel %vm4690, %v4680, %v3823
        %v4713 = vsel %vm4690, %v4681, %v3825
        %v4714 = vsel %vm4690, %v4682, %v3827
        %v4715 = vsel %vm4690, %v4683, %v3829
        %v4716 = vsel %vm4690, %v4684, %v3831
        %v4717 = vsel %vm4690, %v4685, %v3833
        %v4718 = vsel %vm4690, %v4686, %v3835
        %v4719 = vsel %vm4690, %v4687, %v3837
        %v4720 = vsel %vm4690, %v4688, %v3839
        %v4721 = vsel %vm4690, %v4689, %v3841
        %v4722 = vsel %vm1997, %v4691, %v3874
        %v4723 = vsel %vm1997, %v4691, %v3876
        %v4724 = vsel %vm1997, %v4692, %v3878
        %v4725 = vsel %vm1997, %v4693, %v3880
        %v4726 = vsel %vm1997, %v4694, %v3882
        %v4727 = vsel %vm1997, %v4695, %v3884
        %v4728 = vsel %vm1997, %v4696, %v3886
        %v4729 = vsel %vm1997, %v4697, %v3888
        %v4730 = vsel %vm1997, %v4698, %v3890
        %v4731 = vsel %vm1997, %v4699, %v3892
        %v4732 = vsel %vm1997, %v4700, %v3894
        %v4733 = vsel %vm1997, %v4701, %v3896
        %v4734 = vsel %vm1997, %v4702, %v3898
        %v4735 = vsel %vm1997, %v4703, %v3900
        %v4736 = vsel %vm1997, %v4704, %v3902
        %v4737 = vsel %vm1997, %v4705, %v3904
        %v4738 = vsel %vm1997, %v4706, %v3906
        %v4739 = vsel %vm1997, %v4707, %v3908
        %v4740 = vsel %vm1997, %v4708, %v3910
        %v4741 = vsel %vm1997, %v4709, %v3912
        %v4742 = vsel %vm1997, %v4710, %v3914
        %v4743 = vsel %vm1997, %v4711, %v3916
        %v4744 = vsel %vm1997, %v4712, %v3918
        %v4745 = vsel %vm1997, %v4713, %v3920
        %v4746 = vsel %vm1997, %v4714, %v3922
        %v4747 = vsel %vm1997, %v4715, %v3924
        %v4748 = vsel %vm1997, %v4716, %v3926
        %v4749 = vsel %vm1997, %v4717, %v3928
        %v4750 = vsel %vm1997, %v4718, %v3930
        %v4751 = vsel %vm1997, %v4719, %v3932
        %v4752 = vsel %vm1997, %v4720, %v3934
        %v4753 = vsel %vm1997, %v4721, %v3936
        %vm4754 = vcmask 719872
        %v4755 = vsel %vm4754, %v4722, %v3970
        %v4756 = vsel %vm4754, %v4723, %v3972
        %v4757 = vsel %vm4754, %v4724, %v3974
        %v4758 = vsel %vm4754, %v4725, %v3976
        %v4759 = vsel %vm4754, %v4726, %v3978
        %v4760 = vsel %vm4754, %v4727, %v3980
        %v4761 = vsel %vm4754, %v4728, %v3982
        %v4762 = vsel %vm4754, %v4729, %v3984
        %v4763 = vsel %vm4754, %v4730, %v3986
        %v4764 = vsel %vm4754, %v4731, %v3988
        %v4765 = vsel %vm4754, %v4732, %v3990
        %v4766 = vsel %vm4754, %v4733, %v3992
        %v4767 = vsel %vm4754, %v4734, %v3994
        %v4768 = vsel %vm4754, %v4735, %v3996
        %v4769 = vsel %vm4754, %v4736, %v3998
        %v4770 = vsel %vm4754, %v4737, %v4000
        %v4771 = vsel %vm4754, %v4738, %v4002
        %v4772 = vsel %vm4754, %v4739, %v4004
        %v4773 = vsel %vm4754, %v4740, %v4006
        %v4774 = vsel %vm4754, %v4741, %v4008
        %v4775 = vsel %vm4754, %v4742, %v4010
        %v4776 = vsel %vm4754, %v4743, %v4012
        %v4777 = vsel %vm4754, %v4744, %v4014
        %v4778 = vsel %vm4754, %v4745, %v4016
        %v4779 = vsel %vm4754, %v4746, %v4018
        %v4780 = vsel %vm4754, %v4747, %v4020
        %v4781 = vsel %vm4754, %v4748, %v4022
        %v4782 = vsel %vm4754, %v4749, %v4024
        %v4783 = vsel %vm4754, %v4750, %v4026
        %v4784 = vsel %vm4754, %v4751, %v4028
        %v4785 = vsel %vm4754, %v4752, %v4030
        %v4786 = vsel %vm4754, %v4753, %v4032
        %v4787 = vsel %vm2030, %v4755, %v4066
        %v4788 = vsel %vm2030, %v4756, %v4068
        %v4789 = vsel %vm2030, %v4757, %v4070
        %v4790 = vsel %vm2030, %v4758, %v4072
        %v4791 = vsel %vm2030, %v4759, %v4074
        %v4792 = vsel %vm2030, %v4760, %v4076
        %v4793 = vsel %vm2030, %v4761, %v4078
        %v4794 = vsel %vm2030, %v4762, %v4080
        %v4795 = vsel %vm2030, %v4763, %v4082
        %v4796 = vsel %vm2030, %v4764, %v4084
        %v4797 = vsel %vm2030, %v4765, %v4086
        %v4798 = vsel %vm2030, %v4766, %v4088
        %v4799 = vsel %vm2030, %v4767, %v4090
        %v4800 = vsel %vm2030, %v4768, %v4092
        %v4801 = vsel %vm2030, %v4769, %v4094
        %v4802 = vsel %vm2030, %v4770, %v4096
        %v4803 = vsel %vm2030, %v4771, %v4098
        %v4804 = vsel %vm2030, %v4772, %v4100
        %v4805 = vsel %vm2030, %v4773, %v4102
        %v4806 = vsel %vm2030, %v4774, %v4104
        %v4807 = vsel %vm2030, %v4775, %v4106
        %v4808 = vsel %vm2030, %v4776, %v4108
        %v4809 = vsel %vm2030, %v4777, %v4110
        %v4810 = vsel %vm2030, %v4778, %v4112
        %v4811 = vsel %vm2030, %v4779, %v4114
        %v4812 = vsel %vm2030, %v4780, %v4116
        %v4813 = vsel %vm2030, %v4781, %v4118
        %v4814 = vsel %vm2030, %v4782, %v4120
        %v4815 = vsel %vm2030, %v4783, %v4122
        %v4816 = vsel %vm2030, %v4784, %v4124
        %v4817 = vsel %vm2030, %v4785, %v4126
        %v4818 = vsel %vm2030, %v4786, %v4128
        %vm4819 = vcmask 850944
        %v4820 = vsel %vm4819, %v4787, %v4162
        %v4821 = vsel %vm4819, %v4788, %v4164
        %v4822 = vsel %vm4819, %v4789, %v4166
        %v4823 = vsel %vm4819, %v4790, %v4168
        %v4824 = vsel %vm4819, %v4791, %v4170
        %v4825 = vsel %vm4819, %v4792, %v4172
        %v4826 = vsel %vm4819, %v4793, %v4174
        %v4827 = vsel %vm4819, %v4794, %v4176
        %v4828 = vsel %vm4819, %v4795, %v4178
        %v4829 = vsel %vm4819, %v4796, %v4180
        %v4830 = vsel %vm4819, %v4797, %v4182
        %v4831 = vsel %vm4819, %v4798, %v4184
        %v4832 = vsel %vm4819, %v4799, %v4186
        %v4833 = vsel %vm4819, %v4800, %v4188
        %v4834 = vsel %vm4819, %v4801, %v4190
        %v4835 = vsel %vm4819, %v4802, %v4192
        %v4836 = vsel %vm4819, %v4803, %v4194
        %v4837 = vsel %vm4819, %v4804, %v4196
        %v4838 = vsel %vm4819, %v4805, %v4198
        %v4839 = vsel %vm4819, %v4806, %v4200
        %v4840 = vsel %vm4819, %v4807, %v4202
        %v4841 = vsel %vm4819, %v4808, %v4204
        %v4842 = vsel %vm4819, %v4809, %v4206
        %v4843 = vsel %vm4819, %v4810, %v4208
        %v4844 = vsel %vm4819, %v4811, %v4210
        %v4845 = vsel %vm4819, %v4812, %v4212
        %v4846 = vsel %vm4819, %v4813, %v4214
        %v4847 = vsel %vm4819, %v4814, %v4216
        %v4848 = vsel %vm4819, %v4815, %v4218
        %v4849 = vsel %vm4819, %v4816, %v4220
        %v4850 = vsel %vm4819, %v4817, %v4222
        %v4851 = vsel %vm4819, %v4818, %v4224
        %v4852 = vsel %vm2063, %v4820, %v4258
        %v4853 = vsel %vm2063, %v4821, %v4260
        %v4854 = vsel %vm2063, %v4822, %v4262
        %v4855 = vsel %vm2063, %v4823, %v4264
        %v4856 = vsel %vm2063, %v4824, %v4266
        %v4857 = vsel %vm2063, %v4825, %v4268
        %v4858 = vsel %vm2063, %v4826, %v4270
        %v4859 = vsel %vm2063, %v4827, %v4272
        %v4860 = vsel %vm2063, %v4828, %v4274
        %v4861 = vsel %vm2063, %v4829, %v4276
        %v4862 = vsel %vm2063, %v4830, %v4278
        %v4863 = vsel %vm2063, %v4831, %v4280
        %v4864 = vsel %vm2063, %v4832, %v4282
        %v4865 = vsel %vm2063, %v4833, %v4284
        %v4866 = vsel %vm2063, %v4834, %v4286
        %v4867 = vsel %vm2063, %v4835, %v4288
        %v4868 = vsel %vm2063, %v4836, %v4290
        %v4869 = vsel %vm2063, %v4837, %v4292
        %v4870 = vsel %vm2063, %v4838, %v4294
        %v4871 = vsel %vm2063, %v4839, %v4296
        %v4872 = vsel %vm2063, %v4840, %v4298
        %v4873 = vsel %vm2063, %v4841, %v4300
        %v4874 = vsel %vm2063, %v4842, %v4302
        %v4875 = vsel %vm2063, %v4843, %v4304
        %v4876 = vsel %vm2063, %v4844, %v4306
        %v4877 = vsel %vm2063, %v4845, %v4308
        %v4878 = vsel %vm2063, %v4846, %v4310
        %v4879 = vsel %vm2063, %v4847, %v4312
        %v4880 = vsel %vm2063, %v4848, %v4314
        %v4881 = vsel %vm2063, %v4849, %v4316
        %v4882 = vsel %vm2063, %v4850, %v4318
        %v4883 = vsel %vm2063, %v4851, %v4320
        %vm4884 = vcmask 982016
        %v4885 = vsel %vm4884, %v4852, %v4354
        %v4886 = vsel %vm4884, %v4853, %v4356
        %v4887 = vsel %vm4884, %v4854, %v4358
        %v4888 = vsel %vm4884, %v4855, %v4360
        %v4889 = vsel %vm4884, %v4856, %v4362
        %v4890 = vsel %vm4884, %v4857, %v4364
        %v4891 = vsel %vm4884, %v4858, %v4366
        %v4892 = vsel %vm4884, %v4859, %v4368
        %v4893 = vsel %vm4884, %v4860, %v4370
        %v4894 = vsel %vm4884, %v4861, %v4372
        %v4895 = vsel %vm4884, %v4862, %v4374
        %v4896 = vsel %vm4884, %v4863, %v4376
        %v4897 = vsel %vm4884, %v4864, %v4378
        %v4898 = vsel %vm4884, %v4865, %v4380
        %v4899 = vsel %vm4884, %v4866, %v4382
        %v4900 = vsel %vm4884, %v4867, %v4384
        %v4901 = vsel %vm4884, %v4868, %v4386
        %v4902 = vsel %vm4884, %v4869, %v4388
        %v4903 = vsel %vm4884, %v4870, %v4390
        %v4904 = vsel %vm4884, %v4871, %v4392
        %v4905 = vsel %vm4884, %v4872, %v4394
        %v4906 = vsel %vm4884, %v4873, %v4396
        %v4907 = vsel %vm4884, %v4874, %v4398
        %v4908 = vsel %vm4884, %v4875, %v4400
        %v4909 = vsel %vm4884, %v4876, %v4402
        %v4910 = vsel %vm4884, %v4877, %v4404
        %v4911 = vsel %vm4884, %v4878, %v4406
        %v4912 = vsel %vm4884, %v4879, %v4408
        %v4913 = vsel %vm4884, %v4880, %v4410
        %v4914 = vsel %vm4884, %v4881, %v4412
        %v4915 = vsel %vm4884, %v4882, %v4414
        %v4916 = vsel %vm4884, %v4883, %v4414
        %4917 = vrot.lane.b32.xlu0 %v2776, 8
        %v4918 = vpop.permute.xlu0 %4917
        %4919 = vrot.lane.b32.xlu0 %v2778, 8
        %v4920 = vpop.permute.xlu0 %4919
        %4921 = vrot.lane.b32.xlu0 %v2781, 8
        %v4922 = vpop.permute.xlu0 %4921
        %4923 = vrot.lane.b32.xlu0 %v2783, 8
        %v4924 = vpop.permute.xlu0 %4923
        %4925 = vrot.lane.b32.xlu0 %v2786, 8
        %v4926 = vpop.permute.xlu0 %4925
        %4927 = vrot.lane.b32.xlu0 %v2788, 8
        %v4928 = vpop.permute.xlu0 %4927
        %4929 = vrot.lane.b32.xlu0 %v2791, 8
        %v4930 = vpop.permute.xlu0 %4929
        %4931 = vrot.lane.b32.xlu0 %v2793, 8
        %v4932 = vpop.permute.xlu0 %4931
        %4933 = vrot.lane.b32.xlu0 %v2796, 8
        %v4934 = vpop.permute.xlu0 %4933
        %4935 = vrot.lane.b32.xlu0 %v2798, 8
        %v4936 = vpop.permute.xlu0 %4935
        %4937 = vrot.lane.b32.xlu0 %v2801, 8
        %v4938 = vpop.permute.xlu0 %4937
        %4939 = vrot.lane.b32.xlu0 %v2803, 8
        %v4940 = vpop.permute.xlu0 %4939
        %4941 = vrot.lane.b32.xlu0 %v2806, 8
        %v4942 = vpop.permute.xlu0 %4941
        %4943 = vrot.lane.b32.xlu0 %v2808, 8
        %v4944 = vpop.permute.xlu0 %4943
        %4945 = vrot.lane.b32.xlu0 %v2811, 8
        %v4946 = vpop.permute.xlu0 %4945
        %4947 = vrot.lane.b32.xlu0 %v2813, 8
        %v4948 = vpop.permute.xlu0 %4947
        %4949 = vrot.lane.b32.xlu0 %v2816, 8
        %v4950 = vpop.permute.xlu0 %4949
        %4951 = vrot.lane.b32.xlu0 %v2818, 8
        %v4952 = vpop.permute.xlu0 %4951
        %4953 = vrot.lane.b32.xlu0 %v2821, 8
        %v4954 = vpop.permute.xlu0 %4953
        %4955 = vrot.lane.b32.xlu0 %v2823, 8
        %v4956 = vpop.permute.xlu0 %4955
        %4957 = vrot.lane.b32.xlu0 %v2826, 8
        %v4958 = vpop.permute.xlu0 %4957
        %4959 = vrot.lane.b32.xlu0 %v2828, 8
        %v4960 = vpop.permute.xlu0 %4959
        %4961 = vrot.lane.b32.xlu0 %v2831, 8
        %v4962 = vpop.permute.xlu0 %4961
        %4963 = vrot.lane.b32.xlu0 %v2833, 8
        %v4964 = vpop.permute.xlu0 %4963
        %4965 = vrot.lane.b32.xlu0 %v2836, 8
        %v4966 = vpop.permute.xlu0 %4965
        %4967 = vrot.lane.b32.xlu0 %v2838, 8
        %v4968 = vpop.permute.xlu0 %4967
        %4969 = vrot.lane.b32.xlu0 %v2994, 8
        %v4970 = vpop.permute.xlu0 %4969
        %4971 = vrot.lane.b32.xlu0 %v2996, 8
        %v4972 = vpop.permute.xlu0 %4971
        %4973 = vrot.lane.b32.xlu0 %v3016, 8
        %v4974 = vpop.permute.xlu0 %4973
        %4975 = vrot.lane.b32.xlu0 %v3018, 8
        %v4976 = vpop.permute.xlu0 %4975
        %4977 = vrot.lane.b32.xlu0 %v1089, 8
        %v4978 = vpop.permute.xlu0 %4977
        %5010 = vrot.lane.b32.xlu0 %v2849, 16
        %v5011 = vpop.permute.xlu0 %5010
        %5012 = vrot.lane.b32.xlu0 %v2851, 16
        %v5013 = vpop.permute.xlu0 %5012
        %5014 = vrot.lane.b32.xlu0 %v2854, 16
        %v5015 = vpop.permute.xlu0 %5014
        %5016 = vrot.lane.b32.xlu0 %v2856, 16
        %v5017 = vpop.permute.xlu0 %5016
        %5018 = vrot.lane.b32.xlu0 %v2859, 16
        %v5019 = vpop.permute.xlu0 %5018
        %5020 = vrot.lane.b32.xlu0 %v2861, 16
        %v5021 = vpop.permute.xlu0 %5020
        %5022 = vrot.lane.b32.xlu0 %v2864, 16
        %v5023 = vpop.permute.xlu0 %5022
        %5024 = vrot.lane.b32.xlu0 %v2866, 16
        %v5025 = vpop.permute.xlu0 %5024
        %5026 = vrot.lane.b32.xlu0 %v2869, 16
        %v5027 = vpop.permute.xlu0 %5026
        %5028 = vrot.lane.b32.xlu0 %v2871, 16
        %v5029 = vpop.permute.xlu0 %5028
        %5030 = vrot.lane.b32.xlu0 %v2874, 16
        %v5031 = vpop.permute.xlu0 %5030
        %5032 = vrot.lane.b32.xlu0 %v2876, 16
        %v5033 = vpop.permute.xlu0 %5032
        %5034 = vrot.lane.b32.xlu0 %v2879, 16
        %v5035 = vpop.permute.xlu0 %5034
        %5036 = vrot.lane.b32.xlu0 %v2881, 16
        %v5037 = vpop.permute.xlu0 %5036
        %5038 = vrot.lane.b32.xlu0 %v2884, 16
        %v5039 = vpop.permute.xlu0 %5038
        %5040 = vrot.lane.b32.xlu0 %v2886, 16
        %v5041 = vpop.permute.xlu0 %5040
        %5042 = vrot.lane.b32.xlu0 %v2889, 16
        %v5043 = vpop.permute.xlu0 %5042
        %5044 = vrot.lane.b32.xlu0 %v2891, 16
        %v5045 = vpop.permute.xlu0 %5044
        %5046 = vrot.lane.b32.xlu0 %v2894, 16
        %v5047 = vpop.permute.xlu0 %5046
        %5048 = vrot.lane.b32.xlu0 %v2896, 16
        %v5049 = vpop.permute.xlu0 %5048
        %5050 = vrot.lane.b32.xlu0 %v2899, 16
        %v5051 = vpop.permute.xlu0 %5050
        %5052 = vrot.lane.b32.xlu0 %v2901, 16
        %v5053 = vpop.permute.xlu0 %5052
        %5054 = vrot.lane.b32.xlu0 %v2904, 16
        %v5055 = vpop.permute.xlu0 %5054
        %5056 = vrot.lane.b32.xlu0 %v2906, 16
        %v5057 = vpop.permute.xlu0 %5056
        %5058 = vrot.lane.b32.xlu0 %v2909, 16
        %v5059 = vpop.permute.xlu0 %5058
        %5060 = vrot.lane.b32.xlu0 %v2911, 16
        %v5061 = vpop.permute.xlu0 %5060
        %5062 = vrot.lane.b32.xlu0 %v2999, 16
        %v5063 = vpop.permute.xlu0 %5062
        %5064 = vrot.lane.b32.xlu0 %v3001, 16
        %v5065 = vpop.permute.xlu0 %5064
        %5066 = vrot.lane.b32.xlu0 %v3021, 16
        %v5067 = vpop.permute.xlu0 %5066
        %5068 = vrot.lane.b32.xlu0 %v3023, 16
        %v5069 = vpop.permute.xlu0 %5068
        %5070 = vrot.lane.b32.xlu0 %v2841, 16
        %v5071 = vpop.permute.xlu0 %5070
        %5103 = vrot.lane.b32.xlu0 %v2922, 24
        %v5104 = vpop.permute.xlu0 %5103
        %5105 = vrot.lane.b32.xlu0 %v2924, 24
        %v5106 = vpop.permute.xlu0 %5105
        %5107 = vrot.lane.b32.xlu0 %v2927, 24
        %v5108 = vpop.permute.xlu0 %5107
        %5109 = vrot.lane.b32.xlu0 %v2929, 24
        %v5110 = vpop.permute.xlu0 %5109
        %5111 = vrot.lane.b32.xlu0 %v2932, 24
        %v5112 = vpop.permute.xlu0 %5111
        %5113 = vrot.lane.b32.xlu0 %v2934, 24
        %v5114 = vpop.permute.xlu0 %5113
        %5115 = vrot.lane.b32.xlu0 %v2937, 24
        %v5116 = vpop.permute.xlu0 %5115
        %5117 = vrot.lane.b32.xlu0 %v2939, 24
        %v5118 = vpop.permute.xlu0 %5117
        %5119 = vrot.lane.b32.xlu0 %v2942, 24
        %v5120 = vpop.permute.xlu0 %5119
        %5121 = vrot.lane.b32.xlu0 %v2944, 24
        %v5122 = vpop.permute.xlu0 %5121
        %5123 = vrot.lane.b32.xlu0 %v2947, 24
        %v5124 = vpop.permute.xlu0 %5123
        %5125 = vrot.lane.b32.xlu0 %v2949, 24
        %v5126 = vpop.permute.xlu0 %5125
        %5127 = vrot.lane.b32.xlu0 %v2952, 24
        %v5128 = vpop.permute.xlu0 %5127
        %5129 = vrot.lane.b32.xlu0 %v2954, 24
        %v5130 = vpop.permute.xlu0 %5129
        %5131 = vrot.lane.b32.xlu0 %v2957, 24
        %v5132 = vpop.permute.xlu0 %5131
        %5133 = vrot.lane.b32.xlu0 %v2959, 24
        %v5134 = vpop.permute.xlu0 %5133
        %5135 = vrot.lane.b32.xlu0 %v2962, 24
        %v5136 = vpop.permute.xlu0 %5135
        %5137 = vrot.lane.b32.xlu0 %v2964, 24
        %v5138 = vpop.permute.xlu0 %5137
        %5139 = vrot.lane.b32.xlu0 %v2967, 24
        %v5140 = vpop.permute.xlu0 %5139
        %5141 = vrot.lane.b32.xlu0 %v2969, 24
        %v5142 = vpop.permute.xlu0 %5141
        %5143 = vrot.lane.b32.xlu0 %v2972, 24
        %v5144 = vpop.permute.xlu0 %5143
        %5145 = vrot.lane.b32.xlu0 %v2974, 24
        %v5146 = vpop.permute.xlu0 %5145
        %5147 = vrot.lane.b32.xlu0 %v2977, 24
        %v5148 = vpop.permute.xlu0 %5147
        %5149 = vrot.lane.b32.xlu0 %v2979, 24
        %v5150 = vpop.permute.xlu0 %5149
        %5151 = vrot.lane.b32.xlu0 %v2982, 24
        %v5152 = vpop.permute.xlu0 %5151
        %5153 = vrot.lane.b32.xlu0 %v2984, 24
        %v5154 = vpop.permute.xlu0 %5153
        %5155 = vrot.lane.b32.xlu0 %v3004, 24
        %v5156 = vpop.permute.xlu0 %5155
        %5157 = vrot.lane.b32.xlu0 %v3006, 24
        %v5158 = vpop.permute.xlu0 %5157
        %5159 = vrot.lane.b32.xlu0 %v3026, 24
        %v5160 = vpop.permute.xlu0 %5159
        %5161 = vrot.lane.b32.xlu0 %v3028, 24
        %v5162 = vpop.permute.xlu0 %5161
        %5163 = vrot.lane.b32.xlu0 %v2914, 24
        %v5164 = vpop.permute.xlu0 %5163
        %5196 = vrot.lane.b32.xlu0 %v2641, 32
        %v5197 = vpop.permute.xlu0 %5196
        %5198 = vrot.lane.b32.xlu0 %v2512, 32
        %v5199 = vpop.permute.xlu0 %5198
        %5200 = vrot.lane.b32.xlu0 %v2642, 32
        %v5201 = vpop.permute.xlu0 %5200
        %5202 = vrot.lane.b32.xlu0 %v2518, 32
        %v5203 = vpop.permute.xlu0 %5202
        %5204 = vrot.lane.b32.xlu0 %v2643, 32
        %v5205 = vpop.permute.xlu0 %5204
        %5206 = vrot.lane.b32.xlu0 %v2524, 32
        %v5207 = vpop.permute.xlu0 %5206
        %5208 = vrot.lane.b32.xlu0 %v2644, 32
        %v5209 = vpop.permute.xlu0 %5208
        %5210 = vrot.lane.b32.xlu0 %v2530, 32
        %v5211 = vpop.permute.xlu0 %5210
        %5212 = vrot.lane.b32.xlu0 %v2645, 32
        %v5213 = vpop.permute.xlu0 %5212
        %5214 = vrot.lane.b32.xlu0 %v2536, 32
        %v5215 = vpop.permute.xlu0 %5214
        %5216 = vrot.lane.b32.xlu0 %v2646, 32
        %v5217 = vpop.permute.xlu0 %5216
        %5218 = vrot.lane.b32.xlu0 %v2542, 32
        %v5219 = vpop.permute.xlu0 %5218
        %5220 = vrot.lane.b32.xlu0 %v2647, 32
        %v5221 = vpop.permute.xlu0 %5220
        %5222 = vrot.lane.b32.xlu0 %v2548, 32
        %v5223 = vpop.permute.xlu0 %5222
        %5224 = vrot.lane.b32.xlu0 %v2648, 32
        %v5225 = vpop.permute.xlu0 %5224
        %5226 = vrot.lane.b32.xlu0 %v2554, 32
        %v5227 = vpop.permute.xlu0 %5226
        %5228 = vrot.lane.b32.xlu0 %v2649, 32
        %v5229 = vpop.permute.xlu0 %5228
        %5230 = vrot.lane.b32.xlu0 %v2560, 32
        %v5231 = vpop.permute.xlu0 %5230
        %5232 = vrot.lane.b32.xlu0 %v2650, 32
        %v5233 = vpop.permute.xlu0 %5232
        %5234 = vrot.lane.b32.xlu0 %v2566, 32
        %v5235 = vpop.permute.xlu0 %5234
        %5236 = vrot.lane.b32.xlu0 %v2651, 32
        %v5237 = vpop.permute.xlu0 %5236
        %5238 = vrot.lane.b32.xlu0 %v2572, 32
        %v5239 = vpop.permute.xlu0 %5238
        %5240 = vrot.lane.b32.xlu0 %v2652, 32
        %v5241 = vpop.permute.xlu0 %5240
        %5242 = vrot.lane.b32.xlu0 %v2578, 32
        %v5243 = vpop.permute.xlu0 %5242
        %5244 = vrot.lane.b32.xlu0 %v2653, 32
        %v5245 = vpop.permute.xlu0 %5244
        %5246 = vrot.lane.b32.xlu0 %v2584, 32
        %v5247 = vpop.permute.xlu0 %5246
        %5248 = vrot.lane.b32.xlu0 %v2654, 32
        %v5249 = vpop.permute.xlu0 %5248
        %5250 = vrot.lane.b32.xlu0 %v2590, 32
        %v5251 = vpop.permute.xlu0 %5250
        %5252 = vrot.lane.b32.xlu0 0.0, 32
        %v5253 = vpop.permute.xlu0 %5252
        %5283 = vrot.lane.b32.xlu0 %v2711, 40
        %v5284 = vpop.permute.xlu0 %5283
        %5285 = vrot.lane.b32.xlu0 %v2713, 40
        %v5286 = vpop.permute.xlu0 %5285
        %5287 = vrot.lane.b32.xlu0 %v2716, 40
        %v5288 = vpop.permute.xlu0 %5287
        %5289 = vrot.lane.b32.xlu0 %v2718, 40
        %v5290 = vpop.permute.xlu0 %5289
        %5291 = vrot.lane.b32.xlu0 %v2721, 40
        %v5292 = vpop.permute.xlu0 %5291
        %5293 = vrot.lane.b32.xlu0 %v2723, 40
        %v5294 = vpop.permute.xlu0 %5293
        %5295 = vrot.lane.b32.xlu0 %v2726, 40
        %v5296 = vpop.permute.xlu0 %5295
        %5297 = vrot.lane.b32.xlu0 %v2728, 40
        %v5298 = vpop.permute.xlu0 %5297
        %5299 = vrot.lane.b32.xlu0 %v2731, 40
        %v5300 = vpop.permute.xlu0 %5299
        %5301 = vrot.lane.b32.xlu0 %v2733, 40
        %v5302 = vpop.permute.xlu0 %5301
        %5303 = vrot.lane.b32.xlu0 %v2736, 40
        %v5304 = vpop.permute.xlu0 %5303
        %5305 = vrot.lane.b32.xlu0 %v2738, 40
        %v5306 = vpop.permute.xlu0 %5305
        %5307 = vrot.lane.b32.xlu0 %v2741, 40
        %v5308 = vpop.permute.xlu0 %5307
        %5309 = vrot.lane.b32.xlu0 %v2743, 40
        %v5310 = vpop.permute.xlu0 %5309
        %5311 = vrot.lane.b32.xlu0 %v2746, 40
        %v5312 = vpop.permute.xlu0 %5311
        %5313 = vrot.lane.b32.xlu0 %v2748, 40
        %v5314 = vpop.permute.xlu0 %5313
        %5315 = vrot.lane.b32.xlu0 %v2751, 40
        %v5316 = vpop.permute.xlu0 %5315
        %5317 = vrot.lane.b32.xlu0 %v2753, 40
        %v5318 = vpop.permute.xlu0 %5317
        %5319 = vrot.lane.b32.xlu0 %v2756, 40
        %v5320 = vpop.permute.xlu0 %5319
        %5321 = vrot.lane.b32.xlu0 %v2758, 40
        %v5322 = vpop.permute.xlu0 %5321
        %5323 = vrot.lane.b32.xlu0 %v2761, 40
        %v5324 = vpop.permute.xlu0 %5323
        %5325 = vrot.lane.b32.xlu0 %v2763, 40
        %v5326 = vpop.permute.xlu0 %5325
        %5327 = vrot.lane.b32.xlu0 %v2766, 40
        %v5328 = vpop.permute.xlu0 %5327
        %5329 = vrot.lane.b32.xlu0 %v2768, 40
        %v5330 = vpop.permute.xlu0 %5329
        %5331 = vrot.lane.b32.xlu0 %v2989, 40
        %v5332 = vpop.permute.xlu0 %5331
        %5333 = vrot.lane.b32.xlu0 %v2991, 40
        %v5334 = vpop.permute.xlu0 %5333
        %5335 = vrot.lane.b32.xlu0 %v3011, 40
        %v5336 = vpop.permute.xlu0 %5335
        %5337 = vrot.lane.b32.xlu0 %v3013, 40
        %v5338 = vpop.permute.xlu0 %5337
        %5339 = vrot.lane.b32.xlu0 %v1011, 40
        %v5340 = vpop.permute.xlu0 %5339
        %5370 = vrot.lane.b32.xlu0 %v2781, 48
        %v5371 = vpop.permute.xlu0 %5370
        %5372 = vrot.lane.b32.xlu0 %v2783, 48
        %v5373 = vpop.permute.xlu0 %5372
        %5374 = vrot.lane.b32.xlu0 %v2786, 48
        %v5375 = vpop.permute.xlu0 %5374
        %5376 = vrot.lane.b32.xlu0 %v2788, 48
        %v5377 = vpop.permute.xlu0 %5376
        %5378 = vrot.lane.b32.xlu0 %v2791, 48
        %v5379 = vpop.permute.xlu0 %5378
        %5380 = vrot.lane.b32.xlu0 %v2793, 48
        %v5381 = vpop.permute.xlu0 %5380
        %5382 = vrot.lane.b32.xlu0 %v2796, 48
        %v5383 = vpop.permute.xlu0 %5382
        %5384 = vrot.lane.b32.xlu0 %v2798, 48
        %v5385 = vpop.permute.xlu0 %5384
        %5386 = vrot.lane.b32.xlu0 %v2801, 48
        %v5387 = vpop.permute.xlu0 %5386
        %5388 = vrot.lane.b32.xlu0 %v2803, 48
        %v5389 = vpop.permute.xlu0 %5388
        %5390 = vrot.lane.b32.xlu0 %v2806, 48
        %v5391 = vpop.permute.xlu0 %5390
        %5392 = vrot.lane.b32.xlu0 %v2808, 48
        %v5393 = vpop.permute.xlu0 %5392
        %5394 = vrot.lane.b32.xlu0 %v2811, 48
        %v5395 = vpop.permute.xlu0 %5394
        %5396 = vrot.lane.b32.xlu0 %v2813, 48
        %v5397 = vpop.permute.xlu0 %5396
        %5398 = vrot.lane.b32.xlu0 %v2816, 48
        %v5399 = vpop.permute.xlu0 %5398
        %5400 = vrot.lane.b32.xlu0 %v2818, 48
        %v5401 = vpop.permute.xlu0 %5400
        %5402 = vrot.lane.b32.xlu0 %v2821, 48
        %v5403 = vpop.permute.xlu0 %5402
        %5404 = vrot.lane.b32.xlu0 %v2823, 48
        %v5405 = vpop.permute.xlu0 %5404
        %5406 = vrot.lane.b32.xlu0 %v2826, 48
        %v5407 = vpop.permute.xlu0 %5406
        %5408 = vrot.lane.b32.xlu0 %v2828, 48
        %v5409 = vpop.permute.xlu0 %5408
        %5410 = vrot.lane.b32.xlu0 %v2831, 48
        %v5411 = vpop.permute.xlu0 %5410
        %5412 = vrot.lane.b32.xlu0 %v2833, 48
        %v5413 = vpop.permute.xlu0 %5412
        %5414 = vrot.lane.b32.xlu0 %v2836, 48
        %v5415 = vpop.permute.xlu0 %5414
        %5416 = vrot.lane.b32.xlu0 %v2838, 48
        %v5417 = vpop.permute.xlu0 %5416
        %5418 = vrot.lane.b32.xlu0 %v2994, 48
        %v5419 = vpop.permute.xlu0 %5418
        %5420 = vrot.lane.b32.xlu0 %v2996, 48
        %v5421 = vpop.permute.xlu0 %5420
        %5422 = vrot.lane.b32.xlu0 %v3016, 48
        %v5423 = vpop.permute.xlu0 %5422
        %5424 = vrot.lane.b32.xlu0 %v3018, 48
        %v5425 = vpop.permute.xlu0 %5424
        %5426 = vrot.lane.b32.xlu0 %v1089, 48
        %v5427 = vpop.permute.xlu0 %5426
        %5457 = vrot.lane.b32.xlu0 %v2854, 56
        %v5458 = vpop.permute.xlu0 %5457
        %5459 = vrot.lane.b32.xlu0 %v2856, 56
        %v5460 = vpop.permute.xlu0 %5459
        %5461 = vrot.lane.b32.xlu0 %v2859, 56
        %v5462 = vpop.permute.xlu0 %5461
        %5463 = vrot.lane.b32.xlu0 %v2861, 56
        %v5464 = vpop.permute.xlu0 %5463
        %5465 = vrot.lane.b32.xlu0 %v2864, 56
        %v5466 = vpop.permute.xlu0 %5465
        %5467 = vrot.lane.b32.xlu0 %v2866, 56
        %v5468 = vpop.permute.xlu0 %5467
        %5469 = vrot.lane.b32.xlu0 %v2869, 56
        %v5470 = vpop.permute.xlu0 %5469
        %5471 = vrot.lane.b32.xlu0 %v2871, 56
        %v5472 = vpop.permute.xlu0 %5471
        %5473 = vrot.lane.b32.xlu0 %v2874, 56
        %v5474 = vpop.permute.xlu0 %5473
        %5475 = vrot.lane.b32.xlu0 %v2876, 56
        %v5476 = vpop.permute.xlu0 %5475
        %5477 = vrot.lane.b32.xlu0 %v2879, 56
        %v5478 = vpop.permute.xlu0 %5477
        %5479 = vrot.lane.b32.xlu0 %v2881, 56
        %v5480 = vpop.permute.xlu0 %5479
        %5481 = vrot.lane.b32.xlu0 %v2884, 56
        %v5482 = vpop.permute.xlu0 %5481
        %5483 = vrot.lane.b32.xlu0 %v2886, 56
        %v5484 = vpop.permute.xlu0 %5483
        %5485 = vrot.lane.b32.xlu0 %v2889, 56
        %v5486 = vpop.permute.xlu0 %5485
        %5487 = vrot.lane.b32.xlu0 %v2891, 56
        %v5488 = vpop.permute.xlu0 %5487
        %5489 = vrot.lane.b32.xlu0 %v2894, 56
        %v5490 = vpop.permute.xlu0 %5489
        %5491 = vrot.lane.b32.xlu0 %v2896, 56
        %v5492 = vpop.permute.xlu0 %5491
        %5493 = vrot.lane.b32.xlu0 %v2899, 56
        %v5494 = vpop.permute.xlu0 %5493
        %5495 = vrot.lane.b32.xlu0 %v2901, 56
        %v5496 = vpop.permute.xlu0 %5495
        %5497 = vrot.lane.b32.xlu0 %v2904, 56
        %v5498 = vpop.permute.xlu0 %5497
        %5499 = vrot.lane.b32.xlu0 %v2906, 56
        %v5500 = vpop.permute.xlu0 %5499
        %5501 = vrot.lane.b32.xlu0 %v2909, 56
        %v5502 = vpop.permute.xlu0 %5501
        %5503 = vrot.lane.b32.xlu0 %v2911, 56
        %v5504 = vpop.permute.xlu0 %5503
        %5505 = vrot.lane.b32.xlu0 %v2999, 56
        %v5506 = vpop.permute.xlu0 %5505
        %5507 = vrot.lane.b32.xlu0 %v3001, 56
        %v5508 = vpop.permute.xlu0 %5507
        %5509 = vrot.lane.b32.xlu0 %v3021, 56
        %v5510 = vpop.permute.xlu0 %5509
        %5511 = vrot.lane.b32.xlu0 %v3023, 56
        %v5512 = vpop.permute.xlu0 %5511
        %5513 = vrot.lane.b32.xlu0 %v2841, 56
        %v5514 = vpop.permute.xlu0 %5513
        %5544 = vrot.lane.b32.xlu0 %v2927, 64
        %v5545 = vpop.permute.xlu0 %5544
        %5546 = vrot.lane.b32.xlu0 %v2929, 64
        %v5547 = vpop.permute.xlu0 %5546
        %5548 = vrot.lane.b32.xlu0 %v2932, 64
        %v5549 = vpop.permute.xlu0 %5548
        %5550 = vrot.lane.b32.xlu0 %v2934, 64
        %v5551 = vpop.permute.xlu0 %5550
        %5552 = vrot.lane.b32.xlu0 %v2937, 64
        %v5553 = vpop.permute.xlu0 %5552
        %5554 = vrot.lane.b32.xlu0 %v2939, 64
        %v5555 = vpop.permute.xlu0 %5554
        %5556 = vrot.lane.b32.xlu0 %v2942, 64
        %v5557 = vpop.permute.xlu0 %5556
        %5558 = vrot.lane.b32.xlu0 %v2944, 64
        %v5559 = vpop.permute.xlu0 %5558
        %5560 = vrot.lane.b32.xlu0 %v2947, 64
        %v5561 = vpop.permute.xlu0 %5560
        %5562 = vrot.lane.b32.xlu0 %v2949, 64
        %v5563 = vpop.permute.xlu0 %5562
        %5564 = vrot.lane.b32.xlu0 %v2952, 64
        %v5565 = vpop.permute.xlu0 %5564
        %5566 = vrot.lane.b32.xlu0 %v2954, 64
        %v5567 = vpop.permute.xlu0 %5566
        %5568 = vrot.lane.b32.xlu0 %v2957, 64
        %v5569 = vpop.permute.xlu0 %5568
        %5570 = vrot.lane.b32.xlu0 %v2959, 64
        %v5571 = vpop.permute.xlu0 %5570
        %5572 = vrot.lane.b32.xlu0 %v2962, 64
        %v5573 = vpop.permute.xlu0 %5572
        %5574 = vrot.lane.b32.xlu0 %v2964, 64
        %v5575 = vpop.permute.xlu0 %5574
        %5576 = vrot.lane.b32.xlu0 %v2967, 64
        %v5577 = vpop.permute.xlu0 %5576
        %5578 = vrot.lane.b32.xlu0 %v2969, 64
        %v5579 = vpop.permute.xlu0 %5578
        %5580 = vrot.lane.b32.xlu0 %v2972, 64
        %v5581 = vpop.permute.xlu0 %5580
        %5582 = vrot.lane.b32.xlu0 %v2974, 64
        %v5583 = vpop.permute.xlu0 %5582
        %5584 = vrot.lane.b32.xlu0 %v2977, 64
        %v5585 = vpop.permute.xlu0 %5584
        %5586 = vrot.lane.b32.xlu0 %v2979, 64
        %v5587 = vpop.permute.xlu0 %5586
        %5588 = vrot.lane.b32.xlu0 %v2982, 64
        %v5589 = vpop.permute.xlu0 %5588
        %5590 = vrot.lane.b32.xlu0 %v2984, 64
        %v5591 = vpop.permute.xlu0 %5590
        %5592 = vrot.lane.b32.xlu0 %v3004, 64
        %v5593 = vpop.permute.xlu0 %5592
        %5594 = vrot.lane.b32.xlu0 %v3006, 64
        %v5595 = vpop.permute.xlu0 %5594
        %5596 = vrot.lane.b32.xlu0 %v3026, 64
        %v5597 = vpop.permute.xlu0 %5596
        %5598 = vrot.lane.b32.xlu0 %v3028, 64
        %v5599 = vpop.permute.xlu0 %5598
        %5600 = vrot.lane.b32.xlu0 %v2914, 64
        %v5601 = vpop.permute.xlu0 %5600
        %v5631 = vsel %vm4446, %v2706, %v4918
        %v5632 = vsel %vm4446, %v2708, %v4920
        %v5633 = vsel %vm4446, %v2711, %v4922
        %v5634 = vsel %vm4446, %v2713, %v4924
        %v5635 = vsel %vm4446, %v2716, %v4926
        %v5636 = vsel %vm4446, %v2718, %v4928
        %v5637 = vsel %vm4446, %v2721, %v4930
        %v5638 = vsel %vm4446, %v2723, %v4932
        %v5639 = vsel %vm4446, %v2726, %v4934
        %v5640 = vsel %vm4446, %v2728, %v4936
        %v5641 = vsel %vm4446, %v2731, %v4938
        %v5642 = vsel %vm4446, %v2733, %v4940
        %v5643 = vsel %vm4446, %v2736, %v4942
        %v5644 = vsel %vm4446, %v2738, %v4944
        %v5645 = vsel %vm4446, %v2741, %v4946
        %v5646 = vsel %vm4446, %v2743, %v4948
        %v5647 = vsel %vm4446, %v2746, %v4950
        %v5648 = vsel %vm4446, %v2748, %v4952
        %v5649 = vsel %vm4446, %v2751, %v4954
        %v5650 = vsel %vm4446, %v2753, %v4956
        %v5651 = vsel %vm4446, %v2756, %v4958
        %v5652 = vsel %vm4446, %v2758, %v4960
        %v5653 = vsel %vm4446, %v2761, %v4962
        %v5654 = vsel %vm4446, %v2763, %v4964
        %v5655 = vsel %vm4446, %v2766, %v4966
        %v5656 = vsel %vm4446, %v2768, %v4968
        %v5657 = vsel %vm4446, %v2989, %v4970
        %v5658 = vsel %vm4446, %v2991, %v4972
        %v5659 = vsel %vm4446, %v3011, %v4974
        %v5660 = vsel %vm4446, %v3013, %v4976
        %v5661 = vsel %vm4446, %v1011, %v4978
        %v5662 = vsel %vm480, %v5631, %v5011
        %v5663 = vsel %vm480, %v5632, %v5013
        %v5664 = vsel %vm480, %v5633, %v5015
        %v5665 = vsel %vm480, %v5634, %v5017
        %v5666 = vsel %vm480, %v5635, %v5019
        %v5667 = vsel %vm480, %v5636, %v5021
        %v5668 = vsel %vm480, %v5637, %v5023
        %v5669 = vsel %vm480, %v5638, %v5025
        %v5670 = vsel %vm480, %v5639, %v5027
        %v5671 = vsel %vm480, %v5640, %v5029
        %v5672 = vsel %vm480, %v5641, %v5031
        %v5673 = vsel %vm480, %v5642, %v5033
        %v5674 = vsel %vm480, %v5643, %v5035
        %v5675 = vsel %vm480, %v5644, %v5037
        %v5676 = vsel %vm480, %v5645, %v5039
        %v5677 = vsel %vm480, %v5646, %v5041
        %v5678 = vsel %vm480, %v5647, %v5043
        %v5679 = vsel %vm480, %v5648, %v5045
        %v5680 = vsel %vm480, %v5649, %v5047
        %v5681 = vsel %vm480, %v5650, %v5049
        %v5682 = vsel %vm480, %v5651, %v5051
        %v5683 = vsel %vm480, %v5652, %v5053
        %v5684 = vsel %vm480, %v5653, %v5055
        %v5685 = vsel %vm480, %v5654, %v5057
        %v5686 = vsel %vm480, %v5655, %v5059
        %v5687 = vsel %vm480, %v5656, %v5061
        %v5688 = vsel %vm480, %v5657, %v5063
        %v5689 = vsel %vm480, %v5658, %v5065
        %v5690 = vsel %vm480, %v5659, %v5067
        %v5691 = vsel %vm480, %v5660, %v5069
        %v5692 = vsel %vm480, %v5661, %v5071
        %v5693 = vsel %vm4505, %v5662, %v5104
        %v5694 = vsel %vm4505, %v5663, %v5106
        %v5695 = vsel %vm4505, %v5664, %v5108
        %v5696 = vsel %vm4505, %v5665, %v5110
        %v5697 = vsel %vm4505, %v5666, %v5112
        %v5698 = vsel %vm4505, %v5667, %v5114
        %v5699 = vsel %vm4505, %v5668, %v5116
        %v5700 = vsel %vm4505, %v5669, %v5118
        %v5701 = vsel %vm4505, %v5670, %v5120
        %v5702 = vsel %vm4505, %v5671, %v5122
        %v5703 = vsel %vm4505, %v5672, %v5124
        %v5704 = vsel %vm4505, %v5673, %v5126
        %v5705 = vsel %vm4505, %v5674, %v5128
        %v5706 = vsel %vm4505, %v5675, %v5130
        %v5707 = vsel %vm4505, %v5676, %v5132
        %v5708 = vsel %vm4505, %v5677, %v5134
        %v5709 = vsel %vm4505, %v5678, %v5136
        %v5710 = vsel %vm4505, %v5679, %v5138
        %v5711 = vsel %vm4505, %v5680, %v5140
        %v5712 = vsel %vm4505, %v5681, %v5142
        %v5713 = vsel %vm4505, %v5682, %v5144
        %v5714 = vsel %vm4505, %v5683, %v5146
        %v5715 = vsel %vm4505, %v5684, %v5148
        %v5716 = vsel %vm4505, %v5685, %v5150
        %v5717 = vsel %vm4505, %v5686, %v5152
        %v5718 = vsel %vm4505, %v5687, %v5154
        %v5719 = vsel %vm4505, %v5688, %v5156
        %v5720 = vsel %vm4505, %v5689, %v5158
        %v5721 = vsel %vm4505, %v5690, %v5160
        %v5722 = vsel %vm4505, %v5691, %v5162
        %v5723 = vsel %vm4505, %v5692, %v5164
        %v5724 = vsel %vm1899, %v5693, %v5197
        %v5725 = vsel %vm1899, %v5694, %v5199
        %v5726 = vsel %vm1899, %v5695, %v5201
        %v5727 = vsel %vm1899, %v5696, %v5203
        %v5728 = vsel %vm1899, %v5697, %v5205
        %v5729 = vsel %vm1899, %v5698, %v5207
        %v5730 = vsel %vm1899, %v5699, %v5209
        %v5731 = vsel %vm1899, %v5700, %v5211
        %v5732 = vsel %vm1899, %v5701, %v5213
        %v5733 = vsel %vm1899, %v5702, %v5215
        %v5734 = vsel %vm1899, %v5703, %v5217
        %v5735 = vsel %vm1899, %v5704, %v5219
        %v5736 = vsel %vm1899, %v5705, %v5221
        %v5737 = vsel %vm1899, %v5706, %v5223
        %v5738 = vsel %vm1899, %v5707, %v5225
        %v5739 = vsel %vm1899, %v5708, %v5227
        %v5740 = vsel %vm1899, %v5709, %v5229
        %v5741 = vsel %vm1899, %v5710, %v5231
        %v5742 = vsel %vm1899, %v5711, %v5233
        %v5743 = vsel %vm1899, %v5712, %v5235
        %v5744 = vsel %vm1899, %v5713, %v5237
        %v5745 = vsel %vm1899, %v5714, %v5239
        %v5746 = vsel %vm1899, %v5715, %v5241
        %v5747 = vsel %vm1899, %v5716, %v5243
        %v5748 = vsel %vm1899, %v5717, %v5245
        %v5749 = vsel %vm1899, %v5718, %v5247
        %v5750 = vsel %vm1899, %v5719, %v5249
        %v5751 = vsel %vm1899, %v5720, %v5251
        %v5752 = vsel %vm1899, %v5721, %v5253
        %v5753 = vsel %vm1899, %v5722, %v5253
        %v5754 = vsel %vm1899, %v5723, %v5253
        %v5755 = vsel %vm4564, %v5724, %v5284
        %v5756 = vsel %vm4564, %v5725, %v5286
        %v5757 = vsel %vm4564, %v5726, %v5288
        %v5758 = vsel %vm4564, %v5727, %v5290
        %v5759 = vsel %vm4564, %v5728, %v5292
        %v5760 = vsel %vm4564, %v5729, %v5294
        %v5761 = vsel %vm4564, %v5730, %v5296
        %v5762 = vsel %vm4564, %v5731, %v5298
        %v5763 = vsel %vm4564, %v5732, %v5300
        %v5764 = vsel %vm4564, %v5733, %v5302
        %v5765 = vsel %vm4564, %v5734, %v5304
        %v5766 = vsel %vm4564, %v5735, %v5306
        %v5767 = vsel %vm4564, %v5736, %v5308
        %v5768 = vsel %vm4564, %v5737, %v5310
        %v5769 = vsel %vm4564, %v5738, %v5312
        %v5770 = vsel %vm4564, %v5739, %v5314
        %v5771 = vsel %vm4564, %v5740, %v5316
        %v5772 = vsel %vm4564, %v5741, %v5318
        %v5773 = vsel %vm4564, %v5742, %v5320
        %v5774 = vsel %vm4564, %v5743, %v5322
        %v5775 = vsel %vm4564, %v5744, %v5324
        %v5776 = vsel %vm4564, %v5745, %v5326
        %v5777 = vsel %vm4564, %v5746, %v5328
        %v5778 = vsel %vm4564, %v5747, %v5330
        %v5779 = vsel %vm4564, %v5748, %v5332
        %v5780 = vsel %vm4564, %v5749, %v5334
        %v5781 = vsel %vm4564, %v5750, %v5336
        %v5782 = vsel %vm4564, %v5751, %v5338
        %v5783 = vsel %vm4564, %v5752, %v5340
        %v5784 = vsel %vm4564, %v5753, %v5340
        %v5785 = vsel %vm4564, %v5754, %v5340
        %v5786 = vsel %vm1931, %v5755, %v5371
        %v5787 = vsel %vm1931, %v5756, %v5373
        %v5788 = vsel %vm1931, %v5757, %v5375
        %v5789 = vsel %vm1931, %v5758, %v5377
        %v5790 = vsel %vm1931, %v5759, %v5379
        %v5791 = vsel %vm1931, %v5760, %v5381
        %v5792 = vsel %vm1931, %v5761, %v5383
        %v5793 = vsel %vm1931, %v5762, %v5385
        %v5794 = vsel %vm1931, %v5763, %v5387
        %v5795 = vsel %vm1931, %v5764, %v5389
        %v5796 = vsel %vm1931, %v5765, %v5391
        %v5797 = vsel %vm1931, %v5766, %v5393
        %v5798 = vsel %vm1931, %v5767, %v5395
        %v5799 = vsel %vm1931, %v5768, %v5397
        %v5800 = vsel %vm1931, %v5769, %v5399
        %v5801 = vsel %vm1931, %v5770, %v5401
        %v5802 = vsel %vm1931, %v5771, %v5403
        %v5803 = vsel %vm1931, %v5772, %v5405
        %v5804 = vsel %vm1931, %v5773, %v5407
        %v5805 = vsel %vm1931, %v5774, %v5409
        %v5806 = vsel %vm1931, %v5775, %v5411
        %v5807 = vsel %vm1931, %v5776, %v5413
        %v5808 = vsel %vm1931, %v5777, %v5415
        %v5809 = vsel %vm1931, %v5778, %v5417
        %v5810 = vsel %vm1931, %v5779, %v5419
        %v5811 = vsel %vm1931, %v5780, %v5421
        %v5812 = vsel %vm1931, %v5781, %v5423
        %v5813 = vsel %vm1931, %v5782, %v5425
        %v5814 = vsel %vm1931, %v5783, %v5427
        %v5815 = vsel %vm1931, %v5784, %v5427
        %v5816 = vsel %vm1931, %v5785, %v5427
        %v5817 = vsel %vm4627, %v5786, %v5458
        %v5818 = vsel %vm4627, %v5787, %v5460
        %v5819 = vsel %vm4627, %v5788, %v5462
        %v5820 = vsel %vm4627, %v5789, %v5464
        %v5821 = vsel %vm4627, %v5790, %v5466
        %v5822 = vsel %vm4627, %v5791, %v5468
        %v5823 = vsel %vm4627, %v5792, %v5470
        %v5824 = vsel %vm4627, %v5793, %v5472
        %v5825 = vsel %vm4627, %v5794, %v5474
        %v5826 = vsel %vm4627, %v5795, %v5476
        %v5827 = vsel %vm4627, %v5796, %v5478
        %v5828 = vsel %vm4627, %v5797, %v5480
        %v5829 = vsel %vm4627, %v5798, %v5482
        %v5830 = vsel %vm4627, %v5799, %v5484
        %v5831 = vsel %vm4627, %v5800, %v5486
        %v5832 = vsel %vm4627, %v5801, %v5488
        %v5833 = vsel %vm4627, %v5802, %v5490
        %v5834 = vsel %vm4627, %v5803, %v5492
        %v5835 = vsel %vm4627, %v5804, %v5494
        %v5836 = vsel %vm4627, %v5805, %v5496
        %v5837 = vsel %vm4627, %v5806, %v5498
        %v5838 = vsel %vm4627, %v5807, %v5500
        %v5839 = vsel %vm4627, %v5808, %v5502
        %v5840 = vsel %vm4627, %v5809, %v5504
        %v5841 = vsel %vm4627, %v5810, %v5506
        %v5842 = vsel %vm4627, %v5811, %v5508
        %v5843 = vsel %vm4627, %v5812, %v5510
        %v5844 = vsel %vm4627, %v5813, %v5512
        %v5845 = vsel %vm4627, %v5814, %v5514
        %v5846 = vsel %vm4627, %v5815, %v5514
        %v5847 = vsel %vm4627, %v5816, %v5514
        %v5848 = vsel %vm1964, %v5817, %v5545
        %v5849 = vsel %vm1964, %v5818, %v5547
        %v5850 = vsel %vm1964, %v5819, %v5549
        %v5851 = vsel %vm1964, %v5820, %v5551
        %v5852 = vsel %vm1964, %v5821, %v5553
        %v5853 = vsel %vm1964, %v5822, %v5555
        %v5854 = vsel %vm1964, %v5823, %v5557
        %v5855 = vsel %vm1964, %v5824, %v5559
        %v5856 = vsel %vm1964, %v5825, %v5561
        %v5857 = vsel %vm1964, %v5826, %v5563
        %v5858 = vsel %vm1964, %v5827, %v5565
        %v5859 = vsel %vm1964, %v5828, %v5567
        %v5860 = vsel %vm1964, %v5829, %v5569
        %v5861 = vsel %vm1964, %v5830, %v5571
        %v5862 = vsel %vm1964, %v5831, %v5573
        %v5863 = vsel %vm1964, %v5832, %v5575
        %v5864 = vsel %vm1964, %v5833, %v5577
        %v5865 = vsel %vm1964, %v5834, %v5579
        %v5866 = vsel %vm1964, %v5835, %v5581
        %v5867 = vsel %vm1964, %v5836, %v5583
        %v5868 = vsel %vm1964, %v5837, %v5585
        %v5869 = vsel %vm1964, %v5838, %v5587
        %v5870 = vsel %vm1964, %v5839, %v5589
        %v5871 = vsel %vm1964, %v5840, %v5591
        %v5872 = vsel %vm1964, %v5841, %v5593
        %v5873 = vsel %vm1964, %v5842, %v5595
        %v5874 = vsel %vm1964, %v5843, %v5597
        %v5875 = vsel %vm1964, %v5844, %v5599
        %v5876 = vsel %vm1964, %v5845, %v5601
        %v5877 = vsel %vm1964, %v5846, %v5601
        %v5878 = vsel %vm1964, %v5847, %v5601
        %v5879 = vpack.c.bf16 %v4886, %v4885
        %v5880 = vpack.c.bf16 %v5849, %v5848
        %v5881 = vpack.c.bf16 %v4888, %v4887
        %v5882 = vpack.c.bf16 %v5851, %v5850
        %v5883 = vpack.c.bf16 %v4890, %v4889
        %v5884 = vpack.c.bf16 %v5853, %v5852
        %v5885 = vpack.c.bf16 %v4892, %v4891
        %v5886 = vpack.c.bf16 %v5855, %v5854
        %v5887 = vpack.c.bf16 %v4894, %v4893
        %v5888 = vpack.c.bf16 %v5857, %v5856
        %v5889 = vpack.c.bf16 %v4896, %v4895
        %v5890 = vpack.c.bf16 %v5859, %v5858
        %v5891 = vpack.c.bf16 %v4898, %v4897
        %v5892 = vpack.c.bf16 %v5861, %v5860
        %v5893 = vpack.c.bf16 %v4900, %v4899
        %v5894 = vpack.c.bf16 %v5863, %v5862
        %v5895 = vpack.c.bf16 %v4902, %v4901
        %v5896 = vpack.c.bf16 %v5865, %v5864
        %v5897 = vpack.c.bf16 %v4904, %v4903
        %v5898 = vpack.c.bf16 %v5867, %v5866
        %v5899 = vpack.c.bf16 %v4906, %v4905
        %v5900 = vpack.c.bf16 %v5869, %v5868
        %v5901 = vpack.c.bf16 %v4908, %v4907
        %v5902 = vpack.c.bf16 %v5871, %v5870
        %v5903 = vpack.c.bf16 %v4910, %v4909
        %v5904 = vpack.c.bf16 %v5873, %v5872
        %v5905 = vpack.c.bf16 %v4912, %v4911
        %v5906 = vpack.c.bf16 %v5875, %v5874
        %v5907 = vpack.c.bf16 %v4914, %v4913
        %v5908 = vpack.c.bf16 %v5877, %v5876
        %v5909 = vpack.c.bf16 %v4916, %v4915
        %v5910 = vpack.c.bf16 %v5878, %v5878
        %v5911 = vld [vmem:[%s5] sm:$0xf]
        %v5912 = vld [vmem:[%s5 + $0x4] sm:$0xf]
        %v5913 = vld [vmem:[%s5 + $0x8] sm:$0xf]
        %v5914 = vld [vmem:[%s5 + $0xc] sm:$0xf]
        %v5915 = vld [vmem:[%s5 + $0x10] sm:$0xf]
        %v5916 = vld [vmem:[%s5 + $0x14] sm:$0xf]
        %v5917 = vld [vmem:[%s5 + $0x18] sm:$0xf]
        %v5918 = vld [vmem:[%s5 + $0x1c] sm:$0xf]
        %v5919 = vld [vmem:[%s5 + $0x20] sm:$0xf]
        %v5920 = vld [vmem:[%s5 + $0x24] sm:$0xf]
        %v5921 = vld [vmem:[%s5 + $0x28] sm:$0xf]
        %v5922 = vld [vmem:[%s5 + $0x2c] sm:$0xf]
        %v5923 = vld [vmem:[%s5 + $0x30] sm:$0xf]
        %v5924 = vld [vmem:[%s5 + $0x34] sm:$0xf]
        %v5925 = vld [vmem:[%s5 + $0x38] sm:$0xf]
        %v5926 = vld [vmem:[%s5 + $0x3c] sm:$0xf]
        %v5927 = vld [vmem:[%s5 + $0x40] sm:$0xf]
        %v5928 = vld [vmem:[%s5 + $0x44] sm:$0xf]
        %v5929 = vld [vmem:[%s5 + $0x48] sm:$0xf]
        %v5930 = vld [vmem:[%s5 + $0x4c] sm:$0xf]
        %v5931 = vld [vmem:[%s5 + $0x50] sm:$0xf]
        %v5932 = vld [vmem:[%s5 + $0x54] sm:$0xf]
        %v5933 = vld [vmem:[%s5 + $0x58] sm:$0xf]
        %v5934 = vld [vmem:[%s5 + $0x5c] sm:$0xf]
        %v5935 = vld [vmem:[%s5 + $0x60] sm:$0xf]
        %v5936 = vld [vmem:[%s6] sm:$0x1]
        %v5938 = vlaneseq
        %v5939 = vshrl.u32 %v5938, 7
        %v5940 = vsub.s32 0, %v5939
        %v5941 = vrot.slane %v5936, %v5940
        %v5968 = vunpack.c.l.b16 %v5911
        %v5969 = vunpack.c.l.b16 %v5912
        %v5970 = vunpack.c.l.b16 %v5913
        %v5971 = vunpack.c.l.b16 %v5914
        %v5972 = vunpack.c.l.b16 %v5915
        %v5973 = vunpack.c.l.b16 %v5916
        %v5974 = vunpack.c.l.b16 %v5917
        %v5975 = vunpack.c.l.b16 %v5918
        %v5976 = vunpack.c.l.b16 %v5919
        %v5977 = vunpack.c.l.b16 %v5920
        %v5978 = vunpack.c.l.b16 %v5921
        %v5979 = vunpack.c.l.b16 %v5922
        %v5980 = vunpack.c.l.b16 %v5923
        %v5981 = vunpack.c.l.b16 %v5924
        %v5982 = vunpack.c.l.b16 %v5925
        %v5983 = vunpack.c.l.b16 %v5926
        %v5984 = vunpack.c.l.b16 %v5927
        %v5985 = vunpack.c.l.b16 %v5928
        %v5986 = vunpack.c.l.b16 %v5929
        %v5987 = vunpack.c.l.b16 %v5930
        %v5988 = vunpack.c.l.b16 %v5931
        %v5989 = vunpack.c.l.b16 %v5932
        %v5990 = vunpack.c.l.b16 %v5933
        %v5991 = vunpack.c.l.b16 %v5934
        %v5992 = vunpack.c.l.b16 %v5935
        %v5993 = vpack.c.b16 %v5969, %v5968
        %v5994 = vpack.c.b16 %v5971, %v5970
        %v5995 = vpack.c.b16 %v5973, %v5972
        %v5996 = vpack.c.b16 %v5975, %v5974
        %v5997 = vpack.c.b16 %v5977, %v5976
        %v5998 = vpack.c.b16 %v5979, %v5978
        %v5999 = vpack.c.b16 %v5981, %v5980
        %v6000 = vpack.c.b16 %v5983, %v5982
        %v6001 = vpack.c.b16 %v5985, %v5984
        %v6002 = vpack.c.b16 %v5987, %v5986
        %v6003 = vpack.c.b16 %v5989, %v5988
        %v6004 = vpack.c.b16 %v5991, %v5990
        %v6005 = vpack.c.b16 %v5992, %v5992
        %v6019 = vsel %vm4690, %v5880, 0
        %v6022 = vsel %vm4690, %v5882, 0
        %v6025 = vsel %vm4690, %v5884, 0
        %v6028 = vsel %vm4690, %v5886, 0
        %v6031 = vsel %vm4690, %v5888, 0
        %v6034 = vsel %vm4690, %v5890, 0
        %v6037 = vsel %vm4690, %v5892, 0
        %v6040 = vsel %vm4690, %v5894, 0
        %v6043 = vsel %vm4690, %v5896, 0
        %v6046 = vsel %vm4690, %v5898, 0
        %v6049 = vsel %vm4690, %v5900, 0
        %v6052 = vsel %vm4690, %v5902, 0
        %v6055 = vsel %vm4690, %v5904, 0
        %v6058 = vsel %vm4690, %v5906, 0
        %v6061 = vsel %vm4690, %v5908, 0
        %v6064 = vsel %vm4690, %v5910, 0
        %v6067 = vsel %vm2912, %v6005, 0
        %6069 = vmatprep.subr.bf16.mxu0 0
        %6070 = vmatpush1.bf16.msra.mxu0 %v6000
        %6071 = vmatprep.subr.bf16.mxu0 0
        %6072 = vmatpush1.bf16.msra.mxu0 %v5999
        %6073 = vmatprep.subr.bf16.mxu0 0
        %6074 = vmatpush1.bf16.msra.mxu0 %v5998
        %6075 = vmatprep.subr.bf16.mxu0 0
        %6076 = vmatpush1.bf16.msra.mxu0 %v5997
        %6077 = vmatprep.subr.bf16.mxu0 0
        %6078 = vmatpush1.bf16.msra.mxu0 %v5996
        %6079 = vmatprep.subr.bf16.mxu0 0
        %6080 = vmatpush1.bf16.msra.mxu0 %v5995
        %6081 = vmatprep.subr.bf16.mxu0 0
        %6082 = vmatpush1.bf16.msra.mxu0 %v5994
        %6083 = vmatprep.subr.bf16.mxu0 0
        %6084 = vmatpush1.bf16.msra.mxu0 %v5993
        %6085 = vmatprep.subr.bf16.mxu0 0
        %6086 = vmatpush2.bf16.msra.mxu0 0
        %6087 = vmatprep.subr.bf16.mxu0 0
        %6088 = vmatpush2.bf16.msra.mxu0 0
        %6089 = vmatprep.subr.bf16.mxu0 0
        %6090 = vmatpush2.bf16.msra.mxu0 0
        %6091 = vmatprep.subr.bf16.mxu0 0
        %6092 = vmatpush2.bf16.msra.mxu0 %v6067
        %6093 = vmatprep.subr.bf16.mxu0 0
        %6094 = vmatpush2.bf16.msra.mxu0 %v6004
        %6095 = vmatprep.subr.bf16.mxu0 0
        %6096 = vmatpush2.bf16.msra.mxu0 %v6003
        %6097 = vmatprep.subr.bf16.mxu0 0
        %6098 = vmatpush2.bf16.msra.mxu0 %v6002
        %6099 = vmatprep.subr.bf16.mxu0 0
        %6100 = vmatpush2.bf16.msra.mxu0 %v6001
        %6101 = vmatprep.mubr.bf16.mxu0 %v6019
        %6102 = vmatmul.mubr.bf16.gmra.mxu0 %v5879
        %v6103 = vpop.f32.mrf.mxu0
        %v6104 = vadd.f32 %v5941, %v6103
        %v6105 = vpop.f32.mrf.mxu0
        %v6106 = vpop.f32.mrf.mxu0
        %v6107 = vadd.f32 %v5941, %v6106
        %v6108 = vpop.f32.mrf.mxu0
        %6109 = vmatprep.mubr.bf16.mxu0 %v6022
        %6110 = vmatmul.mubr.bf16.gmra.mxu0 %v5881
        %v6111 = vpop.f32.mrf.mxu0
        %v6112 = vadd.f32 %v5941, %v6111
        %v6113 = vpop.f32.mrf.mxu0
        %v6114 = vpop.f32.mrf.mxu0
        %v6115 = vadd.f32 %v5941, %v6114
        %v6116 = vpop.f32.mrf.mxu0
        %6117 = vmatprep.mubr.bf16.mxu0 %v6025
        %6118 = vmatmul.mubr.bf16.gmra.mxu0 %v5883
        %v6119 = vpop.f32.mrf.mxu0
        %v6120 = vadd.f32 %v5941, %v6119
        %v6121 = vpop.f32.mrf.mxu0
        %v6122 = vpop.f32.mrf.mxu0
        %v6123 = vadd.f32 %v5941, %v6122
        %v6124 = vpop.f32.mrf.mxu0
        %6125 = vmatprep.mubr.bf16.mxu0 %v6028
        %6126 = vmatmul.mubr.bf16.gmra.mxu0 %v5885
        %v6127 = vpop.f32.mrf.mxu0
        %v6128 = vadd.f32 %v5941, %v6127
        %v6129 = vpop.f32.mrf.mxu0
        %v6130 = vpop.f32.mrf.mxu0
        %v6131 = vadd.f32 %v5941, %v6130
        %v6132 = vpop.f32.mrf.mxu0
        %6133 = vmatprep.mubr.bf16.mxu0 %v6031
        %6134 = vmatmul.mubr.bf16.gmra.mxu0 %v5887
        %v6135 = vpop.f32.mrf.mxu0
        %v6136 = vadd.f32 %v5941, %v6135
        %v6137 = vpop.f32.mrf.mxu0
        %v6138 = vpop.f32.mrf.mxu0
        %v6139 = vadd.f32 %v5941, %v6138
        %v6140 = vpop.f32.mrf.mxu0
        %6141 = vmatprep.mubr.bf16.mxu0 %v6034
        %6142 = vmatmul.mubr.bf16.gmra.mxu0 %v5889
        %v6143 = vpop.f32.mrf.mxu0
        %v6144 = vadd.f32 %v5941, %v6143
        %v6145 = vpop.f32.mrf.mxu0
        %v6146 = vpop.f32.mrf.mxu0
        %v6147 = vadd.f32 %v5941, %v6146
        %v6148 = vpop.f32.mrf.mxu0
        %6149 = vmatprep.mubr.bf16.mxu0 %v6037
        %6150 = vmatmul.mubr.bf16.gmra.mxu0 %v5891
        %v6151 = vpop.f32.mrf.mxu0
        %v6152 = vadd.f32 %v5941, %v6151
        %v6153 = vpop.f32.mrf.mxu0
        %v6154 = vpop.f32.mrf.mxu0
        %v6155 = vadd.f32 %v5941, %v6154
        %v6156 = vpop.f32.mrf.mxu0
        %6157 = vmatprep.mubr.bf16.mxu0 %v6040
        %6158 = vmatmul.mubr.bf16.gmra.mxu0 %v5893
        %v6159 = vpop.f32.mrf.mxu0
        %v6160 = vadd.f32 %v5941, %v6159
        %v6161 = vpop.f32.mrf.mxu0
        %v6162 = vpop.f32.mrf.mxu0
        %v6163 = vadd.f32 %v5941, %v6162
        %v6164 = vpop.f32.mrf.mxu0
        %6165 = vmatprep.mubr.bf16.mxu0 %v6043
        %6166 = vmatmul.mubr.bf16.gmra.mxu0 %v5895
        %v6167 = vpop.f32.mrf.mxu0
        %v6168 = vadd.f32 %v5941, %v6167
        %v6169 = vpop.f32.mrf.mxu0
        %v6170 = vpop.f32.mrf.mxu0
        %v6171 = vadd.f32 %v5941, %v6170
        %v6172 = vpop.f32.mrf.mxu0
        %6173 = vmatprep.mubr.bf16.mxu0 %v6046
        %6174 = vmatmul.mubr.bf16.gmra.mxu0 %v5897
        %v6175 = vpop.f32.mrf.mxu0
        %v6176 = vadd.f32 %v5941, %v6175
        %v6177 = vpop.f32.mrf.mxu0
        %v6178 = vpop.f32.mrf.mxu0
        %v6179 = vadd.f32 %v5941, %v6178
        %v6180 = vpop.f32.mrf.mxu0
        %6181 = vmatprep.mubr.bf16.mxu0 %v6049
        %6182 = vmatmul.mubr.bf16.gmra.mxu0 %v5899
        %v6183 = vpop.f32.mrf.mxu0
        %v6184 = vadd.f32 %v5941, %v6183
        %v6185 = vpop.f32.mrf.mxu0
        %v6186 = vpop.f32.mrf.mxu0
        %v6187 = vadd.f32 %v5941, %v6186
        %v6188 = vpop.f32.mrf.mxu0
        %6189 = vmatprep.mubr.bf16.mxu0 %v6052
        %6190 = vmatmul.mubr.bf16.gmra.mxu0 %v5901
        %v6191 = vpop.f32.mrf.mxu0
        %v6192 = vadd.f32 %v5941, %v6191
        %v6193 = vpop.f32.mrf.mxu0
        %v6194 = vpop.f32.mrf.mxu0
        %v6195 = vadd.f32 %v5941, %v6194
        %v6196 = vpop.f32.mrf.mxu0
        %6197 = vmatprep.mubr.bf16.mxu0 %v6055
        %6198 = vmatmul.mubr.bf16.gmra.mxu0 %v5903
        %v6199 = vpop.f32.mrf.mxu0
        %v6200 = vadd.f32 %v5941, %v6199
        %v6201 = vpop.f32.mrf.mxu0
        %v6202 = vpop.f32.mrf.mxu0
        %v6203 = vadd.f32 %v5941, %v6202
        %v6204 = vpop.f32.mrf.mxu0
        %6205 = vmatprep.mubr.bf16.mxu0 %v6058
        %6206 = vmatmul.mubr.bf16.gmra.mxu0 %v5905
        %v6207 = vpop.f32.mrf.mxu0
        %v6208 = vadd.f32 %v5941, %v6207
        %v6209 = vpop.f32.mrf.mxu0
        %v6210 = vpop.f32.mrf.mxu0
        %v6211 = vadd.f32 %v5941, %v6210
        %v6212 = vpop.f32.mrf.mxu0
        %6213 = vmatprep.mubr.bf16.mxu0 %v6061
        %6214 = vmatmul.mubr.bf16.gmra.mxu0 %v5907
        %v6215 = vpop.f32.mrf.mxu0
        %v6216 = vadd.f32 %v5941, %v6215
        %v6217 = vpop.f32.mrf.mxu0
        %v6218 = vpop.f32.mrf.mxu0
        %v6219 = vadd.f32 %v5941, %v6218
        %v6220 = vpop.f32.mrf.mxu0
        %6221 = vmatprep.mubr.bf16.mxu0 %v6064
        %6222 = vmatmul.mubr.bf16.gmra.mxu0 %v5909
        %v6223 = vpop.f32.mrf.mxu0
        %v6224 = vadd.f32 %v5941, %v6223
        %v6225 = vpop.f32.mrf.mxu0
        %v6226 = vpop.f32.mrf.mxu0
        %v6227 = vadd.f32 %v5941, %v6226
        %v6228 = vpop.f32.mrf.mxu0
        %6229 = vdwg.mxu0
        %v6230 = vmax.f32 %v6104, 0.0
        %v6231 = vmax.f32 %v6107, 0.0
        %v6232 = vmax.f32 %v6112, 0.0
        %v6233 = vmax.f32 %v6115, 0.0
        %v6234 = vmax.f32 %v6120, 0.0
        %v6235 = vmax.f32 %v6123, 0.0
        %v6236 = vmax.f32 %v6128, 0.0
        %v6237 = vmax.f32 %v6131, 0.0
        %v6238 = vmax.f32 %v6136, 0.0
        %v6239 = vmax.f32 %v6139, 0.0
        %v6240 = vmax.f32 %v6144, 0.0
        %v6241 = vmax.f32 %v6147, 0.0
        %v6242 = vmax.f32 %v6152, 0.0
        %v6243 = vmax.f32 %v6155, 0.0
        %v6244 = vmax.f32 %v6160, 0.0
        %v6245 = vmax.f32 %v6163, 0.0
        %v6246 = vmax.f32 %v6168, 0.0
        %v6247 = vmax.f32 %v6171, 0.0
        %v6248 = vmax.f32 %v6176, 0.0
        %v6249 = vmax.f32 %v6179, 0.0
        %v6250 = vmax.f32 %v6184, 0.0
        %v6251 = vmax.f32 %v6187, 0.0
        %v6252 = vmax.f32 %v6192, 0.0
        %v6253 = vmax.f32 %v6195, 0.0
        %v6254 = vmax.f32 %v6200, 0.0
        %v6255 = vmax.f32 %v6203, 0.0
        %v6256 = vmax.f32 %v6208, 0.0
        %v6257 = vmax.f32 %v6211, 0.0
        %v6258 = vmax.f32 %v6216, 0.0
        %v6259 = vmax.f32 %v6219, 0.0
        %v6260 = vmax.f32 %v6224, 0.0
        %v6261 = vmax.f32 %v6227, 0.0
        %v6262 = vshrl.u32 %v458, 16
        %v6264 = vrot.slane %v6262, 7
        %v6265 = vshll.u32 %v458, 16
        %v6267 = vor.u32 %v6264, %v6265
        %v6268 = vshrl.u32 %v459, 16
        %v6270 = vrot.slane %v6268, 7
        %v6271 = vshll.u32 %v459, 16
        %v6273 = vor.u32 %v6270, %v6271
        %v6274 = vshrl.u32 %v460, 16
        %v6276 = vrot.slane %v6274, 7
        %v6277 = vshll.u32 %v460, 16
        %v6279 = vor.u32 %v6276, %v6277
        %v6280 = vshrl.u32 %v461, 16
        %v6282 = vrot.slane %v6280, 7
        %v6283 = vshll.u32 %v461, 16
        %v6285 = vor.u32 %v6282, %v6283
        %v6286 = vshrl.u32 %v462, 16
        %v6288 = vrot.slane %v6286, 7
        %v6289 = vshll.u32 %v462, 16
        %v6291 = vor.u32 %v6288, %v6289
        %v6292 = vshrl.u32 %v463, 16
        %v6294 = vrot.slane %v6292, 7
        %v6295 = vshll.u32 %v463, 16
        %v6297 = vor.u32 %v6294, %v6295
        %v6298 = vshrl.u32 %v464, 16
        %v6300 = vrot.slane %v6298, 7
        %v6301 = vshll.u32 %v464, 16
        %v6303 = vor.u32 %v6300, %v6301
        %v6304 = vshrl.u32 %v465, 16
        %v6306 = vrot.slane %v6304, 7
        %v6307 = vshll.u32 %v465, 16
        %v6309 = vor.u32 %v6306, %v6307
        %v6310 = vshrl.u32 %v466, 16
        %v6312 = vrot.slane %v6310, 7
        %v6313 = vshll.u32 %v466, 16
        %v6315 = vor.u32 %v6312, %v6313
        %v6316 = vshrl.u32 %v467, 16
        %v6318 = vrot.slane %v6316, 7
        %v6319 = vshll.u32 %v467, 16
        %v6321 = vor.u32 %v6318, %v6319
        %v6322 = vshrl.u32 %v468, 16
        %v6324 = vrot.slane %v6322, 7
        %v6325 = vshll.u32 %v468, 16
        %v6327 = vor.u32 %v6324, %v6325
        %v6328 = vshrl.u32 %v469, 16
        %v6330 = vrot.slane %v6328, 7
        %v6331 = vshll.u32 %v469, 16
        %v6333 = vor.u32 %v6330, %v6331
        %v6334 = vshrl.u32 %v470, 16
        %v6336 = vrot.slane %v6334, 7
        %v6337 = vshll.u32 %v470, 16
        %v6339 = vor.u32 %v6336, %v6337
        %v6340 = vshrl.u32 %v471, 16
        %v6342 = vrot.slane %v6340, 7
        %v6343 = vshll.u32 %v471, 16
        %v6345 = vor.u32 %v6342, %v6343
        %v6346 = vshrl.u32 %v472, 16
        %v6348 = vrot.slane %v6346, 7
        %v6349 = vshll.u32 %v472, 16
        %v6351 = vor.u32 %v6348, %v6349
        %v6352 = vshrl.u32 %v473, 16
        %v6354 = vrot.slane %v6352, 7
        %v6355 = vshll.u32 %v473, 16
        %v6357 = vor.u32 %v6354, %v6355
        %vm6390 = vcmask 1040384
        %vm6391 = vsmask.f32 256
        %vm6392 = vmand %vm6390, %vm6391
        %v6393 = vsel %vm6392, 4286644096, %v6267
        %v6394 = vsel %vm6392, 4286644096, %v6273
        %v6395 = vsel %vm6392, 4286644096, %v6279
        %v6396 = vsel %vm6392, 4286644096, %v6285
        %v6397 = vsel %vm6392, 4286644096, %v6291
        %v6398 = vsel %vm6392, 4286644096, %v6297
        %v6399 = vsel %vm6392, 4286644096, %v6303
        %v6400 = vsel %vm6392, 4286644096, %v6309
        %v6401 = vsel %vm6392, 4286644096, %v6315
        %v6402 = vsel %vm6392, 4286644096, %v6321
        %v6403 = vsel %vm6392, 4286644096, %v6327
        %v6404 = vsel %vm6392, 4286644096, %v6333
        %v6405 = vsel %vm6392, 4286644096, %v6339
        %v6406 = vsel %vm6392, 4286644096, %v6345
        %v6407 = vsel %vm6392, 4286644096, %v6351
        %v6408 = vsel %vm6392, 4286644096, %v6357
        %v6409 = vsel %vm6392, %v6264, 4286644096
        %v6410 = vsel %vm6392, %v6270, 4286644096
        %v6411 = vsel %vm6392, %v6276, 4286644096
        %v6412 = vsel %vm6392, %v6282, 4286644096
        %v6413 = vsel %vm6392, %v6288, 4286644096
        %v6414 = vsel %vm6392, %v6294, 4286644096
        %v6415 = vsel %vm6392, %v6300, 4286644096
        %v6416 = vsel %vm6392, %v6306, 4286644096
        %v6417 = vsel %vm6392, %v6312, 4286644096
        %v6418 = vsel %vm6392, %v6318, 4286644096
        %v6419 = vsel %vm6392, %v6324, 4286644096
        %v6420 = vsel %vm6392, %v6330, 4286644096
        %v6421 = vsel %vm6392, %v6336, 4286644096
        %v6422 = vsel %vm6392, %v6342, 4286644096
        %v6423 = vsel %vm6392, %v6348, 4286644096
        %v6424 = vsel %vm6392, %v6354, 4286644096
        %vm6425 = vsmask.f32 7424
        %v6427 = vshrl.u32 %v6393, 16
        %v6429 = vshll.u32 %v6393, 16
        %v6431 = vrot.slane %v6429, 1
        %v6432 = vor.u32 %v6427, %v6431
        %v6434 = vshll.u32 %v6409, 16
        %v6436 = vrot.slane %v6434, 1
        %v6437 = vsel %vm6425, %v6432, %v6436
        %v6439 = vshrl.u32 %v6394, 16
        %v6441 = vshll.u32 %v6394, 16
        %v6443 = vrot.slane %v6441, 1
        %v6444 = vor.u32 %v6439, %v6443
        %v6446 = vshll.u32 %v6410, 16
        %v6448 = vrot.slane %v6446, 1
        %v6449 = vsel %vm6425, %v6444, %v6448
        %v6451 = vshrl.u32 %v6395, 16
        %v6453 = vshll.u32 %v6395, 16
        %v6455 = vrot.slane %v6453, 1
        %v6456 = vor.u32 %v6451, %v6455
        %v6458 = vshll.u32 %v6411, 16
        %v6460 = vrot.slane %v6458, 1
        %v6461 = vsel %vm6425, %v6456, %v6460
        %v6463 = vshrl.u32 %v6396, 16
        %v6465 = vshll.u32 %v6396, 16
        %v6467 = vrot.slane %v6465, 1
        %v6468 = vor.u32 %v6463, %v6467
        %v6470 = vshll.u32 %v6412, 16
        %v6472 = vrot.slane %v6470, 1
        %v6473 = vsel %vm6425, %v6468, %v6472
        %v6475 = vshrl.u32 %v6397, 16
        %v6477 = vshll.u32 %v6397, 16
        %v6479 = vrot.slane %v6477, 1
        %v6480 = vor.u32 %v6475, %v6479
        %v6482 = vshll.u32 %v6413, 16
        %v6484 = vrot.slane %v6482, 1
        %v6485 = vsel %vm6425, %v6480, %v6484
        %v6487 = vshrl.u32 %v6398, 16
        %v6489 = vshll.u32 %v6398, 16
        %v6491 = vrot.slane %v6489, 1
        %v6492 = vor.u32 %v6487, %v6491
        %v6494 = vshll.u32 %v6414, 16
        %v6496 = vrot.slane %v6494, 1
        %v6497 = vsel %vm6425, %v6492, %v6496
        %v6499 = vshrl.u32 %v6399, 16
        %v6501 = vshll.u32 %v6399, 16
        %v6503 = vrot.slane %v6501, 1
        %v6504 = vor.u32 %v6499, %v6503
        %v6506 = vshll.u32 %v6415, 16
        %v6508 = vrot.slane %v6506, 1
        %v6509 = vsel %vm6425, %v6504, %v6508
        %v6511 = vshrl.u32 %v6400, 16
        %v6513 = vshll.u32 %v6400, 16
        %v6515 = vrot.slane %v6513, 1
        %v6516 = vor.u32 %v6511, %v6515
        %v6518 = vshll.u32 %v6416, 16
        %v6520 = vrot.slane %v6518, 1
        %v6521 = vsel %vm6425, %v6516, %v6520
        %v6523 = vshrl.u32 %v6401, 16
        %v6525 = vshll.u32 %v6401, 16
        %v6527 = vrot.slane %v6525, 1
        %v6528 = vor.u32 %v6523, %v6527
        %v6530 = vshll.u32 %v6417, 16
        %v6532 = vrot.slane %v6530, 1
        %v6533 = vsel %vm6425, %v6528, %v6532
        %v6535 = vshrl.u32 %v6402, 16
        %v6537 = vshll.u32 %v6402, 16
        %v6539 = vrot.slane %v6537, 1
        %v6540 = vor.u32 %v6535, %v6539
        %v6542 = vshll.u32 %v6418, 16
        %v6544 = vrot.slane %v6542, 1
        %v6545 = vsel %vm6425, %v6540, %v6544
        %v6547 = vshrl.u32 %v6403, 16
        %v6549 = vshll.u32 %v6403, 16
        %v6551 = vrot.slane %v6549, 1
        %v6552 = vor.u32 %v6547, %v6551
        %v6554 = vshll.u32 %v6419, 16
        %v6556 = vrot.slane %v6554, 1
        %v6557 = vsel %vm6425, %v6552, %v6556
        %v6559 = vshrl.u32 %v6404, 16
        %v6561 = vshll.u32 %v6404, 16
        %v6563 = vrot.slane %v6561, 1
        %v6564 = vor.u32 %v6559, %v6563
        %v6566 = vshll.u32 %v6420, 16
        %v6568 = vrot.slane %v6566, 1
        %v6569 = vsel %vm6425, %v6564, %v6568
        %v6571 = vshrl.u32 %v6405, 16
        %v6573 = vshll.u32 %v6405, 16
        %v6575 = vrot.slane %v6573, 1
        %v6576 = vor.u32 %v6571, %v6575
        %v6578 = vshll.u32 %v6421, 16
        %v6580 = vrot.slane %v6578, 1
        %v6581 = vsel %vm6425, %v6576, %v6580
        %v6583 = vshrl.u32 %v6406, 16
        %v6585 = vshll.u32 %v6406, 16
        %v6587 = vrot.slane %v6585, 1
        %v6588 = vor.u32 %v6583, %v6587
        %v6590 = vshll.u32 %v6422, 16
        %v6592 = vrot.slane %v6590, 1
        %v6593 = vsel %vm6425, %v6588, %v6592
        %v6595 = vshrl.u32 %v6407, 16
        %v6597 = vshll.u32 %v6407, 16
        %v6599 = vrot.slane %v6597, 1
        %v6600 = vor.u32 %v6595, %v6599
        %v6602 = vshll.u32 %v6423, 16
        %v6604 = vrot.slane %v6602, 1
        %v6605 = vsel %vm6425, %v6600, %v6604
        %v6607 = vshrl.u32 %v6408, 16
        %v6609 = vshll.u32 %v6408, 16
        %v6611 = vrot.slane %v6609, 1
        %v6612 = vor.u32 %v6607, %v6611
        %v6614 = vshll.u32 %v6424, 16
        %v6616 = vrot.slane %v6614, 1
        %v6617 = vsel %vm6425, %v6612, %v6616
        %v6634 = vmax.bf16 %v6393, %v6437
        %v6635 = vmax.bf16 %v6394, %v6449
        %v6636 = vmax.bf16 %v6395, %v6461
        %v6637 = vmax.bf16 %v6396, %v6473
        %v6638 = vmax.bf16 %v6397, %v6485
        %v6639 = vmax.bf16 %v6398, %v6497
        %v6640 = vmax.bf16 %v6399, %v6509
        %v6641 = vmax.bf16 %v6400, %v6521
        %v6642 = vmax.bf16 %v6401, %v6533
        %v6643 = vmax.bf16 %v6402, %v6545
        %v6644 = vmax.bf16 %v6403, %v6557
        %v6645 = vmax.bf16 %v6404, %v6569
        %v6646 = vmax.bf16 %v6405, %v6581
        %v6647 = vmax.bf16 %v6406, %v6593
        %v6648 = vmax.bf16 %v6407, %v6605
        %v6649 = vmax.bf16 %v6408, %v6617
        %vm6682 = vcmask 1046528
        %v6683 = vrot.slane %v6393, 1
        %v6684 = vrot.slane %v6409, 1
        %v6685 = vsel %vm6682, %v6683, %v6684
        %v6686 = vrot.slane %v6394, 1
        %v6687 = vrot.slane %v6410, 1
        %v6688 = vsel %vm6682, %v6686, %v6687
        %v6689 = vrot.slane %v6395, 1
        %v6690 = vrot.slane %v6411, 1
        %v6691 = vsel %vm6682, %v6689, %v6690
        %v6692 = vrot.slane %v6396, 1
        %v6693 = vrot.slane %v6412, 1
        %v6694 = vsel %vm6682, %v6692, %v6693
        %v6695 = vrot.slane %v6397, 1
        %v6696 = vrot.slane %v6413, 1
        %v6697 = vsel %vm6682, %v6695, %v6696
        %v6698 = vrot.slane %v6398, 1
        %v6699 = vrot.slane %v6414, 1
        %v6700 = vsel %vm6682, %v6698, %v6699
        %v6701 = vrot.slane %v6399, 1
        %v6702 = vrot.slane %v6415, 1
        %v6703 = vsel %vm6682, %v6701, %v6702
        %v6704 = vrot.slane %v6400, 1
        %v6705 = vrot.slane %v6416, 1
        %v6706 = vsel %vm6682, %v6704, %v6705
        %v6707 = vrot.slane %v6401, 1
        %v6708 = vrot.slane %v6417, 1
        %v6709 = vsel %vm6682, %v6707, %v6708
        %v6710 = vrot.slane %v6402, 1
        %v6711 = vrot.slane %v6418, 1
        %v6712 = vsel %vm6682, %v6710, %v6711
        %v6713 = vrot.slane %v6403, 1
        %v6714 = vrot.slane %v6419, 1
        %v6715 = vsel %vm6682, %v6713, %v6714
        %v6716 = vrot.slane %v6404, 1
        %v6717 = vrot.slane %v6420, 1
        %v6718 = vsel %vm6682, %v6716, %v6717
        %v6719 = vrot.slane %v6405, 1
        %v6720 = vrot.slane %v6421, 1
        %v6721 = vsel %vm6682, %v6719, %v6720
        %v6722 = vrot.slane %v6406, 1
        %v6723 = vrot.slane %v6422, 1
        %v6724 = vsel %vm6682, %v6722, %v6723
        %v6725 = vrot.slane %v6407, 1
        %v6726 = vrot.slane %v6423, 1
        %v6727 = vsel %vm6682, %v6725, %v6726
        %v6728 = vrot.slane %v6408, 1
        %v6729 = vrot.slane %v6424, 1
        %v6730 = vsel %vm6682, %v6728, %v6729
        %v6747 = vmax.bf16 %v6634, %v6685
        %v6748 = vmax.bf16 %v6635, %v6688
        %v6749 = vmax.bf16 %v6636, %v6691
        %v6750 = vmax.bf16 %v6637, %v6694
        %v6751 = vmax.bf16 %v6638, %v6697
        %v6752 = vmax.bf16 %v6639, %v6700
        %v6753 = vmax.bf16 %v6640, %v6703
        %v6754 = vmax.bf16 %v6641, %v6706
        %v6755 = vmax.bf16 %v6642, %v6709
        %v6756 = vmax.bf16 %v6643, %v6712
        %v6757 = vmax.bf16 %v6644, %v6715
        %v6758 = vmax.bf16 %v6645, %v6718
        %v6759 = vmax.bf16 %v6646, %v6721
        %v6760 = vmax.bf16 %v6647, %v6724
        %v6761 = vmax.bf16 %v6648, %v6727
        %v6762 = vmax.bf16 %v6649, %v6730
        %v6763 = vmax.bf16 %v6747, %v6748
        %v6764 = vmax.bf16 %v6748, %v6749
        %v6765 = vmax.bf16 %v6749, %v6750
        %v6766 = vmax.bf16 %v6750, %v6751
        %v6767 = vmax.bf16 %v6751, %v6752
        %v6768 = vmax.bf16 %v6752, %v6753
        %v6769 = vmax.bf16 %v6753, %v6754
        %v6770 = vmax.bf16 %v6754, %v6755
        %v6771 = vmax.bf16 %v6755, %v6756
        %v6772 = vmax.bf16 %v6756, %v6757
        %v6773 = vmax.bf16 %v6757, %v6758
        %v6774 = vmax.bf16 %v6758, %v6759
        %v6775 = vmax.bf16 %v6759, %v6760
        %v6776 = vmax.bf16 %v6760, %v6761
        %v6777 = vmax.bf16 %v6761, %v6762
        %v6778 = vmax.bf16 %v6763, %v6749
        %v6779 = vmax.bf16 %v6764, %v6750
        %v6780 = vmax.bf16 %v6765, %v6751
        %v6781 = vmax.bf16 %v6766, %v6752
        %v6782 = vmax.bf16 %v6767, %v6753
        %v6783 = vmax.bf16 %v6768, %v6754
        %v6784 = vmax.bf16 %v6769, %v6755
        %v6785 = vmax.bf16 %v6770, %v6756
        %v6786 = vmax.bf16 %v6771, %v6757
        %v6787 = vmax.bf16 %v6772, %v6758
        %v6788 = vmax.bf16 %v6773, %v6759
        %v6789 = vmax.bf16 %v6774, %v6760
        %v6790 = vmax.bf16 %v6775, %v6761
        %v6791 = vmax.bf16 %v6776, %v6762
        %v6792 = vld [vmem:[%s7] sm:$0xf]
        %v6793 = vld [vmem:[%s7 + $0x4] sm:$0xf]
        %v6794 = vld [vmem:[%s8] sm:$0x1]
        %v6796 = vlaneseq
        %v6797 = vshrl.u32 %v6796, 7
        %v6798 = vsub.s32 0, %v6797
        %v6799 = vrot.slane %v6794, %v6798
        %v6803 = vunpack.c.l.b16 %v6792
        %v6804 = vunpack.c.l.b16 %v6793
        %v6805 = vpack.c.b16 %v6804, %v6803
        %v6808 = vsel %vm480, %v6763, 0
        %v6811 = vsel %vm480, %v6778, 0
        %v6814 = vsel %vm480, %v6779, 0
        %v6817 = vsel %vm480, %v6780, 0
        %v6820 = vsel %vm480, %v6781, 0
        %v6823 = vsel %vm480, %v6782, 0
        %v6826 = vsel %vm480, %v6783, 0
        %v6829 = vsel %vm480, %v6784, 0
        %v6832 = vsel %vm480, %v6785, 0
        %v6835 = vsel %vm480, %v6786, 0
        %v6838 = vsel %vm480, %v6787, 0
        %v6841 = vsel %vm480, %v6788, 0
        %v6844 = vsel %vm480, %v6789, 0
        %v6847 = vsel %vm480, %v6790, 0
        %v6850 = vsel %vm480, %v6791, 0
        %v6853 = vsel %vm480, %v6777, 0
        %6855 = vmatprep.subr.bf16.mxu0 0
        %6856 = vmatpush1.bf16.msra.mxu0 0
        %6857 = vmatprep.subr.bf16.mxu0 0
        %6858 = vmatpush1.bf16.msra.mxu0 0
        %6859 = vmatprep.subr.bf16.mxu0 0
        %6860 = vmatpush1.bf16.msra.mxu0 0
        %6861 = vmatprep.subr.bf16.mxu0 0
        %6862 = vmatpush1.bf16.msra.mxu0 0
        %6863 = vmatprep.subr.bf16.mxu0 0
        %6864 = vmatpush1.bf16.msra.mxu0 0
        %6865 = vmatprep.subr.bf16.mxu0 0
        %6866 = vmatpush1.bf16.msra.mxu0 0
        %6867 = vmatprep.subr.bf16.mxu0 0
        %6868 = vmatpush1.bf16.msra.mxu0 0
        %6869 = vmatprep.subr.bf16.mxu0 0
        %6870 = vmatpush1.bf16.msra.mxu0 %v6805
        %6871 = vmatprep.subr.bf16.mxu0 0
        %6872 = vmatpush2.bf16.msra.mxu0 0
        %6873 = vmatprep.subr.bf16.mxu0 0
        %6874 = vmatpush2.bf16.msra.mxu0 0
        %6875 = vmatprep.subr.bf16.mxu0 0
        %6876 = vmatpush2.bf16.msra.mxu0 0
        %6877 = vmatprep.subr.bf16.mxu0 0
        %6878 = vmatpush2.bf16.msra.mxu0 0
        %6879 = vmatprep.subr.bf16.mxu0 0
        %6880 = vmatpush2.bf16.msra.mxu0 0
        %6881 = vmatprep.subr.bf16.mxu0 0
        %6882 = vmatpush2.bf16.msra.mxu0 0
        %6883 = vmatprep.subr.bf16.mxu0 0
        %6884 = vmatpush2.bf16.msra.mxu0 0
        %6885 = vmatprep.subr.bf16.mxu0 0
        %6886 = vmatpush2.bf16.msra.mxu0 0
        %6887 = vmatprep.mubr.bf16.mxu0 0
        %6888 = vmatmul.mubr.bf16.gmra.mxu0 %v6808
        %v6889 = vpop.f32.mrf.mxu0
        %v6890 = vadd.f32 %v6799, %v6889
        %v6891 = vpop.f32.mrf.mxu0
        %v6892 = vpop.f32.mrf.mxu0
        %v6893 = vadd.f32 %v6799, %v6892
        %v6894 = vpop.f32.mrf.mxu0
        %6895 = vmatprep.mubr.bf16.mxu0 0
        %6896 = vmatmul.mubr.bf16.gmra.mxu0 %v6811
        %v6897 = vpop.f32.mrf.mxu0
        %v6898 = vadd.f32 %v6799, %v6897
        %v6899 = vpop.f32.mrf.mxu0
        %v6900 = vpop.f32.mrf.mxu0
        %v6901 = vadd.f32 %v6799, %v6900
        %v6902 = vpop.f32.mrf.mxu0
        %6903 = vmatprep.mubr.bf16.mxu0 0
        %6904 = vmatmul.mubr.bf16.gmra.mxu0 %v6814
        %v6905 = vpop.f32.mrf.mxu0
        %v6906 = vadd.f32 %v6799, %v6905
        %v6907 = vpop.f32.mrf.mxu0
        %v6908 = vpop.f32.mrf.mxu0
        %v6909 = vadd.f32 %v6799, %v6908
        %v6910 = vpop.f32.mrf.mxu0
        %6911 = vmatprep.mubr.bf16.mxu0 0
        %6912 = vmatmul.mubr.bf16.gmra.mxu0 %v6817
        %v6913 = vpop.f32.mrf.mxu0
        %v6914 = vadd.f32 %v6799, %v6913
        %v6915 = vpop.f32.mrf.mxu0
        %v6916 = vpop.f32.mrf.mxu0
        %v6917 = vadd.f32 %v6799, %v6916
        %v6918 = vpop.f32.mrf.mxu0
        %6919 = vmatprep.mubr.bf16.mxu0 0
        %6920 = vmatmul.mubr.bf16.gmra.mxu0 %v6820
        %v6921 = vpop.f32.mrf.mxu0
        %v6922 = vadd.f32 %v6799, %v6921
        %v6923 = vpop.f32.mrf.mxu0
        %v6924 = vpop.f32.mrf.mxu0
        %v6925 = vadd.f32 %v6799, %v6924
        %v6926 = vpop.f32.mrf.mxu0
        %6927 = vmatprep.mubr.bf16.mxu0 0
        %6928 = vmatmul.mubr.bf16.gmra.mxu0 %v6823
        %v6929 = vpop.f32.mrf.mxu0
        %v6930 = vadd.f32 %v6799, %v6929
        %v6931 = vpop.f32.mrf.mxu0
        %v6932 = vpop.f32.mrf.mxu0
        %v6933 = vadd.f32 %v6799, %v6932
        %v6934 = vpop.f32.mrf.mxu0
        %6935 = vmatprep.mubr.bf16.mxu0 0
        %6936 = vmatmul.mubr.bf16.gmra.mxu0 %v6826
        %v6937 = vpop.f32.mrf.mxu0
        %v6938 = vadd.f32 %v6799, %v6937
        %v6939 = vpop.f32.mrf.mxu0
        %v6940 = vpop.f32.mrf.mxu0
        %v6941 = vadd.f32 %v6799, %v6940
        %v6942 = vpop.f32.mrf.mxu0
        %6943 = vmatprep.mubr.bf16.mxu0 0
        %6944 = vmatmul.mubr.bf16.gmra.mxu0 %v6829
        %v6945 = vpop.f32.mrf.mxu0
        %v6946 = vadd.f32 %v6799, %v6945
        %v6947 = vpop.f32.mrf.mxu0
        %v6948 = vpop.f32.mrf.mxu0
        %v6949 = vadd.f32 %v6799, %v6948
        %v6950 = vpop.f32.mrf.mxu0
        %6951 = vmatprep.mubr.bf16.mxu0 0
        %6952 = vmatmul.mubr.bf16.gmra.mxu0 %v6832
        %v6953 = vpop.f32.mrf.mxu0
        %v6954 = vadd.f32 %v6799, %v6953
        %v6955 = vpop.f32.mrf.mxu0
        %v6956 = vpop.f32.mrf.mxu0
        %v6957 = vadd.f32 %v6799, %v6956
        %v6958 = vpop.f32.mrf.mxu0
        %6959 = vmatprep.mubr.bf16.mxu0 0
        %6960 = vmatmul.mubr.bf16.gmra.mxu0 %v6835
        %v6961 = vpop.f32.mrf.mxu0
        %v6962 = vadd.f32 %v6799, %v6961
        %v6963 = vpop.f32.mrf.mxu0
        %v6964 = vpop.f32.mrf.mxu0
        %v6965 = vadd.f32 %v6799, %v6964
        %v6966 = vpop.f32.mrf.mxu0
        %6967 = vmatprep.mubr.bf16.mxu0 0
        %6968 = vmatmul.mubr.bf16.gmra.mxu0 %v6838
        %v6969 = vpop.f32.mrf.mxu0
        %v6970 = vadd.f32 %v6799, %v6969
        %v6971 = vpop.f32.mrf.mxu0
        %v6972 = vpop.f32.mrf.mxu0
        %v6973 = vadd.f32 %v6799, %v6972
        %v6974 = vpop.f32.mrf.mxu0
        %6975 = vmatprep.mubr.bf16.mxu0 0
        %6976 = vmatmul.mubr.bf16.gmra.mxu0 %v6841
        %v6977 = vpop.f32.mrf.mxu0
        %v6978 = vadd.f32 %v6799, %v6977
        %v6979 = vpop.f32.mrf.mxu0
        %v6980 = vpop.f32.mrf.mxu0
        %v6981 = vadd.f32 %v6799, %v6980
        %v6982 = vpop.f32.mrf.mxu0
        %6983 = vmatprep.mubr.bf16.mxu0 0
        %6984 = vmatmul.mubr.bf16.gmra.mxu0 %v6844
        %v6985 = vpop.f32.mrf.mxu0
        %v6986 = vadd.f32 %v6799, %v6985
        %v6987 = vpop.f32.mrf.mxu0
        %v6988 = vpop.f32.mrf.mxu0
        %v6989 = vadd.f32 %v6799, %v6988
        %v6990 = vpop.f32.mrf.mxu0
        %6991 = vmatprep.mubr.bf16.mxu0 0
        %6992 = vmatmul.mubr.bf16.gmra.mxu0 %v6847
        %v6993 = vpop.f32.mrf.mxu0
        %v6994 = vadd.f32 %v6799, %v6993
        %v6995 = vpop.f32.mrf.mxu0
        %v6996 = vpop.f32.mrf.mxu0
        %v6997 = vadd.f32 %v6799, %v6996
        %v6998 = vpop.f32.mrf.mxu0
        %6999 = vmatprep.mubr.bf16.mxu0 0
        %7000 = vmatmul.mubr.bf16.gmra.mxu0 %v6850
        %v7001 = vpop.f32.mrf.mxu0
        %v7002 = vadd.f32 %v6799, %v7001
        %v7003 = vpop.f32.mrf.mxu0
        %v7004 = vpop.f32.mrf.mxu0
        %v7005 = vadd.f32 %v6799, %v7004
        %v7006 = vpop.f32.mrf.mxu0
        %7007 = vmatprep.mubr.bf16.mxu0 0
        %7008 = vmatmul.mubr.bf16.gmra.mxu0 %v6853
        %v7009 = vpop.f32.mrf.mxu0
        %v7010 = vadd.f32 %v6799, %v7009
        %v7011 = vpop.f32.mrf.mxu0
        %v7012 = vpop.f32.mrf.mxu0
        %v7013 = vadd.f32 %v6799, %v7012
        %v7014 = vpop.f32.mrf.mxu0
        %7015 = vdwg.mxu0
        %v7016 = vmax.f32 %v6890, 0.0
        %v7017 = vmax.f32 %v6893, 0.0
        %v7018 = vmax.f32 %v6898, 0.0
        %v7019 = vmax.f32 %v6901, 0.0
        %v7020 = vmax.f32 %v6906, 0.0
        %v7021 = vmax.f32 %v6909, 0.0
        %v7022 = vmax.f32 %v6914, 0.0
        %v7023 = vmax.f32 %v6917, 0.0
        %v7024 = vmax.f32 %v6922, 0.0
        %v7025 = vmax.f32 %v6925, 0.0
        %v7026 = vmax.f32 %v6930, 0.0
        %v7027 = vmax.f32 %v6933, 0.0
        %v7028 = vmax.f32 %v6938, 0.0
        %v7029 = vmax.f32 %v6941, 0.0
        %v7030 = vmax.f32 %v6946, 0.0
        %v7031 = vmax.f32 %v6949, 0.0
        %v7032 = vmax.f32 %v6954, 0.0
        %v7033 = vmax.f32 %v6957, 0.0
        %v7034 = vmax.f32 %v6962, 0.0
        %v7035 = vmax.f32 %v6965, 0.0
        %v7036 = vmax.f32 %v6970, 0.0
        %v7037 = vmax.f32 %v6973, 0.0
        %v7038 = vmax.f32 %v6978, 0.0
        %v7039 = vmax.f32 %v6981, 0.0
        %v7040 = vmax.f32 %v6986, 0.0
        %v7041 = vmax.f32 %v6989, 0.0
        %v7042 = vmax.f32 %v6994, 0.0
        %v7043 = vmax.f32 %v6997, 0.0
        %v7044 = vmax.f32 %v7002, 0.0
        %v7045 = vmax.f32 %v7005, 0.0
        %v7046 = vmax.f32 %v7010, 0.0
        %v7047 = vmax.f32 %v7013, 0.0
        %7080 = vrot.lane.b32.xlu0 %v2416, 16
        %v7081 = vpop.permute.xlu0 %7080
        %7082 = vrot.lane.b32.xlu0 %v2417, 16
        %v7083 = vpop.permute.xlu0 %7082
        %7084 = vrot.lane.b32.xlu0 %v2418, 16
        %v7085 = vpop.permute.xlu0 %7084
        %7086 = vrot.lane.b32.xlu0 %v2419, 16
        %v7087 = vpop.permute.xlu0 %7086
        %7088 = vrot.lane.b32.xlu0 %v2420, 16
        %v7089 = vpop.permute.xlu0 %7088
        %7090 = vrot.lane.b32.xlu0 %v2421, 16
        %v7091 = vpop.permute.xlu0 %7090
        %7092 = vrot.lane.b32.xlu0 %v2422, 16
        %v7093 = vpop.permute.xlu0 %7092
        %7094 = vrot.lane.b32.xlu0 %v2423, 16
        %v7095 = vpop.permute.xlu0 %7094
        %7096 = vrot.lane.b32.xlu0 %v2424, 16
        %v7097 = vpop.permute.xlu0 %7096
        %7098 = vrot.lane.b32.xlu0 %v2425, 16
        %v7099 = vpop.permute.xlu0 %7098
        %7100 = vrot.lane.b32.xlu0 %v2426, 16
        %v7101 = vpop.permute.xlu0 %7100
        %7102 = vrot.lane.b32.xlu0 %v2427, 16
        %v7103 = vpop.permute.xlu0 %7102
        %7104 = vrot.lane.b32.xlu0 %v2428, 16
        %v7105 = vpop.permute.xlu0 %7104
        %7106 = vrot.lane.b32.xlu0 %v2429, 16
        %v7107 = vpop.permute.xlu0 %7106
        %7108 = vrot.lane.b32.xlu0 %v2430, 16
        %v7109 = vpop.permute.xlu0 %7108
        %7110 = vrot.lane.b32.xlu0 %v2431, 16
        %v7111 = vpop.permute.xlu0 %7110
        %7112 = vrot.lane.b32.xlu0 %v2432, 16
        %v7113 = vpop.permute.xlu0 %7112
        %7114 = vrot.lane.b32.xlu0 %v2433, 16
        %v7115 = vpop.permute.xlu0 %7114
        %7116 = vrot.lane.b32.xlu0 %v2434, 16
        %v7117 = vpop.permute.xlu0 %7116
        %7118 = vrot.lane.b32.xlu0 %v2435, 16
        %v7119 = vpop.permute.xlu0 %7118
        %7120 = vrot.lane.b32.xlu0 %v2436, 16
        %v7121 = vpop.permute.xlu0 %7120
        %7122 = vrot.lane.b32.xlu0 %v2437, 16
        %v7123 = vpop.permute.xlu0 %7122
        %7124 = vrot.lane.b32.xlu0 %v2438, 16
        %v7125 = vpop.permute.xlu0 %7124
        %7126 = vrot.lane.b32.xlu0 %v2439, 16
        %v7127 = vpop.permute.xlu0 %7126
        %7128 = vrot.lane.b32.xlu0 %v2440, 16
        %v7129 = vpop.permute.xlu0 %7128
        %7130 = vrot.lane.b32.xlu0 %v2441, 16
        %v7131 = vpop.permute.xlu0 %7130
        %7132 = vrot.lane.b32.xlu0 %v2442, 16
        %v7133 = vpop.permute.xlu0 %7132
        %7134 = vrot.lane.b32.xlu0 %v2443, 16
        %v7135 = vpop.permute.xlu0 %7134
        %7136 = vrot.lane.b32.xlu0 %v2444, 16
        %v7137 = vpop.permute.xlu0 %7136
        %7138 = vrot.lane.b32.xlu0 %v2445, 16
        %v7139 = vpop.permute.xlu0 %7138
        %7140 = vrot.lane.b32.xlu0 %v2446, 16
        %v7141 = vpop.permute.xlu0 %7140
        %7142 = vrot.lane.b32.xlu0 %v2447, 16
        %v7143 = vpop.permute.xlu0 %7142
        %7208 = vrot.lane.b32.xlu0 %v6230, 48
        %v7209 = vpop.permute.xlu0 %7208
        %7210 = vrot.lane.b32.xlu0 %v6231, 48
        %v7211 = vpop.permute.xlu0 %7210
        %7212 = vrot.lane.b32.xlu0 %v6232, 48
        %v7213 = vpop.permute.xlu0 %7212
        %7214 = vrot.lane.b32.xlu0 %v6233, 48
        %v7215 = vpop.permute.xlu0 %7214
        %7216 = vrot.lane.b32.xlu0 %v6234, 48
        %v7217 = vpop.permute.xlu0 %7216
        %7218 = vrot.lane.b32.xlu0 %v6235, 48
        %v7219 = vpop.permute.xlu0 %7218
        %7220 = vrot.lane.b32.xlu0 %v6236, 48
        %v7221 = vpop.permute.xlu0 %7220
        %7222 = vrot.lane.b32.xlu0 %v6237, 48
        %v7223 = vpop.permute.xlu0 %7222
        %7224 = vrot.lane.b32.xlu0 %v6238, 48
        %v7225 = vpop.permute.xlu0 %7224
        %7226 = vrot.lane.b32.xlu0 %v6239, 48
        %v7227 = vpop.permute.xlu0 %7226
        %7228 = vrot.lane.b32.xlu0 %v6240, 48
        %v7229 = vpop.permute.xlu0 %7228
        %7230 = vrot.lane.b32.xlu0 %v6241, 48
        %v7231 = vpop.permute.xlu0 %7230
        %7232 = vrot.lane.b32.xlu0 %v6242, 48
        %v7233 = vpop.permute.xlu0 %7232
        %7234 = vrot.lane.b32.xlu0 %v6243, 48
        %v7235 = vpop.permute.xlu0 %7234
        %7236 = vrot.lane.b32.xlu0 %v6244, 48
        %v7237 = vpop.permute.xlu0 %7236
        %7238 = vrot.lane.b32.xlu0 %v6245, 48
        %v7239 = vpop.permute.xlu0 %7238
        %7240 = vrot.lane.b32.xlu0 %v6246, 48
        %v7241 = vpop.permute.xlu0 %7240
        %7242 = vrot.lane.b32.xlu0 %v6247, 48
        %v7243 = vpop.permute.xlu0 %7242
        %7244 = vrot.lane.b32.xlu0 %v6248, 48
        %v7245 = vpop.permute.xlu0 %7244
        %7246 = vrot.lane.b32.xlu0 %v6249, 48
        %v7247 = vpop.permute.xlu0 %7246
        %7248 = vrot.lane.b32.xlu0 %v6250, 48
        %v7249 = vpop.permute.xlu0 %7248
        %7250 = vrot.lane.b32.xlu0 %v6251, 48
        %v7251 = vpop.permute.xlu0 %7250
        %7252 = vrot.lane.b32.xlu0 %v6252, 48
        %v7253 = vpop.permute.xlu0 %7252
        %7254 = vrot.lane.b32.xlu0 %v6253, 48
        %v7255 = vpop.permute.xlu0 %7254
        %7256 = vrot.lane.b32.xlu0 %v6254, 48
        %v7257 = vpop.permute.xlu0 %7256
        %7258 = vrot.lane.b32.xlu0 %v6255, 48
        %v7259 = vpop.permute.xlu0 %7258
        %7260 = vrot.lane.b32.xlu0 %v6256, 48
        %v7261 = vpop.permute.xlu0 %7260
        %7262 = vrot.lane.b32.xlu0 %v6257, 48
        %v7263 = vpop.permute.xlu0 %7262
        %7264 = vrot.lane.b32.xlu0 %v6258, 48
        %v7265 = vpop.permute.xlu0 %7264
        %7266 = vrot.lane.b32.xlu0 %v6259, 48
        %v7267 = vpop.permute.xlu0 %7266
        %7268 = vrot.lane.b32.xlu0 %v6260, 48
        %v7269 = vpop.permute.xlu0 %7268
        %7270 = vrot.lane.b32.xlu0 %v6261, 48
        %v7271 = vpop.permute.xlu0 %7270
        %7336 = vrot.lane.b32.xlu0 %v7016, 64
        %v7337 = vpop.permute.xlu0 %7336
        %7338 = vrot.lane.b32.xlu0 %v7017, 64
        %v7339 = vpop.permute.xlu0 %7338
        %7340 = vrot.lane.b32.xlu0 %v7018, 64
        %v7341 = vpop.permute.xlu0 %7340
        %7342 = vrot.lane.b32.xlu0 %v7019, 64
        %v7343 = vpop.permute.xlu0 %7342
        %7344 = vrot.lane.b32.xlu0 %v7020, 64
        %v7345 = vpop.permute.xlu0 %7344
        %7346 = vrot.lane.b32.xlu0 %v7021, 64
        %v7347 = vpop.permute.xlu0 %7346
        %7348 = vrot.lane.b32.xlu0 %v7022, 64
        %v7349 = vpop.permute.xlu0 %7348
        %7350 = vrot.lane.b32.xlu0 %v7023, 64
        %v7351 = vpop.permute.xlu0 %7350
        %7352 = vrot.lane.b32.xlu0 %v7024, 64
        %v7353 = vpop.permute.xlu0 %7352
        %7354 = vrot.lane.b32.xlu0 %v7025, 64
        %v7355 = vpop.permute.xlu0 %7354
        %7356 = vrot.lane.b32.xlu0 %v7026, 64
        %v7357 = vpop.permute.xlu0 %7356
        %7358 = vrot.lane.b32.xlu0 %v7027, 64
        %v7359 = vpop.permute.xlu0 %7358
        %7360 = vrot.lane.b32.xlu0 %v7028, 64
        %v7361 = vpop.permute.xlu0 %7360
        %7362 = vrot.lane.b32.xlu0 %v7029, 64
        %v7363 = vpop.permute.xlu0 %7362
        %7364 = vrot.lane.b32.xlu0 %v7030, 64
        %v7365 = vpop.permute.xlu0 %7364
        %7366 = vrot.lane.b32.xlu0 %v7031, 64
        %v7367 = vpop.permute.xlu0 %7366
        %7368 = vrot.lane.b32.xlu0 %v7032, 64
        %v7369 = vpop.permute.xlu0 %7368
        %7370 = vrot.lane.b32.xlu0 %v7033, 64
        %v7371 = vpop.permute.xlu0 %7370
        %7372 = vrot.lane.b32.xlu0 %v7034, 64
        %v7373 = vpop.permute.xlu0 %7372
        %7374 = vrot.lane.b32.xlu0 %v7035, 64
        %v7375 = vpop.permute.xlu0 %7374
        %7376 = vrot.lane.b32.xlu0 %v7036, 64
        %v7377 = vpop.permute.xlu0 %7376
        %7378 = vrot.lane.b32.xlu0 %v7037, 64
        %v7379 = vpop.permute.xlu0 %7378
        %7380 = vrot.lane.b32.xlu0 %v7038, 64
        %v7381 = vpop.permute.xlu0 %7380
        %7382 = vrot.lane.b32.xlu0 %v7039, 64
        %v7383 = vpop.permute.xlu0 %7382
        %7384 = vrot.lane.b32.xlu0 %v7040, 64
        %v7385 = vpop.permute.xlu0 %7384
        %7386 = vrot.lane.b32.xlu0 %v7041, 64
        %v7387 = vpop.permute.xlu0 %7386
        %7388 = vrot.lane.b32.xlu0 %v7042, 64
        %v7389 = vpop.permute.xlu0 %7388
        %7390 = vrot.lane.b32.xlu0 %v7043, 64
        %v7391 = vpop.permute.xlu0 %7390
        %7392 = vrot.lane.b32.xlu0 %v7044, 64
        %v7393 = vpop.permute.xlu0 %7392
        %7394 = vrot.lane.b32.xlu0 %v7045, 64
        %v7395 = vpop.permute.xlu0 %7394
        %7396 = vrot.lane.b32.xlu0 %v7046, 64
        %v7397 = vpop.permute.xlu0 %7396
        %7398 = vrot.lane.b32.xlu0 %v7047, 64
        %v7399 = vpop.permute.xlu0 %7398
        %v7432 = vsel %vm480, %v690, %v7081
        %v7433 = vsel %vm480, %v691, %v7083
        %v7434 = vsel %vm480, %v692, %v7085
        %v7435 = vsel %vm480, %v693, %v7087
        %v7436 = vsel %vm480, %v694, %v7089
        %v7437 = vsel %vm480, %v695, %v7091
        %v7438 = vsel %vm480, %v696, %v7093
        %v7439 = vsel %vm480, %v697, %v7095
        %v7440 = vsel %vm480, %v698, %v7097
        %v7441 = vsel %vm480, %v699, %v7099
        %v7442 = vsel %vm480, %v700, %v7101
        %v7443 = vsel %vm480, %v701, %v7103
        %v7444 = vsel %vm480, %v702, %v7105
        %v7445 = vsel %vm480, %v703, %v7107
        %v7446 = vsel %vm480, %v704, %v7109
        %v7447 = vsel %vm480, %v705, %v7111
        %v7448 = vsel %vm480, %v706, %v7113
        %v7449 = vsel %vm480, %v707, %v7115
        %v7450 = vsel %vm480, %v708, %v7117
        %v7451 = vsel %vm480, %v709, %v7119
        %v7452 = vsel %vm480, %v710, %v7121
        %v7453 = vsel %vm480, %v711, %v7123
        %v7454 = vsel %vm480, %v712, %v7125
        %v7455 = vsel %vm480, %v713, %v7127
        %v7456 = vsel %vm480, %v714, %v7129
        %v7457 = vsel %vm480, %v715, %v7131
        %v7458 = vsel %vm480, %v716, %v7133
        %v7459 = vsel %vm480, %v717, %v7135
        %v7460 = vsel %vm480, %v718, %v7137
        %v7461 = vsel %vm480, %v719, %v7139
        %v7462 = vsel %vm480, %v720, %v7141
        %v7463 = vsel %vm480, %v721, %v7143
        %v7464 = vsel %vm1931, %v7432, %v7209
        %v7465 = vsel %vm1931, %v7433, %v7211
        %v7466 = vsel %vm1931, %v7434, %v7213
        %v7467 = vsel %vm1931, %v7435, %v7215
        %v7468 = vsel %vm1931, %v7436, %v7217
        %v7469 = vsel %vm1931, %v7437, %v7219
        %v7470 = vsel %vm1931, %v7438, %v7221
        %v7471 = vsel %vm1931, %v7439, %v7223
        %v7472 = vsel %vm1931, %v7440, %v7225
        %v7473 = vsel %vm1931, %v7441, %v7227
        %v7474 = vsel %vm1931, %v7442, %v7229
        %v7475 = vsel %vm1931, %v7443, %v7231
        %v7476 = vsel %vm1931, %v7444, %v7233
        %v7477 = vsel %vm1931, %v7445, %v7235
        %v7478 = vsel %vm1931, %v7446, %v7237
        %v7479 = vsel %vm1931, %v7447, %v7239
        %v7480 = vsel %vm1931, %v7448, %v7241
        %v7481 = vsel %vm1931, %v7449, %v7243
        %v7482 = vsel %vm1931, %v7450, %v7245
        %v7483 = vsel %vm1931, %v7451, %v7247
        %v7484 = vsel %vm1931, %v7452, %v7249
        %v7485 = vsel %vm1931, %v7453, %v7251
        %v7486 = vsel %vm1931, %v7454, %v7253
        %v7487 = vsel %vm1931, %v7455, %v7255
        %v7488 = vsel %vm1931, %v7456, %v7257
        %v7489 = vsel %vm1931, %v7457, %v7259
        %v7490 = vsel %vm1931, %v7458, %v7261
        %v7491 = vsel %vm1931, %v7459, %v7263
        %v7492 = vsel %vm1931, %v7460, %v7265
        %v7493 = vsel %vm1931, %v7461, %v7267
        %v7494 = vsel %vm1931, %v7462, %v7269
        %v7495 = vsel %vm1931, %v7463, %v7271
        %v7496 = vsel %vm1964, %v7464, %v7337
        %v7497 = vsel %vm1964, %v7465, %v7339
        %v7498 = vsel %vm1964, %v7466, %v7341
        %v7499 = vsel %vm1964, %v7467, %v7343
        %v7500 = vsel %vm1964, %v7468, %v7345
        %v7501 = vsel %vm1964, %v7469, %v7347
        %v7502 = vsel %vm1964, %v7470, %v7349
        %v7503 = vsel %vm1964, %v7471, %v7351
        %v7504 = vsel %vm1964, %v7472, %v7353
        %v7505 = vsel %vm1964, %v7473, %v7355
        %v7506 = vsel %vm1964, %v7474, %v7357
        %v7507 = vsel %vm1964, %v7475, %v7359
        %v7508 = vsel %vm1964, %v7476, %v7361
        %v7509 = vsel %vm1964, %v7477, %v7363
        %v7510 = vsel %vm1964, %v7478, %v7365
        %v7511 = vsel %vm1964, %v7479, %v7367
        %v7512 = vsel %vm1964, %v7480, %v7369
        %v7513 = vsel %vm1964, %v7481, %v7371
        %v7514 = vsel %vm1964, %v7482, %v7373
        %v7515 = vsel %vm1964, %v7483, %v7375
        %v7516 = vsel %vm1964, %v7484, %v7377
        %v7517 = vsel %vm1964, %v7485, %v7379
        %v7518 = vsel %vm1964, %v7486, %v7381
        %v7519 = vsel %vm1964, %v7487, %v7383
        %v7520 = vsel %vm1964, %v7488, %v7385
        %v7521 = vsel %vm1964, %v7489, %v7387
        %v7522 = vsel %vm1964, %v7490, %v7389
        %v7523 = vsel %vm1964, %v7491, %v7391
        %v7524 = vsel %vm1964, %v7492, %v7393
        %v7525 = vsel %vm1964, %v7493, %v7395
        %v7526 = vsel %vm1964, %v7494, %v7397
        %v7527 = vsel %vm1964, %v7495, %v7399
        %7528 = vst.msk [vmem:[%s350] sm:$0xff] %vm1997, %v7496
        %7529 = vst.msk [vmem:[%s350 + $0x8] sm:$0xff] %vm1997, %v7497
        %7530 = vst.msk [vmem:[%s350 + $0x10] sm:$0xff] %vm1997, %v7498
        %7531 = vst.msk [vmem:[%s350 + $0x18] sm:$0xff] %vm1997, %v7499
        %7532 = vst.msk [vmem:[%s350 + $0x20] sm:$0xff] %vm1997, %v7500
        %7533 = vst.msk [vmem:[%s350 + $0x28] sm:$0xff] %vm1997, %v7501
        %7534 = vst.msk [vmem:[%s350 + $0x30] sm:$0xff] %vm1997, %v7502
        %7535 = vst.msk [vmem:[%s350 + $0x38] sm:$0xff] %vm1997, %v7503
        %7536 = vst.msk [vmem:[%s350 + $0x40] sm:$0xff] %vm1997, %v7504
        %7537 = vst.msk [vmem:[%s350 + $0x48] sm:$0xff] %vm1997, %v7505
        %7538 = vst.msk [vmem:[%s350 + $0x50] sm:$0xff] %vm1997, %v7506
        %7539 = vst.msk [vmem:[%s350 + $0x58] sm:$0xff] %vm1997, %v7507
        %7540 = vst.msk [vmem:[%s350 + $0x60] sm:$0xff] %vm1997, %v7508
        %7541 = vst.msk [vmem:[%s350 + $0x68] sm:$0xff] %vm1997, %v7509
        %7542 = vst.msk [vmem:[%s350 + $0x70] sm:$0xff] %vm1997, %v7510
        %7543 = vst.msk [vmem:[%s350 + $0x78] sm:$0xff] %vm1997, %v7511
        %7544 = vst.msk [vmem:[%s350 + $0x80] sm:$0xff] %vm1997, %v7512
        %7545 = vst.msk [vmem:[%s350 + $0x88] sm:$0xff] %vm1997, %v7513
        %7546 = vst.msk [vmem:[%s350 + $0x90] sm:$0xff] %vm1997, %v7514
        %7547 = vst.msk [vmem:[%s350 + $0x98] sm:$0xff] %vm1997, %v7515
        %7548 = vst.msk [vmem:[%s350 + $0xa0] sm:$0xff] %vm1997, %v7516
        %7549 = vst.msk [vmem:[%s350 + $0xa8] sm:$0xff] %vm1997, %v7517
        %7550 = vst.msk [vmem:[%s350 + $0xb0] sm:$0xff] %vm1997, %v7518
        %7551 = vst.msk [vmem:[%s350 + $0xb8] sm:$0xff] %vm1997, %v7519
        %7552 = vst.msk [vmem:[%s350 + $0xc0] sm:$0xff] %vm1997, %v7520
        %7553 = vst.msk [vmem:[%s350 + $0xc8] sm:$0xff] %vm1997, %v7521
        %7554 = vst.msk [vmem:[%s350 + $0xd0] sm:$0xff] %vm1997, %v7522
        %7555 = vst.msk [vmem:[%s350 + $0xd8] sm:$0xff] %vm1997, %v7523
        %7556 = vst.msk [vmem:[%s350 + $0xe0] sm:$0xff] %vm1997, %v7524
        %7557 = vst.msk [vmem:[%s350 + $0xe8] sm:$0xff] %vm1997, %v7525
        %7558 = vst.msk [vmem:[%s350 + $0xf0] sm:$0xff] %vm1997, %v7526
        %7559 = vst.msk [vmem:[%s350 + $0xf8] sm:$0xff] %vm1997, %v7527
        %s7560 = sand.u32 %s228, 1
        %s7561 = scalar_lea.sflag [#allocation4], %s7560
        %s7562 = sand.u32 %s228, 1
        %s7563 = smul.addr %s7562, 256
        %s7564 = scalar_lea.vmem [#allocation5], %s7563
        // Predicated region
        $region61: #{tpu_custom_call.1} parent=55 // pred_check
          %p7565 = pneg %p238
        $region62: #{tpu_custom_call.1} parent=55 // pred_check_branch
          %7567 = sbr.rel (%p7565) target = $region64
        $region63: #{tpu_custom_call.1} parent=55 // pred_region
          %s7569 = ssub.s32 4096, 4096
          %7570 = vsyncadd %s7561, %s7569
          %s7571 = smul.addr %s26, 32
          %s7572 = smul.addr %s7571, 128
          %s7573 = scalar_lea.hbm %s9, %s7572
          %s7574 = sshll.u32 %s7564, 4
          %s7575 = int_to_ptr.vmem [resolvable:$true] %s7574
          %7580 = dma.vmem_to_hbm [thread:$0]  %s7575, 4096, %s7573, %s7561, 128, 128, 8
        $region64: #{tpu_custom_call.1} parent=55 // pred_fallthru
          _
      $region56: #{tpu_custom_call.1} parent=5 // pred_fallthru
        _
      %p7581 = scmp.le.s32.totalorder 2, %s21
      // Predicated region
      $region65: #{tpu_custom_call.1} parent=5 // pred_check
        %p7582 = pneg %p7581
      $region66: #{tpu_custom_call.1} parent=5 // pred_check_branch
        %7584 = sbr.rel (%p7582) target = $region68
      $region67: #{tpu_custom_call.1} parent=5 // pred_region
        %s7585 = ssub.s32 %s21, 2
        // Predicated region
        $region69: #{tpu_custom_call.1} parent=67 // pred_check
          %p7586 = pneg %p244
        $region70: #{tpu_custom_call.1} parent=67 // pred_check_branch
          %7588 = sbr.rel (%p7586) target = $region72
        $region71: #{tpu_custom_call.1} parent=67 // pred_region
          %s7589 = sand.u32 %s229, 1
          %s7590 = scalar_lea.sflag [#allocation4], %s7589
          %s7591 = sand.u32 %s229, 1
          %s7592 = smul.addr %s7591, 256
          %s7593 = scalar_lea.vmem [#allocation5], %s7592
          %7594 = dma.done %s7590, 4096
        $region72: #{tpu_custom_call.1} parent=67 // pred_fallthru
          _
      $region68: #{tpu_custom_call.1} parent=5 // pred_fallthru
        _
    $region6: #{tpu_custom_call.1} parent=1 // loop_footer
      %s25 = sadd.s32 1, %s21
    $region7: #{tpu_custom_call.1} parent=1 // loop_footer_branch
      %20 = sbr.rel target = $region3
    $region8: #{tpu_custom_call.1} parent=1 // loop_exit
      _
    %7595 = vsyncpa [#allocation3], 1
    %s7596 = scalar_lea.sflag [#allocation3], 1
    %7597 = vsyncpa %s7596, 1
    %7598 = vsyncpa [#allocation4], 1
    %s7599 = scalar_lea.sflag [#allocation4], 1
    %7600 = vsyncpa %s7599, 1

</llo_original>
